<compile_context>
chip_gen: v7x
topology: tpu7x:2x2x1
jax: 0.10.0
libtpu: 0.0.40
codegen_flags: <defaults>
</compile_context>

<pallas_src>
import functools

import jax
import jax.numpy as jnp
from jax.experimental import pallas as pl
from jax.experimental.pallas import tpu as pltpu

KH = KW = 3
PAD = KH // 2
LRELU_SLOPE = 0.01   # nn.LeakyReLU default negative_slope
BN_EPS = 1e-5        # nn.BatchNorm2d default eps


def _fill_padded_tile(pad_ref, xm_ref, xt_ref, xb_ref, t, num_t, th, w):
    """Assemble the zero-padded (th+2, w+2, C) input row-tile in VMEM scratch.

    pad row 0      <- halo row above the tile (zero at the top image border)
    pad rows 1..th <- the tile's own rows
    pad row th+1   <- halo row below the tile (zero at the bottom image border)
    pad cols 0 and w+1 stay zero (W padding).
    """
    pad_ref[...] = jnp.zeros_like(pad_ref)
    pad_ref[1:th + 1, 1:w + 1, :] = xm_ref[0].astype(jnp.float32)

    @pl.when(t > 0)
    def _():
        pad_ref[0:1, 1:w + 1, :] = xt_ref[0].astype(jnp.float32)

    @pl.when(t < num_t - 1)
    def _():
        pad_ref[th + 1:th + 2, 1:w + 1, :] = xb_ref[0].astype(jnp.float32)


def _conv3x3_accumulate(pad_ref, w_ref, acc_ref, th, w):
    """acc_ref <- 3x3 'same' conv (no bias) of the padded tile.

    Each tap is a channel-contraction matmul on the MXU, read directly from the
    padded scratch ref (window loads, not value-slice copies), accumulated into
    a VMEM scratch accumulator to bound register pressure for large tiles.
    """
    for kh in range(KH):
        for kw in range(KW):
            contrib = jax.lax.dot_general(
                pad_ref[kh:kh + th, kw:kw + w, :],   # (th, w, Cin) window
                w_ref[kh, kw],                       # (Cin, Cout)
                dimension_numbers=(((2,), (0,)), ((), ())),
                preferred_element_type=jnp.float32)
            if kh == 0 and kw == 0:
                acc_ref[...] = contrib
            else:
                acc_ref[...] += contrib


def _stats_kernel(xm_ref, xt_ref, xb_ref, w_ref, sum_ref, sumsq_ref,
                  pad_ref, acc_ref, *, th, w, num_t):
    """Pass 1: per-channel sum and sum-of-squares of the conv output."""
    n = pl.program_id(0)
    t = pl.program_id(1)

    _fill_padded_tile(pad_ref, xm_ref, xt_ref, xb_ref, t, num_t, th, w)
    _conv3x3_accumulate(pad_ref, w_ref, acc_ref, th, w)

    @pl.when(jnp.logical_and(n == 0, t == 0))
    def _():
        sum_ref[...] = jnp.zeros_like(sum_ref)
        sumsq_ref[...] = jnp.zeros_like(sumsq_ref)

    acc = acc_ref[...]
    sum_ref[...] += jnp.sum(acc, axis=(0, 1))[None, :]
    sumsq_ref[...] += jnp.sum(acc * acc, axis=(0, 1))[None, :]


def _conv_bn_lrelu_kernel(scale_ref, shift_ref, xm_ref, xt_ref, xb_ref, w_ref,
                          out_ref, pad_ref, acc_ref, *, th, w, num_t):
    """Pass 2: recompute conv, fuse BN (precomputed scale/shift) + LeakyReLU."""
    t = pl.program_id(1)

    _fill_padded_tile(pad_ref, xm_ref, xt_ref, xb_ref, t, num_t, th, w)
    _conv3x3_accumulate(pad_ref, w_ref, acc_ref, th, w)

    y = acc_ref[...] * scale_ref[0][None, None, :] + shift_ref[0][None, None, :]
    y = jnp.where(y >= 0.0, y, LRELU_SLOPE * y)        # LeakyReLU
    out_ref[0] = y.astype(out_ref.dtype)               # single store, final dtype


def _pick_row_tile(h, w, c, itemsize=4, budget_bytes=8 * 1024 * 1024):
    """Largest divisor of H whose working set (~6 tile-sized f32 buffers:
    double-buffered in/out blocks + padded scratch + accumulator) fits the budget."""
    denom = max(1, 6 * w * c * itemsize)
    max_rows = max(1, budget_bytes // denom)
    for cand in range(min(h, max_rows), 0, -1):
        if h % cand == 0:
            return cand
    return h


def conv_bn_lrelu(x_nchw, w_oihw, bias, gamma, beta, *, row_tile=None):
    """Full ConvBNReLU forward.  x_nchw: (N, C, H, W) -> (N, C, H, W)."""
    del bias  # cancels exactly under training-mode BatchNorm (see header comment)
    n, c, h, w = x_nchw.shape

    th = row_tile if row_tile is not None else _pick_row_tile(h, w, c)
    assert h % th == 0, f"row_tile {th} must divide H={h}"
    num_t = h // th

    # Layout glue (host): NCHW -> NHWC (channels on the lane dim), OIHW -> (KH, KW, I, O).
    x = jnp.transpose(x_nchw, (0, 2, 3, 1))
    wk = jnp.transpose(w_oihw, (2, 3, 1, 0)).astype(jnp.float32)

    grid = (n, num_t)

    # Row tile plus its two 1-row halos (same array passed three times; halo block
    # indices are clamped at the image border and zero-masked inside the kernel).
    x_main_spec = pl.BlockSpec((1, th, w, c), lambda ni, ti: (ni, ti, 0, 0))
    x_top_spec = pl.BlockSpec(
        (1, 1, w, c), lambda ni, ti: (ni, jnp.maximum(ti * th - 1, 0), 0, 0))
    x_bot_spec = pl.BlockSpec(
        (1, 1, w, c), lambda ni, ti: (ni, jnp.minimum(ti * th + th, h - 1), 0, 0))
    w_spec = pl.BlockSpec((KH, KW, c, c), lambda ni, ti: (0, 0, 0, 0))
    vec_spec = pl.BlockSpec((1, c), lambda ni, ti: (0, 0))

    scratch = [
        pltpu.VMEM((th + 2, w + 2, c), jnp.float32),   # fused zero-padded input tile
        pltpu.VMEM((th, w, c), jnp.float32),           # conv accumulator
    ]

    # ---- Pass 1: conv statistics only (no full-size intermediate written to HBM).
    csum, csumsq = pl.pallas_call(
        functools.partial(_stats_kernel, th=th, w=w, num_t=num_t),
        out_shape=(jax.ShapeDtypeStruct((1, c), jnp.float32),
                   jax.ShapeDtypeStruct((1, c), jnp.float32)),
        grid=grid,
        in_specs=[x_main_spec, x_top_spec, x_bot_spec, w_spec],
        out_specs=(vec_spec, vec_spec),
        scratch_shapes=scratch,
        compiler_params=pltpu.CompilerParams(
            dimension_semantics=("arbitrary", "arbitrary"),  # stats accumulate sequentially
            vmem_limit_bytes=32 * 1024 * 1024),
    )(x, x, x, wk)

    # ---- BN scale/shift computed once on tiny (C,) vectors (hoisted out of the grid).
    count = float(n * h * w)
    mean = csum[0] / count
    var = jnp.maximum(csumsq[0] / count - mean * mean, 0.0)   # clamp E[x^2]-E[x]^2 >= 0
    inv_std = jax.lax.rsqrt(var + BN_EPS)
    scale = (gamma.astype(jnp.float32) * inv_std).reshape(1, c)
    shift = (beta.astype(jnp.float32) - scale[0] * mean).reshape(1, c)

    # ---- Pass 2: recompute the cheap conv, fuse BN + LeakyReLU, write output once.
    out_nhwc = pl.pallas_call(
        functools.partial(_conv_bn_lrelu_kernel, th=th, w=w, num_t=num_t),
        out_shape=jax.ShapeDtypeStruct((n, h, w, c), jnp.float32),
        grid=grid,
        in_specs=[vec_spec, vec_spec, x_main_spec, x_top_spec, x_bot_spec, w_spec],
        out_specs=pl.BlockSpec((1, th, w, c), lambda ni, ti: (ni, ti, 0, 0)),
        scratch_shapes=scratch,
        compiler_params=pltpu.CompilerParams(
            dimension_semantics=("parallel", "parallel"),     # independent tiles -> megacore
            vmem_limit_bytes=32 * 1024 * 1024),
    )(scale, shift, x, x, x, wk)

    return jnp.transpose(out_nhwc, (0, 3, 1, 2))  # back to NCHW


def reference(x, w, b, gamma, beta):
    """Pure-JAX reference of the PyTorch forward (training-mode BN), bias included."""
    y = jax.lax.conv_general_dilated(
        x, w, window_strides=(1, 1), padding=((PAD, PAD), (PAD, PAD)),
        dimension_numbers=("NCHW", "OIHW", "NCHW"))
    y = y + b[None, :, None, None]
    mean = jnp.mean(y, axis=(0, 2, 3))
    var = jnp.var(y, axis=(0, 2, 3))  # biased, as PyTorch uses for normalization
    yn = (y - mean[None, :, None, None]) * jax.lax.rsqrt(var + BN_EPS)[None, :, None, None]
    yn = gamma[None, :, None, None] * yn + beta[None, :, None, None]
    return jnp.where(yn >= 0.0, yn, LRELU_SLOPE * yn)


if __name__ == "__main__":
    key = jax.random.PRNGKey(0)
    k_x, k_w, k_b, k_g, k_bt = jax.random.split(key, 5)

    N, C, H, W = 2, 4, 16, 16
    x = jax.random.normal(k_x, (N, C, H, W), dtype=jnp.float32)
    # Conv2d(C, C, kernel_size=3) parameter shapes: weight OIHW, bias (C,)
    w = jax.random.normal(k_w, (C, C, KH, KW), dtype=jnp.float32) * 0.1
    b = jax.random.normal(k_b, (C,), dtype=jnp.float32) * 0.1
    # BatchNorm2d affine params (PyTorch init is gamma=1, beta=0; perturb so they matter)
    gamma = 1.0 + 0.1 * jax.random.normal(k_g, (C,), dtype=jnp.float32)
    beta = 0.1 * jax.random.normal(k_bt, (C,), dtype=jnp.float32)

    # row_tile=8 exercises the row-tiled + halo path (2 row tiles per image).
    out = conv_bn_lrelu(x, w, b, gamma, beta, row_tile=8)
    out = jax.block_until_ready(out)

    ref = reference(x, w, b, gamma, beta)
    assert out.shape == (N, C, H, W)
    err = jnp.max(jnp.abs(out - ref))
    assert jnp.allclose(out, ref, atol=1e-4, rtol=1e-4), f"max abs err = {err}"

    print("KERNEL_OK")
</pallas_src>

<mosaic_0001>
module attributes {stable_mosaic.version = 11 : i64} {
  func.func @_stats_kernel(%arg0: i32, %arg1: i32, %arg2: memref<1x8x16x4xf32, #tpu.memory_space<vmem>>, %arg3: memref<1x1x16x4xf32, #tpu.memory_space<vmem>>, %arg4: memref<1x1x16x4xf32, #tpu.memory_space<vmem>>, %arg5: memref<3x3x4x4xf32, #tpu.memory_space<vmem>>, %arg6: memref<1x4xf32, #tpu.memory_space<vmem>>, %arg7: memref<1x4xf32, #tpu.memory_space<vmem>>, %arg8: memref<10x18x4xf32, #tpu.memory_space<vmem>>, %arg9: memref<8x16x4xf32, #tpu.memory_space<vmem>>) attributes {dimension_semantics = [#tpu.dimension_semantics<arbitrary>, #tpu.dimension_semantics<arbitrary>], iteration_bounds = array<i64: 2, 2>, scalar_prefetch = 0 : i64, scratch_operands = 2 : i64, tpu.core_type = #tpu.core_type<tc>, window_params = [{transform_indices = @transform_0, window_bounds = array<i64: 1, 8, 16, 4>}, {transform_indices = @transform_1, window_bounds = array<i64: 1, 1, 16, 4>}, {transform_indices = @transform_2, window_bounds = array<i64: 1, 1, 16, 4>}, {pipeline_mode = #tpu.pipeline_mode<synchronous>, transform_indices = @transform_3, window_bounds = array<i64: 3, 3, 4, 4>}, {pipeline_mode = #tpu.pipeline_mode<synchronous>, transform_indices = @transform_4, window_bounds = array<i64: 1, 4>}, {pipeline_mode = #tpu.pipeline_mode<synchronous>, transform_indices = @transform_5, window_bounds = array<i64: 1, 4>}]} {
    %cst = arith.constant 0.000000e+00 : f32
    %0 = vector.broadcast %cst : f32 to vector<10x18x4xf32>
    %c0 = arith.constant 0 : index
    %c0_0 = arith.constant 0 : index
    %c0_1 = arith.constant 0 : index
    %1 = vector.load %arg8[%c0, %c0_0, %c0_1] : memref<10x18x4xf32, #tpu.memory_space<vmem>>, vector<10x18x4xf32>
    tpu.vector_store %arg8[%c0, %c0_0, %c0_1], %0 {strides = array<i32>} : memref<10x18x4xf32, #tpu.memory_space<vmem>>, vector<10x18x4xf32>,
    %c0_2 = arith.constant 0 : index
    %c0_3 = arith.constant 0 : index
    %c0_4 = arith.constant 0 : index
    %c0_5 = arith.constant 0 : index
    %2 = vector.load %arg2[%c0_2, %c0_3, %c0_4, %c0_5] : memref<1x8x16x4xf32, #tpu.memory_space<vmem>>, vector<1x8x16x4xf32>
    %3 = vector.shape_cast %2 : vector<1x8x16x4xf32> to vector<8x16x4xf32>
    %c1 = arith.constant 1 : index
    %c1_6 = arith.constant 1 : index
    %c0_7 = arith.constant 0 : index
    %4 = vector.load %arg8[%c1, %c1_6, %c0_7] : memref<10x18x4xf32, #tpu.memory_space<vmem>>, vector<8x16x4xf32>
    tpu.vector_store %arg8[%c1, %c1_6, %c0_7], %3 {strides = array<i32>} : memref<10x18x4xf32, #tpu.memory_space<vmem>>, vector<8x16x4xf32>,
    %c0_i32 = arith.constant 0 : i32
    %5 = arith.cmpi sgt, %arg1, %c0_i32 : i32
    %6 = arith.extui %5 : i1 to i32
    %c0_i32_8 = arith.constant 0 : i32
    %7 = arith.cmpi ne, %6, %c0_i32_8 : i32
    scf.if %7 {
      %c0_148 = arith.constant 0 : index
      %c0_149 = arith.constant 0 : index
      %c0_150 = arith.constant 0 : index
      %c0_151 = arith.constant 0 : index
      %89 = vector.load %arg3[%c0_148, %c0_149, %c0_150, %c0_151] : memref<1x1x16x4xf32, #tpu.memory_space<vmem>>, vector<1x1x16x4xf32>
      %90 = vector.shape_cast %89 : vector<1x1x16x4xf32> to vector<1x16x4xf32>
      %c0_152 = arith.constant 0 : index
      %c1_153 = arith.constant 1 : index
      %c0_154 = arith.constant 0 : index
      %91 = vector.load %arg8[%c0_152, %c1_153, %c0_154] : memref<10x18x4xf32, #tpu.memory_space<vmem>>, vector<1x16x4xf32>
      tpu.vector_store %arg8[%c0_152, %c1_153, %c0_154], %90 {strides = array<i32>} : memref<10x18x4xf32, #tpu.memory_space<vmem>>, vector<1x16x4xf32>,
    } else {
    }
    %c1_i32 = arith.constant 1 : i32
    %8 = arith.cmpi slt, %arg1, %c1_i32 : i32
    %9 = arith.extui %8 : i1 to i32
    %c0_i32_9 = arith.constant 0 : i32
    %10 = arith.cmpi ne, %9, %c0_i32_9 : i32
    scf.if %10 {
      %c0_148 = arith.constant 0 : index
      %c0_149 = arith.constant 0 : index
      %c0_150 = arith.constant 0 : index
      %c0_151 = arith.constant 0 : index
      %89 = vector.load %arg4[%c0_148, %c0_149, %c0_150, %c0_151] : memref<1x1x16x4xf32, #tpu.memory_space<vmem>>, vector<1x1x16x4xf32>
      %90 = vector.shape_cast %89 : vector<1x1x16x4xf32> to vector<1x16x4xf32>
      %c9 = arith.constant 9 : index
      %c1_152 = arith.constant 1 : index
      %c0_153 = arith.constant 0 : index
      %91 = vector.load %arg8[%c9, %c1_152, %c0_153] : memref<10x18x4xf32, #tpu.memory_space<vmem>>, vector<1x16x4xf32>
      tpu.vector_store %arg8[%c9, %c1_152, %c0_153], %90 {strides = array<i32>} : memref<10x18x4xf32, #tpu.memory_space<vmem>>, vector<1x16x4xf32>,
    } else {
    }
    %c0_10 = arith.constant 0 : index
    %c0_11 = arith.constant 0 : index
    %c0_12 = arith.constant 0 : index
    %11 = vector.load %arg8[%c0_10, %c0_11, %c0_12] : memref<10x18x4xf32, #tpu.memory_space<vmem>>, vector<8x16x4xf32>
    %c0_13 = arith.constant 0 : index
    %c0_14 = arith.constant 0 : index
    %c0_15 = arith.constant 0 : index
    %c0_16 = arith.constant 0 : index
    %12 = vector.load %arg5[%c0_13, %c0_14, %c0_15, %c0_16] : memref<3x3x4x4xf32, #tpu.memory_space<vmem>>, vector<1x1x4x4xf32>
    %13 = vector.shape_cast %12 : vector<1x1x4x4xf32> to vector<4x4xf32>
    %cst_17 = arith.constant dense<0.000000e+00> : vector<8x16x4xf32>
    %14 = tpu.matmul %11, %13, %cst_17 {dimension_numbers = #tpu.dot_dimension_numbers<[2], [0], [0, 1], [1], [0, 0, 0, 1, 1, 1], [], []>} : vector<8x16x4xf32>, vector<4x4xf32>, vector<8x16x4xf32> -> vector<8x16x4xf32>
    %c0_18 = arith.constant 0 : index
    %c0_19 = arith.constant 0 : index
    %c0_20 = arith.constant 0 : index
    %15 = vector.load %arg9[%c0_18, %c0_19, %c0_20] : memref<8x16x4xf32, #tpu.memory_space<vmem>>, vector<8x16x4xf32>
    tpu.vector_store %arg9[%c0_18, %c0_19, %c0_20], %14 {strides = array<i32>} : memref<8x16x4xf32, #tpu.memory_space<vmem>>, vector<8x16x4xf32>,
    %c0_21 = arith.constant 0 : index
    %c1_22 = arith.constant 1 : index
    %c0_23 = arith.constant 0 : index
    %16 = vector.load %arg8[%c0_21, %c1_22, %c0_23] : memref<10x18x4xf32, #tpu.memory_space<vmem>>, vector<8x16x4xf32>
    %c0_24 = arith.constant 0 : index
    %c1_25 = arith.constant 1 : index
    %c0_26 = arith.constant 0 : index
    %c0_27 = arith.constant 0 : index
    %17 = vector.load %arg5[%c0_24, %c1_25, %c0_26, %c0_27] : memref<3x3x4x4xf32, #tpu.memory_space<vmem>>, vector<1x1x4x4xf32>
    %18 = vector.shape_cast %17 : vector<1x1x4x4xf32> to vector<4x4xf32>
    %cst_28 = arith.constant dense<0.000000e+00> : vector<8x16x4xf32>
    %19 = tpu.matmul %16, %18, %cst_28 {dimension_numbers = #tpu.dot_dimension_numbers<[2], [0], [0, 1], [1], [0, 0, 0, 1, 1, 1], [], []>} : vector<8x16x4xf32>, vector<4x4xf32>, vector<8x16x4xf32> -> vector<8x16x4xf32>
    %c0_29 = arith.constant 0 : index
    %c0_30 = arith.constant 0 : index
    %c0_31 = arith.constant 0 : index
    %20 = vector.load %arg9[%c0_29, %c0_30, %c0_31] : memref<8x16x4xf32, #tpu.memory_space<vmem>>, vector<8x16x4xf32>
    %21 = arith.addf %20, %19 : vector<8x16x4xf32>
    %c0_32 = arith.constant 0 : index
    %c0_33 = arith.constant 0 : index
    %c0_34 = arith.constant 0 : index
    %22 = vector.load %arg9[%c0_32, %c0_33, %c0_34] : memref<8x16x4xf32, #tpu.memory_space<vmem>>, vector<8x16x4xf32>
    tpu.vector_store %arg9[%c0_32, %c0_33, %c0_34], %21 {strides = array<i32>} : memref<8x16x4xf32, #tpu.memory_space<vmem>>, vector<8x16x4xf32>,
    %c0_35 = arith.constant 0 : index
    %c2 = arith.constant 2 : index
    %c0_36 = arith.constant 0 : index
    %23 = vector.load %arg8[%c0_35, %c2, %c0_36] : memref<10x18x4xf32, #tpu.memory_space<vmem>>, vector<8x16x4xf32>
    %c0_37 = arith.constant 0 : index
    %c2_38 = arith.constant 2 : index
    %c0_39 = arith.constant 0 : index
    %c0_40 = arith.constant 0 : index
    %24 = vector.load %arg5[%c0_37, %c2_38, %c0_39, %c0_40] : memref<3x3x4x4xf32, #tpu.memory_space<vmem>>, vector<1x1x4x4xf32>
    %25 = vector.shape_cast %24 : vector<1x1x4x4xf32> to vector<4x4xf32>
    %cst_41 = arith.constant dense<0.000000e+00> : vector<8x16x4xf32>
    %26 = tpu.matmul %23, %25, %cst_41 {dimension_numbers = #tpu.dot_dimension_numbers<[2], [0], [0, 1], [1], [0, 0, 0, 1, 1, 1], [], []>} : vector<8x16x4xf32>, vector<4x4xf32>, vector<8x16x4xf32> -> vector<8x16x4xf32>
    %c0_42 = arith.constant 0 : index
    %c0_43 = arith.constant 0 : index
    %c0_44 = arith.constant 0 : index
    %27 = vector.load %arg9[%c0_42, %c0_43, %c0_44] : memref<8x16x4xf32, #tpu.memory_space<vmem>>, vector<8x16x4xf32>
    %28 = arith.addf %27, %26 : vector<8x16x4xf32>
    %c0_45 = arith.constant 0 : index
    %c0_46 = arith.constant 0 : index
    %c0_47 = arith.constant 0 : index
    %29 = vector.load %arg9[%c0_45, %c0_46, %c0_47] : memref<8x16x4xf32, #tpu.memory_space<vmem>>, vector<8x16x4xf32>
    tpu.vector_store %arg9[%c0_45, %c0_46, %c0_47], %28 {strides = array<i32>} : memref<8x16x4xf32, #tpu.memory_space<vmem>>, vector<8x16x4xf32>,
    %c1_48 = arith.constant 1 : index
    %c0_49 = arith.constant 0 : index
    %c0_50 = arith.constant 0 : index
    %30 = vector.load %arg8[%c1_48, %c0_49, %c0_50] : memref<10x18x4xf32, #tpu.memory_space<vmem>>, vector<8x16x4xf32>
    %c1_51 = arith.constant 1 : index
    %c0_52 = arith.constant 0 : index
    %c0_53 = arith.constant 0 : index
    %c0_54 = arith.constant 0 : index
    %31 = vector.load %arg5[%c1_51, %c0_52, %c0_53, %c0_54] : memref<3x3x4x4xf32, #tpu.memory_space<vmem>>, vector<1x1x4x4xf32>
    %32 = vector.shape_cast %31 : vector<1x1x4x4xf32> to vector<4x4xf32>
    %cst_55 = arith.constant dense<0.000000e+00> : vector<8x16x4xf32>
    %33 = tpu.matmul %30, %32, %cst_55 {dimension_numbers = #tpu.dot_dimension_numbers<[2], [0], [0, 1], [1], [0, 0, 0, 1, 1, 1], [], []>} : vector<8x16x4xf32>, vector<4x4xf32>, vector<8x16x4xf32> -> vector<8x16x4xf32>
    %c0_56 = arith.constant 0 : index
    %c0_57 = arith.constant 0 : index
    %c0_58 = arith.constant 0 : index
    %34 = vector.load %arg9[%c0_56, %c0_57, %c0_58] : memref<8x16x4xf32, #tpu.memory_space<vmem>>, vector<8x16x4xf32>
    %35 = arith.addf %34, %33 : vector<8x16x4xf32>
    %c0_59 = arith.constant 0 : index
    %c0_60 = arith.constant 0 : index
    %c0_61 = arith.constant 0 : index
    %36 = vector.load %arg9[%c0_59, %c0_60, %c0_61] : memref<8x16x4xf32, #tpu.memory_space<vmem>>, vector<8x16x4xf32>
    tpu.vector_store %arg9[%c0_59, %c0_60, %c0_61], %35 {strides = array<i32>} : memref<8x16x4xf32, #tpu.memory_space<vmem>>, vector<8x16x4xf32>,
    %c1_62 = arith.constant 1 : index
    %c1_63 = arith.constant 1 : index
    %c0_64 = arith.constant 0 : index
    %37 = vector.load %arg8[%c1_62, %c1_63, %c0_64] : memref<10x18x4xf32, #tpu.memory_space<vmem>>, vector<8x16x4xf32>
    %c1_65 = arith.constant 1 : index
    %c1_66 = arith.constant 1 : index
    %c0_67 = arith.constant 0 : index
    %c0_68 = arith.constant 0 : index
    %38 = vector.load %arg5[%c1_65, %c1_66, %c0_67, %c0_68] : memref<3x3x4x4xf32, #tpu.memory_space<vmem>>, vector<1x1x4x4xf32>
    %39 = vector.shape_cast %38 : vector<1x1x4x4xf32> to vector<4x4xf32>
    %cst_69 = arith.constant dense<0.000000e+00> : vector<8x16x4xf32>
    %40 = tpu.matmul %37, %39, %cst_69 {dimension_numbers = #tpu.dot_dimension_numbers<[2], [0], [0, 1], [1], [0, 0, 0, 1, 1, 1], [], []>} : vector<8x16x4xf32>, vector<4x4xf32>, vector<8x16x4xf32> -> vector<8x16x4xf32>
    %c0_70 = arith.constant 0 : index
    %c0_71 = arith.constant 0 : index
    %c0_72 = arith.constant 0 : index
    %41 = vector.load %arg9[%c0_70, %c0_71, %c0_72] : memref<8x16x4xf32, #tpu.memory_space<vmem>>, vector<8x16x4xf32>
    %42 = arith.addf %41, %40 : vector<8x16x4xf32>
    %c0_73 = arith.constant 0 : index
    %c0_74 = arith.constant 0 : index
    %c0_75 = arith.constant 0 : index
    %43 = vector.load %arg9[%c0_73, %c0_74, %c0_75] : memref<8x16x4xf32, #tpu.memory_space<vmem>>, vector<8x16x4xf32>
    tpu.vector_store %arg9[%c0_73, %c0_74, %c0_75], %42 {strides = array<i32>} : memref<8x16x4xf32, #tpu.memory_space<vmem>>, vector<8x16x4xf32>,
    %c1_76 = arith.constant 1 : index
    %c2_77 = arith.constant 2 : index
    %c0_78 = arith.constant 0 : index
    %44 = vector.load %arg8[%c1_76, %c2_77, %c0_78] : memref<10x18x4xf32, #tpu.memory_space<vmem>>, vector<8x16x4xf32>
    %c1_79 = arith.constant 1 : index
    %c2_80 = arith.constant 2 : index
    %c0_81 = arith.constant 0 : index
    %c0_82 = arith.constant 0 : index
    %45 = vector.load %arg5[%c1_79, %c2_80, %c0_81, %c0_82] : memref<3x3x4x4xf32, #tpu.memory_space<vmem>>, vector<1x1x4x4xf32>
    %46 = vector.shape_cast %45 : vector<1x1x4x4xf32> to vector<4x4xf32>
    %cst_83 = arith.constant dense<0.000000e+00> : vector<8x16x4xf32>
    %47 = tpu.matmul %44, %46, %cst_83 {dimension_numbers = #tpu.dot_dimension_numbers<[2], [0], [0, 1], [1], [0, 0, 0, 1, 1, 1], [], []>} : vector<8x16x4xf32>, vector<4x4xf32>, vector<8x16x4xf32> -> vector<8x16x4xf32>
    %c0_84 = arith.constant 0 : index
    %c0_85 = arith.constant 0 : index
    %c0_86 = arith.constant 0 : index
    %48 = vector.load %arg9[%c0_84, %c0_85, %c0_86] : memref<8x16x4xf32, #tpu.memory_space<vmem>>, vector<8x16x4xf32>
    %49 = arith.addf %48, %47 : vector<8x16x4xf32>
    %c0_87 = arith.constant 0 : index
    %c0_88 = arith.constant 0 : index
    %c0_89 = arith.constant 0 : index
    %50 = vector.load %arg9[%c0_87, %c0_88, %c0_89] : memref<8x16x4xf32, #tpu.memory_space<vmem>>, vector<8x16x4xf32>
    tpu.vector_store %arg9[%c0_87, %c0_88, %c0_89], %49 {strides = array<i32>} : memref<8x16x4xf32, #tpu.memory_space<vmem>>, vector<8x16x4xf32>,
    %c2_90 = arith.constant 2 : index
    %c0_91 = arith.constant 0 : index
    %c0_92 = arith.constant 0 : index
    %51 = vector.load %arg8[%c2_90, %c0_91, %c0_92] : memref<10x18x4xf32, #tpu.memory_space<vmem>>, vector<8x16x4xf32>
    %c2_93 = arith.constant 2 : index
    %c0_94 = arith.constant 0 : index
    %c0_95 = arith.constant 0 : index
    %c0_96 = arith.constant 0 : index
    %52 = vector.load %arg5[%c2_93, %c0_94, %c0_95, %c0_96] : memref<3x3x4x4xf32, #tpu.memory_space<vmem>>, vector<1x1x4x4xf32>
    %53 = vector.shape_cast %52 : vector<1x1x4x4xf32> to vector<4x4xf32>
    %cst_97 = arith.constant dense<0.000000e+00> : vector<8x16x4xf32>
    %54 = tpu.matmul %51, %53, %cst_97 {dimension_numbers = #tpu.dot_dimension_numbers<[2], [0], [0, 1], [1], [0, 0, 0, 1, 1, 1], [], []>} : vector<8x16x4xf32>, vector<4x4xf32>, vector<8x16x4xf32> -> vector<8x16x4xf32>
    %c0_98 = arith.constant 0 : index
    %c0_99 = arith.constant 0 : index
    %c0_100 = arith.constant 0 : index
    %55 = vector.load %arg9[%c0_98, %c0_99, %c0_100] : memref<8x16x4xf32, #tpu.memory_space<vmem>>, vector<8x16x4xf32>
    %56 = arith.addf %55, %54 : vector<8x16x4xf32>
    %c0_101 = arith.constant 0 : index
    %c0_102 = arith.constant 0 : index
    %c0_103 = arith.constant 0 : index
    %57 = vector.load %arg9[%c0_101, %c0_102, %c0_103] : memref<8x16x4xf32, #tpu.memory_space<vmem>>, vector<8x16x4xf32>
    tpu.vector_store %arg9[%c0_101, %c0_102, %c0_103], %56 {strides = array<i32>} : memref<8x16x4xf32, #tpu.memory_space<vmem>>, vector<8x16x4xf32>,
    %c2_104 = arith.constant 2 : index
    %c1_105 = arith.constant 1 : index
    %c0_106 = arith.constant 0 : index
    %58 = vector.load %arg8[%c2_104, %c1_105, %c0_106] : memref<10x18x4xf32, #tpu.memory_space<vmem>>, vector<8x16x4xf32>
    %c2_107 = arith.constant 2 : index
    %c1_108 = arith.constant 1 : index
    %c0_109 = arith.constant 0 : index
    %c0_110 = arith.constant 0 : index
    %59 = vector.load %arg5[%c2_107, %c1_108, %c0_109, %c0_110] : memref<3x3x4x4xf32, #tpu.memory_space<vmem>>, vector<1x1x4x4xf32>
    %60 = vector.shape_cast %59 : vector<1x1x4x4xf32> to vector<4x4xf32>
    %cst_111 = arith.constant dense<0.000000e+00> : vector<8x16x4xf32>
    %61 = tpu.matmul %58, %60, %cst_111 {dimension_numbers = #tpu.dot_dimension_numbers<[2], [0], [0, 1], [1], [0, 0, 0, 1, 1, 1], [], []>} : vector<8x16x4xf32>, vector<4x4xf32>, vector<8x16x4xf32> -> vector<8x16x4xf32>
    %c0_112 = arith.constant 0 : index
    %c0_113 = arith.constant 0 : index
    %c0_114 = arith.constant 0 : index
    %62 = vector.load %arg9[%c0_112, %c0_113, %c0_114] : memref<8x16x4xf32, #tpu.memory_space<vmem>>, vector<8x16x4xf32>
    %63 = arith.addf %62, %61 : vector<8x16x4xf32>
    %c0_115 = arith.constant 0 : index
    %c0_116 = arith.constant 0 : index
    %c0_117 = arith.constant 0 : index
    %64 = vector.load %arg9[%c0_115, %c0_116, %c0_117] : memref<8x16x4xf32, #tpu.memory_space<vmem>>, vector<8x16x4xf32>
    tpu.vector_store %arg9[%c0_115, %c0_116, %c0_117], %63 {strides = array<i32>} : memref<8x16x4xf32, #tpu.memory_space<vmem>>, vector<8x16x4xf32>,
    %c2_118 = arith.constant 2 : index
    %c2_119 = arith.constant 2 : index
    %c0_120 = arith.constant 0 : index
    %65 = vector.load %arg8[%c2_118, %c2_119, %c0_120] : memref<10x18x4xf32, #tpu.memory_space<vmem>>, vector<8x16x4xf32>
    %c2_121 = arith.constant 2 : index
    %c2_122 = arith.constant 2 : index
    %c0_123 = arith.constant 0 : index
    %c0_124 = arith.constant 0 : index
    %66 = vector.load %arg5[%c2_121, %c2_122, %c0_123, %c0_124] : memref<3x3x4x4xf32, #tpu.memory_space<vmem>>, vector<1x1x4x4xf32>
    %67 = vector.shape_cast %66 : vector<1x1x4x4xf32> to vector<4x4xf32>
    %cst_125 = arith.constant dense<0.000000e+00> : vector<8x16x4xf32>
    %68 = tpu.matmul %65, %67, %cst_125 {dimension_numbers = #tpu.dot_dimension_numbers<[2], [0], [0, 1], [1], [0, 0, 0, 1, 1, 1], [], []>} : vector<8x16x4xf32>, vector<4x4xf32>, vector<8x16x4xf32> -> vector<8x16x4xf32>
    %c0_126 = arith.constant 0 : index
    %c0_127 = arith.constant 0 : index
    %c0_128 = arith.constant 0 : index
    %69 = vector.load %arg9[%c0_126, %c0_127, %c0_128] : memref<8x16x4xf32, #tpu.memory_space<vmem>>, vector<8x16x4xf32>
    %70 = arith.addf %69, %68 : vector<8x16x4xf32>
    %c0_129 = arith.constant 0 : index
    %c0_130 = arith.constant 0 : index
    %c0_131 = arith.constant 0 : index
    %71 = vector.load %arg9[%c0_129, %c0_130, %c0_131] : memref<8x16x4xf32, #tpu.memory_space<vmem>>, vector<8x16x4xf32>
    tpu.vector_store %arg9[%c0_129, %c0_130, %c0_131], %70 {strides = array<i32>} : memref<8x16x4xf32, #tpu.memory_space<vmem>>, vector<8x16x4xf32>,
    %c0_i32_132 = arith.constant 0 : i32
    %72 = arith.cmpi eq, %arg0, %c0_i32_132 : i32
    %c0_i32_133 = arith.constant 0 : i32
    %73 = arith.cmpi eq, %arg1, %c0_i32_133 : i32
    %74 = arith.andi %72, %73 : i1
    %75 = arith.extui %74 : i1 to i32
    %c0_i32_134 = arith.constant 0 : i32
    %76 = arith.cmpi ne, %75, %c0_i32_134 : i32
    scf.if %76 {
      %cst_148 = arith.constant 0.000000e+00 : f32
      %89 = vector.broadcast %cst_148 : f32 to vector<1x4xf32>
      %c0_149 = arith.constant 0 : index
      %c0_150 = arith.constant 0 : index
      %90 = vector.load %arg6[%c0_149, %c0_150] : memref<1x4xf32, #tpu.memory_space<vmem>>, vector<1x4xf32>
      tpu.vector_store %arg6[%c0_149, %c0_150], %89 {strides = array<i32>} : memref<1x4xf32, #tpu.memory_space<vmem>>, vector<1x4xf32>,
      %cst_151 = arith.constant 0.000000e+00 : f32
      %91 = vector.broadcast %cst_151 : f32 to vector<1x4xf32>
      %c0_152 = arith.constant 0 : index
      %c0_153 = arith.constant 0 : index
      %92 = vector.load %arg7[%c0_152, %c0_153] : memref<1x4xf32, #tpu.memory_space<vmem>>, vector<1x4xf32>
      tpu.vector_store %arg7[%c0_152, %c0_153], %91 {strides = array<i32>} : memref<1x4xf32, #tpu.memory_space<vmem>>, vector<1x4xf32>,
    } else {
    }
    %c0_135 = arith.constant 0 : index
    %c0_136 = arith.constant 0 : index
    %c0_137 = arith.constant 0 : index
    %77 = vector.load %arg9[%c0_135, %c0_136, %c0_137] : memref<8x16x4xf32, #tpu.memory_space<vmem>>, vector<8x16x4xf32>
    %c0_138 = arith.constant 0 : index
    %c0_139 = arith.constant 0 : index
    %78 = vector.load %arg6[%c0_138, %c0_139] : memref<1x4xf32, #tpu.memory_space<vmem>>, vector<1x4xf32>
    %cst_140 = arith.constant dense<0.000000e+00> : vector<4xf32>
    %79 = vector.multi_reduction <add>, %77, %cst_140 [0, 1] : vector<8x16x4xf32> to vector<4xf32>
    %80 = vector.shape_cast %79 : vector<4xf32> to vector<1x4xf32>
    %81 = arith.addf %78, %80 : vector<1x4xf32>
    %c0_141 = arith.constant 0 : index
    %c0_142 = arith.constant 0 : index
    %82 = vector.load %arg6[%c0_141, %c0_142] : memref<1x4xf32, #tpu.memory_space<vmem>>, vector<1x4xf32>
    tpu.vector_store %arg6[%c0_141, %c0_142], %81 {strides = array<i32>} : memref<1x4xf32, #tpu.memory_space<vmem>>, vector<1x4xf32>,
    %c0_143 = arith.constant 0 : index
    %c0_144 = arith.constant 0 : index
    %83 = vector.load %arg7[%c0_143, %c0_144] : memref<1x4xf32, #tpu.memory_space<vmem>>, vector<1x4xf32>
    %84 = arith.mulf %77, %77 : vector<8x16x4xf32>
    %cst_145 = arith.constant dense<0.000000e+00> : vector<4xf32>
    %85 = vector.multi_reduction <add>, %84, %cst_145 [0, 1] : vector<8x16x4xf32> to vector<4xf32>
    %86 = vector.shape_cast %85 : vector<4xf32> to vector<1x4xf32>
    %87 = arith.addf %83, %86 : vector<1x4xf32>
    %c0_146 = arith.constant 0 : index
    %c0_147 = arith.constant 0 : index
    %88 = vector.load %arg7[%c0_146, %c0_147] : memref<1x4xf32, #tpu.memory_space<vmem>>, vector<1x4xf32>
    tpu.vector_store %arg7[%c0_146, %c0_147], %87 {strides = array<i32>} : memref<1x4xf32, #tpu.memory_space<vmem>>, vector<1x4xf32>,
    return
  }
  func.func @transform_0(%arg0: i32, %arg1: i32) -> (i32, i32, i32, i32) {
    %c0_i32 = arith.constant 0 : i32
    %c0_i32_0 = arith.constant 0 : i32
    %c0_i32_1 = arith.constant 0 : i32
    return %arg0, %arg1, %c0_i32, %c0_i32_0 : i32, i32, i32, i32
  }
  func.func @transform_1(%arg0: i32, %arg1: i32) -> (i32, i32, i32, i32) {
    %c8_i32 = arith.constant 8 : i32
    %0 = arith.muli %arg1, %c8_i32 : i32
    %c1_i32 = arith.constant 1 : i32
    %1 = arith.subi %0, %c1_i32 : i32
    %c0_i32 = arith.constant 0 : i32
    %2 = arith.maxsi %1, %c0_i32 : i32
    %c0_i32_0 = arith.constant 0 : i32
    %c0_i32_1 = arith.constant 0 : i32
    %c0_i32_2 = arith.constant 0 : i32
    return %arg0, %2, %c0_i32_0, %c0_i32_1 : i32, i32, i32, i32
  }
  func.func @transform_2(%arg0: i32, %arg1: i32) -> (i32, i32, i32, i32) {
    %c8_i32 = arith.constant 8 : i32
    %0 = arith.muli %arg1, %c8_i32 : i32
    %c8_i32_0 = arith.constant 8 : i32
    %1 = arith.addi %0, %c8_i32_0 : i32
    %c15_i32 = arith.constant 15 : i32
    %2 = arith.minsi %1, %c15_i32 : i32
    %c0_i32 = arith.constant 0 : i32
    %c0_i32_1 = arith.constant 0 : i32
    %c0_i32_2 = arith.constant 0 : i32
    return %arg0, %2, %c0_i32, %c0_i32_1 : i32, i32, i32, i32
  }
  func.func @transform_3(%arg0: i32, %arg1: i32) -> (i32, i32, i32, i32) {
    %c0_i32 = arith.constant 0 : i32
    %c0_i32_0 = arith.constant 0 : i32
    %c0_i32_1 = arith.constant 0 : i32
    %c0_i32_2 = arith.constant 0 : i32
    %c0_i32_3 = arith.constant 0 : i32
    return %c0_i32, %c0_i32_0, %c0_i32_1, %c0_i32_2 : i32, i32, i32, i32
  }
  func.func @transform_4(%arg0: i32, %arg1: i32) -> (i32, i32) {
    %c0_i32 = arith.constant 0 : i32
    %c0_i32_0 = arith.constant 0 : i32
    %c0_i32_1 = arith.constant 0 : i32
    return %c0_i32, %c0_i32_0 : i32, i32
  }
  func.func @transform_5(%arg0: i32, %arg1: i32) -> (i32, i32) {
    %c0_i32 = arith.constant 0 : i32
    %c0_i32_0 = arith.constant 0 : i32
    %c0_i32_1 = arith.constant 0 : i32
    return %c0_i32, %c0_i32_0 : i32, i32
  }
}

</mosaic_0001>

<llo_original>
// kernel: tpu_custom_call.1
$region0: #{tpu_custom_call.1}
  #allocation0 [shape = 'u32[]', space=smem, size = 0x4, offset = 0x4, fixed_abs, tag = 'smem constant byte address 0x4 - core index']
  #allocation1 [shape = 'u32[144,128]{1,0:T(1,128)}', space=vmem, size = 0x12000, scoped, tag = 'internal scratch']
  #allocation2 [shape = 'f32[10,18,4]{2,1,0:T(8,128)}', space=vmem, size = 0x1e000, scoped, tag = 'scratch operand']
  #allocation3 [shape = 'f32[8,16,4]{2,1,0:T(8,128)}', space=vmem, size = 0x10000, scoped, tag = 'scratch operand']
  %s0 = inlined_call_operand.vmem [shape: f32[2,16,16,4], index: 0, kind: input, shape index: {}]
  %s1 = inlined_call_operand.vmem [shape: f32[2,16,16,4], index: 1, kind: input, shape index: {}]
  %s2 = inlined_call_operand.vmem [shape: f32[2,16,16,4], index: 2, kind: input, shape index: {}]
  %s3 = inlined_call_operand.vmem [shape: f32[3,3,4,4], index: 3, kind: input, shape index: {}]
  %s4 = inlined_call_operand.hbm [shape: f32[1,4], index: 4, kind: output, shape index: {0}]
  %s5 = inlined_call_operand.hbm [shape: f32[1,4], index: 5, kind: output, shape index: {1}]
  %6 = xla_tuple %s4, %s5
  %s7 = sld [smem:[#allocation0]]
  $region69: #{tpu_custom_call.1} parent=0
    _
  %s9 = ssub.s32 1, %s7
  %s10 = scalar_select 0, %s9, %s7
  $region1: #{tpu_custom_call.1} parent=0
    #allocation4 [shape = 'u8[512]{0}', space=vmem, size = 0x400, scoped, tag = 'output window, operand 0, single buffered']
    #allocation5 [shape = 's32[2]{0}', space=sflag, size = 0x8, scoped, tag = 'scoped memory for tpu_custom_call.1']
    #allocation6 [shape = 'u8[512]{0}', space=vmem, size = 0x400, scoped, tag = 'output window, operand 1, single buffered']
    #allocation7 [shape = 's32[1]{0}', space=sflag, size = 0x4, scoped, tag = 'scoped memory for tpu_custom_call.1']
    %11 = vsyncpa [#allocation5], 0
    %12 = vsyncpa [#allocation7], 0
    loop: start=0, step=1, limit=6
    $region2: #{tpu_custom_call.1} parent=1 // loop_pre_header
      _
    $region3: #{tpu_custom_call.1} parent=1 // loop_header
      %s14 = sphi 0, %s18
      %p15 = scmp.ge.s32.totalorder %s14, 6
      %s21 = sphi 0, %s33
      %s22 = sphi 0, %s29
      %s23 = sphi 0, %s21
      %s24 = sphi 0, %s22
      %s25 = sphi 0, %s23
      %s26 = sphi 0, %s24
      %s38 = sphi 0, %s40
      %s41 = sphi 0, %s38
      %s42 = sphi 0, %s41
      %s58 = sphi 0, %s42
      %s74 = sphi 0, %s76
      %s77 = sphi 0, %s74
      %s78 = sphi 0, %s77
      %s94 = sphi 0, %s78
      %s110 = sphi 0, %s112
      %s113 = sphi 0, %s110
      %s114 = sphi 0, %s113
      %s130 = sphi 0, %s114
      %s134 = sphi 0, %s134
      %s136 = sphi 0, %s134
      %s137 = sphi 0, %s136
      %s151 = sphi 0, %s137
      %s155 = sphi 0, %s155
      %s157 = sphi 0, %s155
      %s158 = sphi 0, %s157
      %s172 = sphi 0, %s158
      %s176 = sphi 0, %s176
      %s178 = sphi 0, %s176
      %s179 = sphi 0, %s178
      %s193 = sphi 0, %s179
    $region4: #{tpu_custom_call.1} parent=1 // loop_header_branch
      %17 = sbr.rel (%p15) target = $region8
    $region5: #{tpu_custom_call.1} parent=1 // loop_body
      %s19 = ssub.s32 %s14, 1
      %s20 = ssub.s32 %s14, 2
      %s27 = sadd.s32 1, %s22
      %p28 = scmp.ge.s32.totalorder %s27, 2
      %s29 = scalar_select %p28, 0, %s27
      %s30 = sadd.s32 1, %s21
      %s31 = scalar_select %p28, %s30, %s21
      %p32 = scmp.ge.s32.totalorder %s31, 2
      %s33 = scalar_select %p32, 0, %s31
      %s34 = ssub.s32 %s21, %s33
      %s35 = ssub.s32 %s22, %s29
      %s36 = sor.u32 %s34, %s35
      %p37 = scmp.eq.s32.totalorder %s36, 0
      %s39 = sadd.s32 %s38, 1
      %s40 = scalar_select %p37, %s38, %s39
      %p43 = pneg %p37
      %p44 = scmp.eq.s32.totalorder %s14, 3
      %p45 = por %p43, %p44
      %p46 = scmp.ne.s32.totalorder %s38, %s41
      %p47 = scmp.eq.s32.totalorder %s14, 0
      %p48 = por %p46, %p47
      %p49 = scmp.ne.s32.totalorder %s38, %s41
      %p50 = scmp.eq.s32.totalorder %s19, 3
      %p51 = por %p49, %p50
      %p52 = scmp.ne.s32.totalorder %s41, %s42
      %p53 = scmp.eq.s32.totalorder %s19, 0
      %p54 = por %p52, %p53
      %p55 = scmp.ne.s32.totalorder %s41, %s42
      %p56 = scmp.eq.s32.totalorder %s20, 3
      %p57 = por %p55, %p56
      %p59 = scmp.ne.s32.totalorder %s42, %s58
      %p60 = scmp.eq.s32.totalorder %s20, 0
      %p61 = por %p59, %p60
      %s62 = smul.u32 %s22, 8
      %s63 = ssub.s32 %s62, 1
      %p64 = scmp.gt.s32.totalorder %s63, 0
      %s65 = scalar_select %p64, %s63, 0
      %s66 = smul.u32 %s29, 8
      %s67 = ssub.s32 %s66, 1
      %p68 = scmp.gt.s32.totalorder %s67, 0
      %s69 = scalar_select %p68, %s67, 0
      %s70 = ssub.s32 %s21, %s33
      %s71 = ssub.s32 %s65, %s69
      %s72 = sor.u32 %s70, %s71
      %p73 = scmp.eq.s32.totalorder %s72, 0
      %s75 = sadd.s32 %s74, 1
      %s76 = scalar_select %p73, %s74, %s75
      %p79 = pneg %p73
      %p80 = scmp.eq.s32.totalorder %s14, 3
      %p81 = por %p79, %p80
      %p82 = scmp.ne.s32.totalorder %s74, %s77
      %p83 = scmp.eq.s32.totalorder %s14, 0
      %p84 = por %p82, %p83
      %p85 = scmp.ne.s32.totalorder %s74, %s77
      %p86 = scmp.eq.s32.totalorder %s19, 3
      %p87 = por %p85, %p86
      %p88 = scmp.ne.s32.totalorder %s77, %s78
      %p89 = scmp.eq.s32.totalorder %s19, 0
      %p90 = por %p88, %p89
      %p91 = scmp.ne.s32.totalorder %s77, %s78
      %p92 = scmp.eq.s32.totalorder %s20, 3
      %p93 = por %p91, %p92
      %p95 = scmp.ne.s32.totalorder %s78, %s94
      %p96 = scmp.eq.s32.totalorder %s20, 0
      %p97 = por %p95, %p96
      %s98 = smul.u32 %s22, 8
      %s99 = sadd.s32 %s98, 8
      %p100 = scmp.lt.s32.totalorder %s99, 15
      %s101 = scalar_select %p100, %s99, 15
      %s102 = smul.u32 %s29, 8
      %s103 = sadd.s32 %s102, 8
      %p104 = scmp.lt.s32.totalorder %s103, 15
      %s105 = scalar_select %p104, %s103, 15
      %s106 = ssub.s32 %s21, %s33
      %s107 = ssub.s32 %s101, %s105
      %s108 = sor.u32 %s106, %s107
      %p109 = scmp.eq.s32.totalorder %s108, 0
      %s111 = sadd.s32 %s110, 1
      %s112 = scalar_select %p109, %s110, %s111
      %p115 = pneg %p109
      %p116 = scmp.eq.s32.totalorder %s14, 3
      %p117 = por %p115, %p116
      %p118 = scmp.ne.s32.totalorder %s110, %s113
      %p119 = scmp.eq.s32.totalorder %s14, 0
      %p120 = por %p118, %p119
      %p121 = scmp.ne.s32.totalorder %s110, %s113
      %p122 = scmp.eq.s32.totalorder %s19, 3
      %p123 = por %p121, %p122
      %p124 = scmp.ne.s32.totalorder %s113, %s114
      %p125 = scmp.eq.s32.totalorder %s19, 0
      %p126 = por %p124, %p125
      %p127 = scmp.ne.s32.totalorder %s113, %s114
      %p128 = scmp.eq.s32.totalorder %s20, 3
      %p129 = por %p127, %p128
      %p131 = scmp.ne.s32.totalorder %s114, %s130
      %p132 = scmp.eq.s32.totalorder %s20, 0
      %p133 = por %p131, %p132
      %s135 = sadd.s32 %s134, 1
      %p138 = scmp.eq.s32.totalorder %s14, 3
      %p139 = scmp.ne.s32.totalorder %s134, %s136
      %p140 = scmp.eq.s32.totalorder %s14, 0
      %p141 = por %p139, %p140
      %p142 = scmp.ne.s32.totalorder %s134, %s136
      %p143 = scmp.eq.s32.totalorder %s19, 3
      %p144 = por %p142, %p143
      %p145 = scmp.ne.s32.totalorder %s136, %s137
      %p146 = scmp.eq.s32.totalorder %s19, 0
      %p147 = por %p145, %p146
      %p148 = scmp.ne.s32.totalorder %s136, %s137
      %p149 = scmp.eq.s32.totalorder %s20, 3
      %p150 = por %p148, %p149
      %p152 = scmp.ne.s32.totalorder %s137, %s151
      %p153 = scmp.eq.s32.totalorder %s20, 0
      %p154 = por %p152, %p153
      %s156 = sadd.s32 %s155, 1
      %p159 = scmp.eq.s32.totalorder %s14, 3
      %p160 = scmp.ne.s32.totalorder %s155, %s157
      %p161 = scmp.eq.s32.totalorder %s14, 0
      %p162 = por %p160, %p161
      %p163 = scmp.ne.s32.totalorder %s155, %s157
      %p164 = scmp.eq.s32.totalorder %s19, 3
      %p165 = por %p163, %p164
      %p166 = scmp.ne.s32.totalorder %s157, %s158
      %p167 = scmp.eq.s32.totalorder %s19, 0
      %p168 = por %p166, %p167
      %p169 = scmp.ne.s32.totalorder %s157, %s158
      %p170 = scmp.eq.s32.totalorder %s20, 3
      %p171 = por %p169, %p170
      %p173 = scmp.ne.s32.totalorder %s158, %s172
      %p174 = scmp.eq.s32.totalorder %s20, 0
      %p175 = por %p173, %p174
      %s177 = sadd.s32 %s176, 1
      %p180 = scmp.eq.s32.totalorder %s14, 3
      %p181 = scmp.ne.s32.totalorder %s176, %s178
      %p182 = scmp.eq.s32.totalorder %s14, 0
      %p183 = por %p181, %p182
      %p184 = scmp.ne.s32.totalorder %s176, %s178
      %p185 = scmp.eq.s32.totalorder %s19, 3
      %p186 = por %p184, %p185
      %p187 = scmp.ne.s32.totalorder %s178, %s179
      %p188 = scmp.eq.s32.totalorder %s19, 0
      %p189 = por %p187, %p188
      %p190 = scmp.ne.s32.totalorder %s178, %s179
      %p191 = scmp.eq.s32.totalorder %s20, 3
      %p192 = por %p190, %p191
      %p194 = scmp.ne.s32.totalorder %s179, %s193
      %p195 = scmp.eq.s32.totalorder %s20, 0
      %p196 = por %p194, %p195
      %p197 = scmp.le.s32.totalorder 1, %s14
      %p198 = scmp.lt.s32.totalorder %s14, 5
      %p199 = pnand %p197, %p198
      %p200 = pneg %p199
      // Predicated region
      $region9: #{tpu_custom_call.1} parent=5 // pred_check
        _
      $region10: #{tpu_custom_call.1} parent=5 // pred_check_branch
        %202 = sbr.rel (%p199) target = $region12
      $region11: #{tpu_custom_call.1} parent=5 // pred_region
        %s203 = ssub.s32 %s14, 1
        // Predicated region
        $region13: #{tpu_custom_call.1} parent=11 // pred_check
          %p204 = pneg %p147
        $region14: #{tpu_custom_call.1} parent=11 // pred_check_branch
          %206 = sbr.rel (%p204) target = $region16
        $region15: #{tpu_custom_call.1} parent=11 // pred_region
          _
        $region16: #{tpu_custom_call.1} parent=11 // pred_fallthru
          _
      $region12: #{tpu_custom_call.1} parent=5 // pred_fallthru
        _
      %p207 = scmp.lt.s32.totalorder %s14, 4
      // Predicated region
      $region17: #{tpu_custom_call.1} parent=5 // pred_check
        %p208 = pneg %p207
      $region18: #{tpu_custom_call.1} parent=5 // pred_check_branch
        %210 = sbr.rel (%p208) target = $region20
      $region19: #{tpu_custom_call.1} parent=5 // pred_region
        // Predicated region
        $region21: #{tpu_custom_call.1} parent=19 // pred_check
          %p211 = pneg %p48
        $region22: #{tpu_custom_call.1} parent=19 // pred_check_branch
          %213 = sbr.rel (%p211) target = $region24
        $region23: #{tpu_custom_call.1} parent=19 // pred_region
          %s214 = smul.u32 8, %s22
          %p215 = scmp.lt.s32.totalorder %s21, 1
          %s216 = scalar_select %p215, %s21, 1
          %p217 = scmp.lt.s32.totalorder %s214, 15
          %s218 = scalar_select %p217, %s214, 15
          %s219 = smul.addr %s218, 2
          %s220 = smul.addr %s216, 32
          %s221 = sadd.s32 %s219, %s220
          %s222 = smul.addr %s221, 8
          %s223 = scalar_lea.vmem %s0, %s222
          %s224 = smul.u32 8, %s22
        $region24: #{tpu_custom_call.1} parent=19 // pred_fallthru
          _
        // Predicated region
        $region25: #{tpu_custom_call.1} parent=19 // pred_check
          %p225 = pneg %p84
        $region26: #{tpu_custom_call.1} parent=19 // pred_check_branch
          %227 = sbr.rel (%p225) target = $region28
        $region27: #{tpu_custom_call.1} parent=19 // pred_region
          %s228 = smul.u32 %s22, 8
          %s229 = ssub.s32 %s228, 1
          %p230 = scmp.gt.s32.totalorder %s229, 0
          %s231 = scalar_select %p230, %s229, 0
          %p232 = scmp.lt.s32.totalorder %s21, 1
          %s233 = scalar_select %p232, %s21, 1
          %p234 = scmp.lt.s32.totalorder %s231, 15
          %s235 = scalar_select %p234, %s231, 15
          %s236 = smul.addr %s235, 2
          %s237 = smul.addr %s233, 32
          %s238 = sadd.s32 %s236, %s237
          %s239 = smul.addr %s238, 8
          %s240 = scalar_lea.vmem %s1, %s239
          %s241 = smul.u32 %s22, 8
          %s242 = ssub.s32 %s241, 1
          %p243 = scmp.gt.s32.totalorder %s242, 0
          %s244 = scalar_select %p243, %s242, 0
        $region28: #{tpu_custom_call.1} parent=19 // pred_fallthru
          _
        // Predicated region
        $region29: #{tpu_custom_call.1} parent=19 // pred_check
          %p245 = pneg %p120
        $region30: #{tpu_custom_call.1} parent=19 // pred_check_branch
          %247 = sbr.rel (%p245) target = $region32
        $region31: #{tpu_custom_call.1} parent=19 // pred_region
          %s248 = smul.u32 %s22, 8
          %s249 = sadd.s32 %s248, 8
          %p250 = scmp.lt.s32.totalorder %s249, 15
          %s251 = scalar_select %p250, %s249, 15
          %p252 = scmp.lt.s32.totalorder %s21, 1
          %s253 = scalar_select %p252, %s21, 1
          %p254 = scmp.lt.s32.totalorder %s251, 15
          %s255 = scalar_select %p254, %s251, 15
          %s256 = smul.addr %s255, 2
          %s257 = smul.addr %s253, 32
          %s258 = sadd.s32 %s256, %s257
          %s259 = smul.addr %s258, 8
          %s260 = scalar_lea.vmem %s2, %s259
          %s261 = smul.u32 %s22, 8
          %s262 = sadd.s32 %s261, 8
          %p263 = scmp.lt.s32.totalorder %s262, 15
          %s264 = scalar_select %p263, %s262, 15
        $region32: #{tpu_custom_call.1} parent=19 // pred_fallthru
          _
      $region20: #{tpu_custom_call.1} parent=5 // pred_fallthru
        _
      %p265 = scmp.le.s32.totalorder 1, %s14
      %p266 = scmp.lt.s32.totalorder %s14, 5
      %p267 = pnand %p265, %p266
      %p268 = pneg %p267
      // Predicated region
      $region33: #{tpu_custom_call.1} parent=5 // pred_check
        _
      $region34: #{tpu_custom_call.1} parent=5 // pred_check_branch
        %270 = sbr.rel (%p267) target = $region36
      $region35: #{tpu_custom_call.1} parent=5 // pred_region
        %s271 = ssub.s32 %s14, 1
        %s272 = smul.u32 8, %s24
        %p273 = scmp.lt.s32.totalorder %s23, 1
        %s274 = scalar_select %p273, %s23, 1
        %p275 = scmp.lt.s32.totalorder %s272, 15
        %s276 = scalar_select %p275, %s272, 15
        %s277 = smul.addr %s276, 2
        %s278 = smul.addr %s274, 32
        %s279 = sadd.s32 %s277, %s278
        %s280 = smul.addr %s279, 8
        %s281 = scalar_lea.vmem %s0, %s280
        %p282 = pneg %p54
        %p283 = pneg %p51
        %s284 = smul.u32 %s24, 8
        %s285 = ssub.s32 %s284, 1
        %p286 = scmp.gt.s32.totalorder %s285, 0
        %s287 = scalar_select %p286, %s285, 0
        %p288 = scmp.lt.s32.totalorder %s23, 1
        %s289 = scalar_select %p288, %s23, 1
        %p290 = scmp.lt.s32.totalorder %s287, 15
        %s291 = scalar_select %p290, %s287, 15
        %s292 = smul.addr %s291, 2
        %s293 = smul.addr %s289, 32
        %s294 = sadd.s32 %s292, %s293
        %s295 = smul.addr %s294, 8
        %s296 = scalar_lea.vmem %s1, %s295
        %p297 = pneg %p90
        %p298 = pneg %p87
        %s299 = smul.u32 %s24, 8
        %s300 = sadd.s32 %s299, 8
        %p301 = scmp.lt.s32.totalorder %s300, 15
        %s302 = scalar_select %p301, %s300, 15
        %p303 = scmp.lt.s32.totalorder %s23, 1
        %s304 = scalar_select %p303, %s23, 1
        %p305 = scmp.lt.s32.totalorder %s302, 15
        %s306 = scalar_select %p305, %s302, 15
        %s307 = smul.addr %s306, 2
        %s308 = smul.addr %s304, 32
        %s309 = sadd.s32 %s307, %s308
        %s310 = smul.addr %s309, 8
        %s311 = scalar_lea.vmem %s2, %s310
        %p312 = pneg %p126
        %p313 = pneg %p123
        %p314 = pneg %p147
        %p315 = pneg %p144
        %p316 = pneg %p168
        %p317 = pneg %p165
        %p318 = pneg %p189
        %p319 = pneg %p186
        %s320 = smul.u32 8, %s24
        %p321 = scmp.lt.s32.totalorder %s23, 1
        %s322 = scalar_select %p321, %s23, 1
        %p323 = scmp.lt.s32.totalorder %s320, 15
        %s324 = scalar_select %p323, %s320, 15
        %s325 = smul.addr %s324, 2
        %s326 = smul.addr %s322, 32
        %s327 = sadd.s32 %s325, %s326
        %s328 = smul.addr %s327, 8
        %s329 = scalar_lea.vmem %s0, %s328
        %s330 = smul.u32 8, %s24
        %s331 = smul.u32 %s24, 8
        %s332 = ssub.s32 %s331, 1
        %p333 = scmp.gt.s32.totalorder %s332, 0
        %s334 = scalar_select %p333, %s332, 0
        %p335 = scmp.lt.s32.totalorder %s23, 1
        %s336 = scalar_select %p335, %s23, 1
        %p337 = scmp.lt.s32.totalorder %s334, 15
        %s338 = scalar_select %p337, %s334, 15
        %s339 = smul.addr %s338, 2
        %s340 = smul.addr %s336, 32
        %s341 = sadd.s32 %s339, %s340
        %s342 = smul.addr %s341, 8
        %s343 = scalar_lea.vmem %s1, %s342
        %s344 = smul.u32 %s24, 8
        %s345 = ssub.s32 %s344, 1
        %p346 = scmp.gt.s32.totalorder %s345, 0
        %s347 = scalar_select %p346, %s345, 0
        %s348 = smul.u32 %s24, 8
        %s349 = sadd.s32 %s348, 8
        %p350 = scmp.lt.s32.totalorder %s349, 15
        %s351 = scalar_select %p350, %s349, 15
        %p352 = scmp.lt.s32.totalorder %s23, 1
        %s353 = scalar_select %p352, %s23, 1
        %p354 = scmp.lt.s32.totalorder %s351, 15
        %s355 = scalar_select %p354, %s351, 15
        %s356 = smul.addr %s355, 2
        %s357 = smul.addr %s353, 32
        %s358 = sadd.s32 %s356, %s357
        %s359 = smul.addr %s358, 8
        %s360 = scalar_lea.vmem %s2, %s359
        %s361 = smul.u32 %s24, 8
        %s362 = sadd.s32 %s361, 8
        %p363 = scmp.lt.s32.totalorder %s362, 15
        %s364 = scalar_select %p363, %s362, 15
        %vm365 = vcmask 31744
        %366 = vst.msk [vmem:[#allocation2] sm:$0xff] %vm365, 0.0
        %367 = vst.msk [vmem:[#allocation2 + $0x8] sm:$0xff] %vm365, 0.0
        %vm368 = vcmask 25600
        %369 = vst.msk [vmem:[#allocation2 + $0x10] sm:$0x3] %vm368, 0.0
        %370 = vst.msk [vmem:[#allocation2 + $0x18] sm:$0xff] %vm365, 0.0
        %371 = vst.msk [vmem:[#allocation2 + $0x20] sm:$0xff] %vm365, 0.0
        %372 = vst.msk [vmem:[#allocation2 + $0x28] sm:$0x3] %vm368, 0.0
        %373 = vst.msk [vmem:[#allocation2 + $0x30] sm:$0xff] %vm365, 0.0
        %374 = vst.msk [vmem:[#allocation2 + $0x38] sm:$0xff] %vm365, 0.0
        %375 = vst.msk [vmem:[#allocation2 + $0x40] sm:$0x3] %vm368, 0.0
        %376 = vst.msk [vmem:[#allocation2 + $0x48] sm:$0xff] %vm365, 0.0
        %377 = vst.msk [vmem:[#allocation2 + $0x50] sm:$0xff] %vm365, 0.0
        %378 = vst.msk [vmem:[#allocation2 + $0x58] sm:$0x3] %vm368, 0.0
        %379 = vst.msk [vmem:[#allocation2 + $0x60] sm:$0xff] %vm365, 0.0
        %380 = vst.msk [vmem:[#allocation2 + $0x68] sm:$0xff] %vm365, 0.0
        %381 = vst.msk [vmem:[#allocation2 + $0x70] sm:$0x3] %vm368, 0.0
        %382 = vst.msk [vmem:[#allocation2 + $0x78] sm:$0xff] %vm365, 0.0
        %383 = vst.msk [vmem:[#allocation2 + $0x80] sm:$0xff] %vm365, 0.0
        %384 = vst.msk [vmem:[#allocation2 + $0x88] sm:$0x3] %vm368, 0.0
        %385 = vst.msk [vmem:[#allocation2 + $0x90] sm:$0xff] %vm365, 0.0
        %386 = vst.msk [vmem:[#allocation2 + $0x98] sm:$0xff] %vm365, 0.0
        %387 = vst.msk [vmem:[#allocation2 + $0xa0] sm:$0x3] %vm368, 0.0
        %388 = vst.msk [vmem:[#allocation2 + $0xa8] sm:$0xff] %vm365, 0.0
        %389 = vst.msk [vmem:[#allocation2 + $0xb0] sm:$0xff] %vm365, 0.0
        %390 = vst.msk [vmem:[#allocation2 + $0xb8] sm:$0x3] %vm368, 0.0
        %391 = vst.msk [vmem:[#allocation2 + $0xc0] sm:$0xff] %vm365, 0.0
        %392 = vst.msk [vmem:[#allocation2 + $0xc8] sm:$0xff] %vm365, 0.0
        %393 = vst.msk [vmem:[#allocation2 + $0xd0] sm:$0x3] %vm368, 0.0
        %394 = vst.msk [vmem:[#allocation2 + $0xd8] sm:$0xff] %vm365, 0.0
        %395 = vst.msk [vmem:[#allocation2 + $0xe0] sm:$0xff] %vm365, 0.0
        %396 = vst.msk [vmem:[#allocation2 + $0xe8] sm:$0x3] %vm368, 0.0
        %v397 = vld [vmem:[%s329] sm:$0xff]
        %v398 = vld [vmem:[%s329 + $0x8] sm:$0xff]
        %v399 = vld [vmem:[%s329 + $0x10] sm:$0xff]
        %v400 = vld [vmem:[%s329 + $0x18] sm:$0xff]
        %v401 = vld [vmem:[%s329 + $0x20] sm:$0xff]
        %v402 = vld [vmem:[%s329 + $0x28] sm:$0xff]
        %v403 = vld [vmem:[%s329 + $0x30] sm:$0xff]
        %v404 = vld [vmem:[%s329 + $0x38] sm:$0xff]
        %v405 = vld [vmem:[%s329 + $0x40] sm:$0xff]
        %v406 = vld [vmem:[%s329 + $0x48] sm:$0xff]
        %v407 = vld [vmem:[%s329 + $0x50] sm:$0xff]
        %v408 = vld [vmem:[%s329 + $0x58] sm:$0xff]
        %v409 = vld [vmem:[%s329 + $0x60] sm:$0xff]
        %v410 = vld [vmem:[%s329 + $0x68] sm:$0xff]
        %v411 = vld [vmem:[%s329 + $0x70] sm:$0xff]
        %v412 = vld [vmem:[%s329 + $0x78] sm:$0xff]
        %s413 = scalar_lea.vmem [#allocation2], 24
        %414 = vst.msk [vmem:[%s413 + $0x1] sm:$0xff] %vm365, %v397
        %415 = vst.msk [vmem:[%s413 + $0x9] sm:$0xff] %vm365, %v398
        %416 = vst.msk [vmem:[%s413 + $0x19] sm:$0xff] %vm365, %v399
        %417 = vst.msk [vmem:[%s413 + $0x21] sm:$0xff] %vm365, %v400
        %418 = vst.msk [vmem:[%s413 + $0x31] sm:$0xff] %vm365, %v401
        %419 = vst.msk [vmem:[%s413 + $0x39] sm:$0xff] %vm365, %v402
        %420 = vst.msk [vmem:[%s413 + $0x49] sm:$0xff] %vm365, %v403
        %421 = vst.msk [vmem:[%s413 + $0x51] sm:$0xff] %vm365, %v404
        %422 = vst.msk [vmem:[%s413 + $0x61] sm:$0xff] %vm365, %v405
        %423 = vst.msk [vmem:[%s413 + $0x69] sm:$0xff] %vm365, %v406
        %424 = vst.msk [vmem:[%s413 + $0x79] sm:$0xff] %vm365, %v407
        %425 = vst.msk [vmem:[%s413 + $0x81] sm:$0xff] %vm365, %v408
        %426 = vst.msk [vmem:[%s413 + $0x91] sm:$0xff] %vm365, %v409
        %427 = vst.msk [vmem:[%s413 + $0x99] sm:$0xff] %vm365, %v410
        %428 = vst.msk [vmem:[%s413 + $0xa9] sm:$0xff] %vm365, %v411
        %429 = vst.msk [vmem:[%s413 + $0xb1] sm:$0xff] %vm365, %v412
        %p430 = scmp.gt.s32.totalorder %s24, 0
        // Predicated region
        $region37: #{tpu_custom_call.1} parent=35 // pred_check
          %p431 = pneg %p430
        $region38: #{tpu_custom_call.1} parent=35 // pred_check_branch
          %433 = sbr.rel (%p431) target = $region40
        $region39: #{tpu_custom_call.1} parent=35 // pred_region
          %v434 = vld [vmem:[%s343] sm:$0xff]
          %v435 = vld [vmem:[%s343 + $0x8] sm:$0xff]
          %436 = vst.msk [vmem:[#allocation2 + $0x1] sm:$0xff] %vm365, %v434
          %437 = vst.msk [vmem:[#allocation2 + $0x9] sm:$0xff] %vm365, %v435
        $region40: #{tpu_custom_call.1} parent=35 // pred_fallthru
          _
        %p438 = scmp.lt.s32.totalorder %s24, 1
        // Predicated region
        $region41: #{tpu_custom_call.1} parent=35 // pred_check
          %p439 = pneg %p438
        $region42: #{tpu_custom_call.1} parent=35 // pred_check_branch
          %441 = sbr.rel (%p439) target = $region44
        $region43: #{tpu_custom_call.1} parent=35 // pred_region
          %v442 = vld [vmem:[%s360] sm:$0xff]
          %v443 = vld [vmem:[%s360 + $0x8] sm:$0xff]
          %s444 = scalar_lea.vmem [#allocation2], 216
          %445 = vst.msk [vmem:[%s444 + $0x1] sm:$0xff] %vm365, %v442
          %446 = vst.msk [vmem:[%s444 + $0x9] sm:$0xff] %vm365, %v443
        $region44: #{tpu_custom_call.1} parent=35 // pred_fallthru
          _
        %v447 = vld [vmem:[#allocation2] sm:$0xff]
        %v448 = vld [vmem:[#allocation2 + $0x8] sm:$0xff]
        %v449 = vld [vmem:[#allocation2 + $0x18] sm:$0xff]
        %v450 = vld [vmem:[#allocation2 + $0x20] sm:$0xff]
        %v451 = vld [vmem:[#allocation2 + $0x30] sm:$0xff]
        %v452 = vld [vmem:[#allocation2 + $0x38] sm:$0xff]
        %v453 = vld [vmem:[#allocation2 + $0x48] sm:$0xff]
        %v454 = vld [vmem:[#allocation2 + $0x50] sm:$0xff]
        %v455 = vld [vmem:[#allocation2 + $0x60] sm:$0xff]
        %v456 = vld [vmem:[#allocation2 + $0x68] sm:$0xff]
        %v457 = vld [vmem:[#allocation2 + $0x78] sm:$0xff]
        %v458 = vld [vmem:[#allocation2 + $0x80] sm:$0xff]
        %v459 = vld [vmem:[#allocation2 + $0x90] sm:$0xff]
        %v460 = vld [vmem:[#allocation2 + $0x98] sm:$0xff]
        %v461 = vld [vmem:[#allocation2 + $0xa8] sm:$0xff]
        %v462 = vld [vmem:[#allocation2 + $0xb0] sm:$0xff]
        %v463 = vld [vmem:[%s3] sm:$0xf]
        %v465 = vsel %vm365, %v447, 0
        %v468 = vsel %vm365, %v448, 0
        %v471 = vsel %vm365, %v449, 0
        %v474 = vsel %vm365, %v450, 0
        %v477 = vsel %vm365, %v451, 0
        %v480 = vsel %vm365, %v452, 0
        %v483 = vsel %vm365, %v453, 0
        %v486 = vsel %vm365, %v454, 0
        %v489 = vsel %vm365, %v455, 0
        %v492 = vsel %vm365, %v456, 0
        %v495 = vsel %vm365, %v457, 0
        %v498 = vsel %vm365, %v458, 0
        %v501 = vsel %vm365, %v459, 0
        %v504 = vsel %vm365, %v460, 0
        %v507 = vsel %vm365, %v461, 0
        %v510 = vsel %vm365, %v462, 0
        %vm512 = vcmask 1043456
        %v514 = vsel %vm512, %v463, 0
        %516 = vmatprep.subr.mxu0 0.0
        %517 = vmatpush1.msra.mxu0 %v514
        %518 = vmatprep.subr.mxu0 0.0
        %519 = vmatpush1.msra.mxu0 0.0
        %520 = vmatprep.subr.mxu0 0.0
        %521 = vmatpush1.msra.mxu0 0.0
        %522 = vmatprep.subr.mxu0 0.0
        %523 = vmatpush1.msra.mxu0 0.0
        %524 = vmatprep.subr.mxu0 0.0
        %525 = vmatpush1.msra.mxu0 0.0
        %526 = vmatprep.subr.mxu0 0.0
        %527 = vmatpush1.msra.mxu0 0.0
        %528 = vmatprep.subr.mxu0 0.0
        %529 = vmatpush1.msra.mxu0 0.0
        %530 = vmatprep.subr.mxu0 0.0
        %531 = vmatpush1.msra.mxu0 0.0
        %532 = vmatprep.subr.mxu0 0.0
        %533 = vmatpush1.msra.mxu0 0.0
        %534 = vmatprep.subr.mxu0 0.0
        %535 = vmatpush1.msra.mxu0 0.0
        %536 = vmatprep.subr.mxu0 0.0
        %537 = vmatpush1.msra.mxu0 0.0
        %538 = vmatprep.subr.mxu0 0.0
        %539 = vmatpush1.msra.mxu0 0.0
        %540 = vmatprep.subr.mxu0 0.0
        %541 = vmatpush1.msra.mxu0 0.0
        %542 = vmatprep.subr.mxu0 0.0
        %543 = vmatpush1.msra.mxu0 0.0
        %544 = vmatprep.subr.mxu0 0.0
        %545 = vmatpush1.msra.mxu0 0.0
        %546 = vmatprep.subr.mxu0 0.0
        %547 = vmatpush1.msra.mxu0 0.0
        %548 = vmatprep.subr.mxu0 0.0
        %549 = vmatpush1.msra.mxu0 0.0
        %550 = vmatprep.subr.mxu0 0.0
        %551 = vmatpush1.msra.mxu0 0.0
        %552 = vmatprep.subr.mxu0 0.0
        %553 = vmatpush1.msra.mxu0 0.0
        %554 = vmatprep.subr.mxu0 0.0
        %555 = vmatpush1.msra.mxu0 0.0
        %556 = vmatprep.subr.mxu0 0.0
        %557 = vmatpush1.msra.mxu0 0.0
        %558 = vmatprep.subr.mxu0 0.0
        %559 = vmatpush1.msra.mxu0 0.0
        %560 = vmatprep.subr.mxu0 0.0
        %561 = vmatpush1.msra.mxu0 0.0
        %562 = vmatprep.subr.mxu0 0.0
        %563 = vmatpush1.msra.mxu0 0.0
        %564 = vmatprep.subr.mxu0 0.0
        %565 = vmatpush1.msra.mxu0 0.0
        %566 = vmatprep.subr.mxu0 0.0
        %567 = vmatpush1.msra.mxu0 0.0
        %568 = vmatprep.subr.mxu0 0.0
        %569 = vmatpush1.msra.mxu0 0.0
        %570 = vmatprep.subr.mxu0 0.0
        %571 = vmatpush1.msra.mxu0 0.0
        %572 = vmatprep.subr.mxu0 0.0
        %573 = vmatpush1.msra.mxu0 0.0
        %574 = vmatprep.subr.mxu0 0.0
        %575 = vmatpush1.msra.mxu0 0.0
        %576 = vmatprep.subr.mxu0 0.0
        %577 = vmatpush1.msra.mxu0 0.0
        %578 = vmatprep.subr.mxu0 0.0
        %579 = vmatpush1.msra.mxu0 0.0
        %580 = vmatprep.mubr.f32.mxu0 0.0
        %581 = vmatmul.mubr.f32.gmra.mrb[0].mxu0 %v465
        %v582 = vpop.f32.mrb[0].mxu0
        %v583 = vadd.f32 0.0, %v582
        %v584 = vpop.f32.mrb[0].mxu0
        %585 = vmatprep.mubr.f32.mxu0 0.0
        %586 = vmatmul.mubr.f32.gmra.mrb[0].mxu0 %v468
        %v587 = vpop.f32.mrb[0].mxu0
        %v588 = vadd.f32 0.0, %v587
        %v589 = vpop.f32.mrb[0].mxu0
        %590 = vmatprep.mubr.f32.mxu0 0.0
        %591 = vmatmul.mubr.f32.gmra.mrb[0].mxu0 %v471
        %v592 = vpop.f32.mrb[0].mxu0
        %v593 = vadd.f32 0.0, %v592
        %v594 = vpop.f32.mrb[0].mxu0
        %595 = vmatprep.mubr.f32.mxu0 0.0
        %596 = vmatmul.mubr.f32.gmra.mrb[0].mxu0 %v474
        %v597 = vpop.f32.mrb[0].mxu0
        %v598 = vadd.f32 0.0, %v597
        %v599 = vpop.f32.mrb[0].mxu0
        %600 = vmatprep.mubr.f32.mxu0 0.0
        %601 = vmatmul.mubr.f32.gmra.mrb[0].mxu0 %v477
        %v602 = vpop.f32.mrb[0].mxu0
        %v603 = vadd.f32 0.0, %v602
        %v604 = vpop.f32.mrb[0].mxu0
        %605 = vmatprep.mubr.f32.mxu0 0.0
        %606 = vmatmul.mubr.f32.gmra.mrb[0].mxu0 %v480
        %v607 = vpop.f32.mrb[0].mxu0
        %v608 = vadd.f32 0.0, %v607
        %v609 = vpop.f32.mrb[0].mxu0
        %610 = vmatprep.mubr.f32.mxu0 0.0
        %611 = vmatmul.mubr.f32.gmra.mrb[0].mxu0 %v483
        %v612 = vpop.f32.mrb[0].mxu0
        %v613 = vadd.f32 0.0, %v612
        %v614 = vpop.f32.mrb[0].mxu0
        %615 = vmatprep.mubr.f32.mxu0 0.0
        %616 = vmatmul.mubr.f32.gmra.mrb[0].mxu0 %v486
        %v617 = vpop.f32.mrb[0].mxu0
        %v618 = vadd.f32 0.0, %v617
        %v619 = vpop.f32.mrb[0].mxu0
        %620 = vmatprep.mubr.f32.mxu0 0.0
        %621 = vmatmul.mubr.f32.gmra.mrb[0].mxu0 %v489
        %v622 = vpop.f32.mrb[0].mxu0
        %v623 = vadd.f32 0.0, %v622
        %v624 = vpop.f32.mrb[0].mxu0
        %625 = vmatprep.mubr.f32.mxu0 0.0
        %626 = vmatmul.mubr.f32.gmra.mrb[0].mxu0 %v492
        %v627 = vpop.f32.mrb[0].mxu0
        %v628 = vadd.f32 0.0, %v627
        %v629 = vpop.f32.mrb[0].mxu0
        %630 = vmatprep.mubr.f32.mxu0 0.0
        %631 = vmatmul.mubr.f32.gmra.mrb[0].mxu0 %v495
        %v632 = vpop.f32.mrb[0].mxu0
        %v633 = vadd.f32 0.0, %v632
        %v634 = vpop.f32.mrb[0].mxu0
        %635 = vmatprep.mubr.f32.mxu0 0.0
        %636 = vmatmul.mubr.f32.gmra.mrb[0].mxu0 %v498
        %v637 = vpop.f32.mrb[0].mxu0
        %v638 = vadd.f32 0.0, %v637
        %v639 = vpop.f32.mrb[0].mxu0
        %640 = vmatprep.mubr.f32.mxu0 0.0
        %641 = vmatmul.mubr.f32.gmra.mrb[0].mxu0 %v501
        %v642 = vpop.f32.mrb[0].mxu0
        %v643 = vadd.f32 0.0, %v642
        %v644 = vpop.f32.mrb[0].mxu0
        %645 = vmatprep.mubr.f32.mxu0 0.0
        %646 = vmatmul.mubr.f32.gmra.mrb[0].mxu0 %v504
        %v647 = vpop.f32.mrb[0].mxu0
        %v648 = vadd.f32 0.0, %v647
        %v649 = vpop.f32.mrb[0].mxu0
        %650 = vmatprep.mubr.f32.mxu0 0.0
        %651 = vmatmul.mubr.f32.gmra.mrb[0].mxu0 %v507
        %v652 = vpop.f32.mrb[0].mxu0
        %v653 = vadd.f32 0.0, %v652
        %v654 = vpop.f32.mrb[0].mxu0
        %655 = vmatprep.mubr.f32.mxu0 0.0
        %656 = vmatmul.mubr.f32.gmra.mrb[0].mxu0 %v510
        %v657 = vpop.f32.mrb[0].mxu0
        %v658 = vadd.f32 0.0, %v657
        %v659 = vpop.f32.mrb[0].mxu0
        %660 = vdwg.mxu0
        %661 = vst.msk [vmem:[#allocation3] sm:$0xff] %vm365, %v583
        %662 = vst.msk [vmem:[#allocation3 + $0x8] sm:$0xff] %vm365, %v588
        %663 = vst.msk [vmem:[#allocation3 + $0x10] sm:$0xff] %vm365, %v593
        %664 = vst.msk [vmem:[#allocation3 + $0x18] sm:$0xff] %vm365, %v598
        %665 = vst.msk [vmem:[#allocation3 + $0x20] sm:$0xff] %vm365, %v603
        %666 = vst.msk [vmem:[#allocation3 + $0x28] sm:$0xff] %vm365, %v608
        %667 = vst.msk [vmem:[#allocation3 + $0x30] sm:$0xff] %vm365, %v613
        %668 = vst.msk [vmem:[#allocation3 + $0x38] sm:$0xff] %vm365, %v618
        %669 = vst.msk [vmem:[#allocation3 + $0x40] sm:$0xff] %vm365, %v623
        %670 = vst.msk [vmem:[#allocation3 + $0x48] sm:$0xff] %vm365, %v628
        %671 = vst.msk [vmem:[#allocation3 + $0x50] sm:$0xff] %vm365, %v633
        %672 = vst.msk [vmem:[#allocation3 + $0x58] sm:$0xff] %vm365, %v638
        %673 = vst.msk [vmem:[#allocation3 + $0x60] sm:$0xff] %vm365, %v643
        %674 = vst.msk [vmem:[#allocation3 + $0x68] sm:$0xff] %vm365, %v648
        %675 = vst.msk [vmem:[#allocation3 + $0x70] sm:$0xff] %vm365, %v653
        %676 = vst.msk [vmem:[#allocation3 + $0x78] sm:$0xff] %vm365, %v658
        %v677 = vld [vmem:[#allocation2 + $0x1] sm:$0xff]
        %v678 = vld [vmem:[#allocation2 + $0x9] sm:$0xff]
        %v679 = vld [vmem:[#allocation2 + $0x19] sm:$0xff]
        %v680 = vld [vmem:[#allocation2 + $0x21] sm:$0xff]
        %v681 = vld [vmem:[#allocation2 + $0x31] sm:$0xff]
        %v682 = vld [vmem:[#allocation2 + $0x39] sm:$0xff]
        %v683 = vld [vmem:[#allocation2 + $0x49] sm:$0xff]
        %v684 = vld [vmem:[#allocation2 + $0x51] sm:$0xff]
        %v685 = vld [vmem:[#allocation2 + $0x61] sm:$0xff]
        %v686 = vld [vmem:[#allocation2 + $0x69] sm:$0xff]
        %v687 = vld [vmem:[#allocation2 + $0x79] sm:$0xff]
        %v688 = vld [vmem:[#allocation2 + $0x81] sm:$0xff]
        %v689 = vld [vmem:[#allocation2 + $0x91] sm:$0xff]
        %v690 = vld [vmem:[#allocation2 + $0x99] sm:$0xff]
        %v691 = vld [vmem:[#allocation2 + $0xa9] sm:$0xff]
        %v692 = vld [vmem:[#allocation2 + $0xb1] sm:$0xff]
        %s693 = scalar_lea.vmem %s3, 4
        %v694 = vld [vmem:[%s693] sm:$0xf]
        %v696 = vsel %vm365, %v677, 0
        %v699 = vsel %vm365, %v678, 0
        %v702 = vsel %vm365, %v679, 0
        %v705 = vsel %vm365, %v680, 0
        %v708 = vsel %vm365, %v681, 0
        %v711 = vsel %vm365, %v682, 0
        %v714 = vsel %vm365, %v683, 0
        %v717 = vsel %vm365, %v684, 0
        %v720 = vsel %vm365, %v685, 0
        %v723 = vsel %vm365, %v686, 0
        %v726 = vsel %vm365, %v687, 0
        %v729 = vsel %vm365, %v688, 0
        %v732 = vsel %vm365, %v689, 0
        %v735 = vsel %vm365, %v690, 0
        %v738 = vsel %vm365, %v691, 0
        %v741 = vsel %vm365, %v692, 0
        %v744 = vsel %vm512, %v694, 0
        %746 = vmatprep.subr.mxu0 0.0
        %747 = vmatpush1.msra.mxu0 %v744
        %748 = vmatprep.subr.mxu0 0.0
        %749 = vmatpush1.msra.mxu0 0.0
        %750 = vmatprep.subr.mxu0 0.0
        %751 = vmatpush1.msra.mxu0 0.0
        %752 = vmatprep.subr.mxu0 0.0
        %753 = vmatpush1.msra.mxu0 0.0
        %754 = vmatprep.subr.mxu0 0.0
        %755 = vmatpush1.msra.mxu0 0.0
        %756 = vmatprep.subr.mxu0 0.0
        %757 = vmatpush1.msra.mxu0 0.0
        %758 = vmatprep.subr.mxu0 0.0
        %759 = vmatpush1.msra.mxu0 0.0
        %760 = vmatprep.subr.mxu0 0.0
        %761 = vmatpush1.msra.mxu0 0.0
        %762 = vmatprep.subr.mxu0 0.0
        %763 = vmatpush1.msra.mxu0 0.0
        %764 = vmatprep.subr.mxu0 0.0
        %765 = vmatpush1.msra.mxu0 0.0
        %766 = vmatprep.subr.mxu0 0.0
        %767 = vmatpush1.msra.mxu0 0.0
        %768 = vmatprep.subr.mxu0 0.0
        %769 = vmatpush1.msra.mxu0 0.0
        %770 = vmatprep.subr.mxu0 0.0
        %771 = vmatpush1.msra.mxu0 0.0
        %772 = vmatprep.subr.mxu0 0.0
        %773 = vmatpush1.msra.mxu0 0.0
        %774 = vmatprep.subr.mxu0 0.0
        %775 = vmatpush1.msra.mxu0 0.0
        %776 = vmatprep.subr.mxu0 0.0
        %777 = vmatpush1.msra.mxu0 0.0
        %778 = vmatprep.subr.mxu0 0.0
        %779 = vmatpush1.msra.mxu0 0.0
        %780 = vmatprep.subr.mxu0 0.0
        %781 = vmatpush1.msra.mxu0 0.0
        %782 = vmatprep.subr.mxu0 0.0
        %783 = vmatpush1.msra.mxu0 0.0
        %784 = vmatprep.subr.mxu0 0.0
        %785 = vmatpush1.msra.mxu0 0.0
        %786 = vmatprep.subr.mxu0 0.0
        %787 = vmatpush1.msra.mxu0 0.0
        %788 = vmatprep.subr.mxu0 0.0
        %789 = vmatpush1.msra.mxu0 0.0
        %790 = vmatprep.subr.mxu0 0.0
        %791 = vmatpush1.msra.mxu0 0.0
        %792 = vmatprep.subr.mxu0 0.0
        %793 = vmatpush1.msra.mxu0 0.0
        %794 = vmatprep.subr.mxu0 0.0
        %795 = vmatpush1.msra.mxu0 0.0
        %796 = vmatprep.subr.mxu0 0.0
        %797 = vmatpush1.msra.mxu0 0.0
        %798 = vmatprep.subr.mxu0 0.0
        %799 = vmatpush1.msra.mxu0 0.0
        %800 = vmatprep.subr.mxu0 0.0
        %801 = vmatpush1.msra.mxu0 0.0
        %802 = vmatprep.subr.mxu0 0.0
        %803 = vmatpush1.msra.mxu0 0.0
        %804 = vmatprep.subr.mxu0 0.0
        %805 = vmatpush1.msra.mxu0 0.0
        %806 = vmatprep.subr.mxu0 0.0
        %807 = vmatpush1.msra.mxu0 0.0
        %808 = vmatprep.subr.mxu0 0.0
        %809 = vmatpush1.msra.mxu0 0.0
        %810 = vmatprep.mubr.f32.mxu0 0.0
        %811 = vmatmul.mubr.f32.gmra.mrb[0].mxu0 %v696
        %v812 = vpop.f32.mrb[0].mxu0
        %v813 = vadd.f32 0.0, %v812
        %v814 = vpop.f32.mrb[0].mxu0
        %815 = vmatprep.mubr.f32.mxu0 0.0
        %816 = vmatmul.mubr.f32.gmra.mrb[0].mxu0 %v699
        %v817 = vpop.f32.mrb[0].mxu0
        %v818 = vadd.f32 0.0, %v817
        %v819 = vpop.f32.mrb[0].mxu0
        %820 = vmatprep.mubr.f32.mxu0 0.0
        %821 = vmatmul.mubr.f32.gmra.mrb[0].mxu0 %v702
        %v822 = vpop.f32.mrb[0].mxu0
        %v823 = vadd.f32 0.0, %v822
        %v824 = vpop.f32.mrb[0].mxu0
        %825 = vmatprep.mubr.f32.mxu0 0.0
        %826 = vmatmul.mubr.f32.gmra.mrb[0].mxu0 %v705
        %v827 = vpop.f32.mrb[0].mxu0
        %v828 = vadd.f32 0.0, %v827
        %v829 = vpop.f32.mrb[0].mxu0
        %830 = vmatprep.mubr.f32.mxu0 0.0
        %831 = vmatmul.mubr.f32.gmra.mrb[0].mxu0 %v708
        %v832 = vpop.f32.mrb[0].mxu0
        %v833 = vadd.f32 0.0, %v832
        %v834 = vpop.f32.mrb[0].mxu0
        %835 = vmatprep.mubr.f32.mxu0 0.0
        %836 = vmatmul.mubr.f32.gmra.mrb[0].mxu0 %v711
        %v837 = vpop.f32.mrb[0].mxu0
        %v838 = vadd.f32 0.0, %v837
        %v839 = vpop.f32.mrb[0].mxu0
        %840 = vmatprep.mubr.f32.mxu0 0.0
        %841 = vmatmul.mubr.f32.gmra.mrb[0].mxu0 %v714
        %v842 = vpop.f32.mrb[0].mxu0
        %v843 = vadd.f32 0.0, %v842
        %v844 = vpop.f32.mrb[0].mxu0
        %845 = vmatprep.mubr.f32.mxu0 0.0
        %846 = vmatmul.mubr.f32.gmra.mrb[0].mxu0 %v717
        %v847 = vpop.f32.mrb[0].mxu0
        %v848 = vadd.f32 0.0, %v847
        %v849 = vpop.f32.mrb[0].mxu0
        %850 = vmatprep.mubr.f32.mxu0 0.0
        %851 = vmatmul.mubr.f32.gmra.mrb[0].mxu0 %v720
        %v852 = vpop.f32.mrb[0].mxu0
        %v853 = vadd.f32 0.0, %v852
        %v854 = vpop.f32.mrb[0].mxu0
        %855 = vmatprep.mubr.f32.mxu0 0.0
        %856 = vmatmul.mubr.f32.gmra.mrb[0].mxu0 %v723
        %v857 = vpop.f32.mrb[0].mxu0
        %v858 = vadd.f32 0.0, %v857
        %v859 = vpop.f32.mrb[0].mxu0
        %860 = vmatprep.mubr.f32.mxu0 0.0
        %861 = vmatmul.mubr.f32.gmra.mrb[0].mxu0 %v726
        %v862 = vpop.f32.mrb[0].mxu0
        %v863 = vadd.f32 0.0, %v862
        %v864 = vpop.f32.mrb[0].mxu0
        %865 = vmatprep.mubr.f32.mxu0 0.0
        %866 = vmatmul.mubr.f32.gmra.mrb[0].mxu0 %v729
        %v867 = vpop.f32.mrb[0].mxu0
        %v868 = vadd.f32 0.0, %v867
        %v869 = vpop.f32.mrb[0].mxu0
        %870 = vmatprep.mubr.f32.mxu0 0.0
        %871 = vmatmul.mubr.f32.gmra.mrb[0].mxu0 %v732
        %v872 = vpop.f32.mrb[0].mxu0
        %v873 = vadd.f32 0.0, %v872
        %v874 = vpop.f32.mrb[0].mxu0
        %875 = vmatprep.mubr.f32.mxu0 0.0
        %876 = vmatmul.mubr.f32.gmra.mrb[0].mxu0 %v735
        %v877 = vpop.f32.mrb[0].mxu0
        %v878 = vadd.f32 0.0, %v877
        %v879 = vpop.f32.mrb[0].mxu0
        %880 = vmatprep.mubr.f32.mxu0 0.0
        %881 = vmatmul.mubr.f32.gmra.mrb[0].mxu0 %v738
        %v882 = vpop.f32.mrb[0].mxu0
        %v883 = vadd.f32 0.0, %v882
        %v884 = vpop.f32.mrb[0].mxu0
        %885 = vmatprep.mubr.f32.mxu0 0.0
        %886 = vmatmul.mubr.f32.gmra.mrb[0].mxu0 %v741
        %v887 = vpop.f32.mrb[0].mxu0
        %v888 = vadd.f32 0.0, %v887
        %v889 = vpop.f32.mrb[0].mxu0
        %890 = vdwg.mxu0
        %v891 = vld [vmem:[#allocation3] sm:$0xff]
        %v892 = vld [vmem:[#allocation3 + $0x8] sm:$0xff]
        %v893 = vld [vmem:[#allocation3 + $0x10] sm:$0xff]
        %v894 = vld [vmem:[#allocation3 + $0x18] sm:$0xff]
        %v895 = vld [vmem:[#allocation3 + $0x20] sm:$0xff]
        %v896 = vld [vmem:[#allocation3 + $0x28] sm:$0xff]
        %v897 = vld [vmem:[#allocation3 + $0x30] sm:$0xff]
        %v898 = vld [vmem:[#allocation3 + $0x38] sm:$0xff]
        %v899 = vld [vmem:[#allocation3 + $0x40] sm:$0xff]
        %v900 = vld [vmem:[#allocation3 + $0x48] sm:$0xff]
        %v901 = vld [vmem:[#allocation3 + $0x50] sm:$0xff]
        %v902 = vld [vmem:[#allocation3 + $0x58] sm:$0xff]
        %v903 = vld [vmem:[#allocation3 + $0x60] sm:$0xff]
        %v904 = vld [vmem:[#allocation3 + $0x68] sm:$0xff]
        %v905 = vld [vmem:[#allocation3 + $0x70] sm:$0xff]
        %v906 = vld [vmem:[#allocation3 + $0x78] sm:$0xff]
        %v907 = vadd.f32 %v891, %v813
        %v908 = vadd.f32 %v892, %v818
        %v909 = vadd.f32 %v893, %v823
        %v910 = vadd.f32 %v894, %v828
        %v911 = vadd.f32 %v895, %v833
        %v912 = vadd.f32 %v896, %v838
        %v913 = vadd.f32 %v897, %v843
        %v914 = vadd.f32 %v898, %v848
        %v915 = vadd.f32 %v899, %v853
        %v916 = vadd.f32 %v900, %v858
        %v917 = vadd.f32 %v901, %v863
        %v918 = vadd.f32 %v902, %v868
        %v919 = vadd.f32 %v903, %v873
        %v920 = vadd.f32 %v904, %v878
        %v921 = vadd.f32 %v905, %v883
        %v922 = vadd.f32 %v906, %v888
        %923 = vst.msk [vmem:[#allocation3] sm:$0xff] %vm365, %v907
        %924 = vst.msk [vmem:[#allocation3 + $0x8] sm:$0xff] %vm365, %v908
        %925 = vst.msk [vmem:[#allocation3 + $0x10] sm:$0xff] %vm365, %v909
        %926 = vst.msk [vmem:[#allocation3 + $0x18] sm:$0xff] %vm365, %v910
        %927 = vst.msk [vmem:[#allocation3 + $0x20] sm:$0xff] %vm365, %v911
        %928 = vst.msk [vmem:[#allocation3 + $0x28] sm:$0xff] %vm365, %v912
        %929 = vst.msk [vmem:[#allocation3 + $0x30] sm:$0xff] %vm365, %v913
        %930 = vst.msk [vmem:[#allocation3 + $0x38] sm:$0xff] %vm365, %v914
        %931 = vst.msk [vmem:[#allocation3 + $0x40] sm:$0xff] %vm365, %v915
        %932 = vst.msk [vmem:[#allocation3 + $0x48] sm:$0xff] %vm365, %v916
        %933 = vst.msk [vmem:[#allocation3 + $0x50] sm:$0xff] %vm365, %v917
        %934 = vst.msk [vmem:[#allocation3 + $0x58] sm:$0xff] %vm365, %v918
        %935 = vst.msk [vmem:[#allocation3 + $0x60] sm:$0xff] %vm365, %v919
        %936 = vst.msk [vmem:[#allocation3 + $0x68] sm:$0xff] %vm365, %v920
        %937 = vst.msk [vmem:[#allocation3 + $0x70] sm:$0xff] %vm365, %v921
        %938 = vst.msk [vmem:[#allocation3 + $0x78] sm:$0xff] %vm365, %v922
        %v939 = vld [vmem:[#allocation2 + $0x2] sm:$0xff]
        %v940 = vld [vmem:[#allocation2 + $0xa] sm:$0xff]
        %v941 = vld [vmem:[#allocation2 + $0x1a] sm:$0xff]
        %v942 = vld [vmem:[#allocation2 + $0x22] sm:$0xff]
        %v943 = vld [vmem:[#allocation2 + $0x32] sm:$0xff]
        %v944 = vld [vmem:[#allocation2 + $0x3a] sm:$0xff]
        %v945 = vld [vmem:[#allocation2 + $0x4a] sm:$0xff]
        %v946 = vld [vmem:[#allocation2 + $0x52] sm:$0xff]
        %v947 = vld [vmem:[#allocation2 + $0x62] sm:$0xff]
        %v948 = vld [vmem:[#allocation2 + $0x6a] sm:$0xff]
        %v949 = vld [vmem:[#allocation2 + $0x7a] sm:$0xff]
        %v950 = vld [vmem:[#allocation2 + $0x82] sm:$0xff]
        %v951 = vld [vmem:[#allocation2 + $0x92] sm:$0xff]
        %v952 = vld [vmem:[#allocation2 + $0x9a] sm:$0xff]
        %v953 = vld [vmem:[#allocation2 + $0xaa] sm:$0xff]
        %v954 = vld [vmem:[#allocation2 + $0xb2] sm:$0xff]
        %s955 = scalar_lea.vmem %s3, 8
        %v956 = vld [vmem:[%s955] sm:$0xf]
        %v958 = vsel %vm365, %v939, 0
        %v961 = vsel %vm365, %v940, 0
        %v964 = vsel %vm365, %v941, 0
        %v967 = vsel %vm365, %v942, 0
        %v970 = vsel %vm365, %v943, 0
        %v973 = vsel %vm365, %v944, 0
        %v976 = vsel %vm365, %v945, 0
        %v979 = vsel %vm365, %v946, 0
        %v982 = vsel %vm365, %v947, 0
        %v985 = vsel %vm365, %v948, 0
        %v988 = vsel %vm365, %v949, 0
        %v991 = vsel %vm365, %v950, 0
        %v994 = vsel %vm365, %v951, 0
        %v997 = vsel %vm365, %v952, 0
        %v1000 = vsel %vm365, %v953, 0
        %v1003 = vsel %vm365, %v954, 0
        %v1006 = vsel %vm512, %v956, 0
        %1008 = vmatprep.subr.mxu0 0.0
        %1009 = vmatpush1.msra.mxu0 %v1006
        %1010 = vmatprep.subr.mxu0 0.0
        %1011 = vmatpush1.msra.mxu0 0.0
        %1012 = vmatprep.subr.mxu0 0.0
        %1013 = vmatpush1.msra.mxu0 0.0
        %1014 = vmatprep.subr.mxu0 0.0
        %1015 = vmatpush1.msra.mxu0 0.0
        %1016 = vmatprep.subr.mxu0 0.0
        %1017 = vmatpush1.msra.mxu0 0.0
        %1018 = vmatprep.subr.mxu0 0.0
        %1019 = vmatpush1.msra.mxu0 0.0
        %1020 = vmatprep.subr.mxu0 0.0
        %1021 = vmatpush1.msra.mxu0 0.0
        %1022 = vmatprep.subr.mxu0 0.0
        %1023 = vmatpush1.msra.mxu0 0.0
        %1024 = vmatprep.subr.mxu0 0.0
        %1025 = vmatpush1.msra.mxu0 0.0
        %1026 = vmatprep.subr.mxu0 0.0
        %1027 = vmatpush1.msra.mxu0 0.0
        %1028 = vmatprep.subr.mxu0 0.0
        %1029 = vmatpush1.msra.mxu0 0.0
        %1030 = vmatprep.subr.mxu0 0.0
        %1031 = vmatpush1.msra.mxu0 0.0
        %1032 = vmatprep.subr.mxu0 0.0
        %1033 = vmatpush1.msra.mxu0 0.0
        %1034 = vmatprep.subr.mxu0 0.0
        %1035 = vmatpush1.msra.mxu0 0.0
        %1036 = vmatprep.subr.mxu0 0.0
        %1037 = vmatpush1.msra.mxu0 0.0
        %1038 = vmatprep.subr.mxu0 0.0
        %1039 = vmatpush1.msra.mxu0 0.0
        %1040 = vmatprep.subr.mxu0 0.0
        %1041 = vmatpush1.msra.mxu0 0.0
        %1042 = vmatprep.subr.mxu0 0.0
        %1043 = vmatpush1.msra.mxu0 0.0
        %1044 = vmatprep.subr.mxu0 0.0
        %1045 = vmatpush1.msra.mxu0 0.0
        %1046 = vmatprep.subr.mxu0 0.0
        %1047 = vmatpush1.msra.mxu0 0.0
        %1048 = vmatprep.subr.mxu0 0.0
        %1049 = vmatpush1.msra.mxu0 0.0
        %1050 = vmatprep.subr.mxu0 0.0
        %1051 = vmatpush1.msra.mxu0 0.0
        %1052 = vmatprep.subr.mxu0 0.0
        %1053 = vmatpush1.msra.mxu0 0.0
        %1054 = vmatprep.subr.mxu0 0.0
        %1055 = vmatpush1.msra.mxu0 0.0
        %1056 = vmatprep.subr.mxu0 0.0
        %1057 = vmatpush1.msra.mxu0 0.0
        %1058 = vmatprep.subr.mxu0 0.0
        %1059 = vmatpush1.msra.mxu0 0.0
        %1060 = vmatprep.subr.mxu0 0.0
        %1061 = vmatpush1.msra.mxu0 0.0
        %1062 = vmatprep.subr.mxu0 0.0
        %1063 = vmatpush1.msra.mxu0 0.0
        %1064 = vmatprep.subr.mxu0 0.0
        %1065 = vmatpush1.msra.mxu0 0.0
        %1066 = vmatprep.subr.mxu0 0.0
        %1067 = vmatpush1.msra.mxu0 0.0
        %1068 = vmatprep.subr.mxu0 0.0
        %1069 = vmatpush1.msra.mxu0 0.0
        %1070 = vmatprep.subr.mxu0 0.0
        %1071 = vmatpush1.msra.mxu0 0.0
        %1072 = vmatprep.mubr.f32.mxu0 0.0
        %1073 = vmatmul.mubr.f32.gmra.mrb[0].mxu0 %v958
        %v1074 = vpop.f32.mrb[0].mxu0
        %v1075 = vadd.f32 0.0, %v1074
        %v1076 = vpop.f32.mrb[0].mxu0
        %1077 = vmatprep.mubr.f32.mxu0 0.0
        %1078 = vmatmul.mubr.f32.gmra.mrb[0].mxu0 %v961
        %v1079 = vpop.f32.mrb[0].mxu0
        %v1080 = vadd.f32 0.0, %v1079
        %v1081 = vpop.f32.mrb[0].mxu0
        %1082 = vmatprep.mubr.f32.mxu0 0.0
        %1083 = vmatmul.mubr.f32.gmra.mrb[0].mxu0 %v964
        %v1084 = vpop.f32.mrb[0].mxu0
        %v1085 = vadd.f32 0.0, %v1084
        %v1086 = vpop.f32.mrb[0].mxu0
        %1087 = vmatprep.mubr.f32.mxu0 0.0
        %1088 = vmatmul.mubr.f32.gmra.mrb[0].mxu0 %v967
        %v1089 = vpop.f32.mrb[0].mxu0
        %v1090 = vadd.f32 0.0, %v1089
        %v1091 = vpop.f32.mrb[0].mxu0
        %1092 = vmatprep.mubr.f32.mxu0 0.0
        %1093 = vmatmul.mubr.f32.gmra.mrb[0].mxu0 %v970
        %v1094 = vpop.f32.mrb[0].mxu0
        %v1095 = vadd.f32 0.0, %v1094
        %v1096 = vpop.f32.mrb[0].mxu0
        %1097 = vmatprep.mubr.f32.mxu0 0.0
        %1098 = vmatmul.mubr.f32.gmra.mrb[0].mxu0 %v973
        %v1099 = vpop.f32.mrb[0].mxu0
        %v1100 = vadd.f32 0.0, %v1099
        %v1101 = vpop.f32.mrb[0].mxu0
        %1102 = vmatprep.mubr.f32.mxu0 0.0
        %1103 = vmatmul.mubr.f32.gmra.mrb[0].mxu0 %v976
        %v1104 = vpop.f32.mrb[0].mxu0
        %v1105 = vadd.f32 0.0, %v1104
        %v1106 = vpop.f32.mrb[0].mxu0
        %1107 = vmatprep.mubr.f32.mxu0 0.0
        %1108 = vmatmul.mubr.f32.gmra.mrb[0].mxu0 %v979
        %v1109 = vpop.f32.mrb[0].mxu0
        %v1110 = vadd.f32 0.0, %v1109
        %v1111 = vpop.f32.mrb[0].mxu0
        %1112 = vmatprep.mubr.f32.mxu0 0.0
        %1113 = vmatmul.mubr.f32.gmra.mrb[0].mxu0 %v982
        %v1114 = vpop.f32.mrb[0].mxu0
        %v1115 = vadd.f32 0.0, %v1114
        %v1116 = vpop.f32.mrb[0].mxu0
        %1117 = vmatprep.mubr.f32.mxu0 0.0
        %1118 = vmatmul.mubr.f32.gmra.mrb[0].mxu0 %v985
        %v1119 = vpop.f32.mrb[0].mxu0
        %v1120 = vadd.f32 0.0, %v1119
        %v1121 = vpop.f32.mrb[0].mxu0
        %1122 = vmatprep.mubr.f32.mxu0 0.0
        %1123 = vmatmul.mubr.f32.gmra.mrb[0].mxu0 %v988
        %v1124 = vpop.f32.mrb[0].mxu0
        %v1125 = vadd.f32 0.0, %v1124
        %v1126 = vpop.f32.mrb[0].mxu0
        %1127 = vmatprep.mubr.f32.mxu0 0.0
        %1128 = vmatmul.mubr.f32.gmra.mrb[0].mxu0 %v991
        %v1129 = vpop.f32.mrb[0].mxu0
        %v1130 = vadd.f32 0.0, %v1129
        %v1131 = vpop.f32.mrb[0].mxu0
        %1132 = vmatprep.mubr.f32.mxu0 0.0
        %1133 = vmatmul.mubr.f32.gmra.mrb[0].mxu0 %v994
        %v1134 = vpop.f32.mrb[0].mxu0
        %v1135 = vadd.f32 0.0, %v1134
        %v1136 = vpop.f32.mrb[0].mxu0
        %1137 = vmatprep.mubr.f32.mxu0 0.0
        %1138 = vmatmul.mubr.f32.gmra.mrb[0].mxu0 %v997
        %v1139 = vpop.f32.mrb[0].mxu0
        %v1140 = vadd.f32 0.0, %v1139
        %v1141 = vpop.f32.mrb[0].mxu0
        %1142 = vmatprep.mubr.f32.mxu0 0.0
        %1143 = vmatmul.mubr.f32.gmra.mrb[0].mxu0 %v1000
        %v1144 = vpop.f32.mrb[0].mxu0
        %v1145 = vadd.f32 0.0, %v1144
        %v1146 = vpop.f32.mrb[0].mxu0
        %1147 = vmatprep.mubr.f32.mxu0 0.0
        %1148 = vmatmul.mubr.f32.gmra.mrb[0].mxu0 %v1003
        %v1149 = vpop.f32.mrb[0].mxu0
        %v1150 = vadd.f32 0.0, %v1149
        %v1151 = vpop.f32.mrb[0].mxu0
        %1152 = vdwg.mxu0
        %v1153 = vld [vmem:[#allocation3] sm:$0xff]
        %v1154 = vld [vmem:[#allocation3 + $0x8] sm:$0xff]
        %v1155 = vld [vmem:[#allocation3 + $0x10] sm:$0xff]
        %v1156 = vld [vmem:[#allocation3 + $0x18] sm:$0xff]
        %v1157 = vld [vmem:[#allocation3 + $0x20] sm:$0xff]
        %v1158 = vld [vmem:[#allocation3 + $0x28] sm:$0xff]
        %v1159 = vld [vmem:[#allocation3 + $0x30] sm:$0xff]
        %v1160 = vld [vmem:[#allocation3 + $0x38] sm:$0xff]
        %v1161 = vld [vmem:[#allocation3 + $0x40] sm:$0xff]
        %v1162 = vld [vmem:[#allocation3 + $0x48] sm:$0xff]
        %v1163 = vld [vmem:[#allocation3 + $0x50] sm:$0xff]
        %v1164 = vld [vmem:[#allocation3 + $0x58] sm:$0xff]
        %v1165 = vld [vmem:[#allocation3 + $0x60] sm:$0xff]
        %v1166 = vld [vmem:[#allocation3 + $0x68] sm:$0xff]
        %v1167 = vld [vmem:[#allocation3 + $0x70] sm:$0xff]
        %v1168 = vld [vmem:[#allocation3 + $0x78] sm:$0xff]
        %v1169 = vadd.f32 %v1153, %v1075
        %v1170 = vadd.f32 %v1154, %v1080
        %v1171 = vadd.f32 %v1155, %v1085
        %v1172 = vadd.f32 %v1156, %v1090
        %v1173 = vadd.f32 %v1157, %v1095
        %v1174 = vadd.f32 %v1158, %v1100
        %v1175 = vadd.f32 %v1159, %v1105
        %v1176 = vadd.f32 %v1160, %v1110
        %v1177 = vadd.f32 %v1161, %v1115
        %v1178 = vadd.f32 %v1162, %v1120
        %v1179 = vadd.f32 %v1163, %v1125
        %v1180 = vadd.f32 %v1164, %v1130
        %v1181 = vadd.f32 %v1165, %v1135
        %v1182 = vadd.f32 %v1166, %v1140
        %v1183 = vadd.f32 %v1167, %v1145
        %v1184 = vadd.f32 %v1168, %v1150
        %1185 = vst.msk [vmem:[#allocation3] sm:$0xff] %vm365, %v1169
        %1186 = vst.msk [vmem:[#allocation3 + $0x8] sm:$0xff] %vm365, %v1170
        %1187 = vst.msk [vmem:[#allocation3 + $0x10] sm:$0xff] %vm365, %v1171
        %1188 = vst.msk [vmem:[#allocation3 + $0x18] sm:$0xff] %vm365, %v1172
        %1189 = vst.msk [vmem:[#allocation3 + $0x20] sm:$0xff] %vm365, %v1173
        %1190 = vst.msk [vmem:[#allocation3 + $0x28] sm:$0xff] %vm365, %v1174
        %1191 = vst.msk [vmem:[#allocation3 + $0x30] sm:$0xff] %vm365, %v1175
        %1192 = vst.msk [vmem:[#allocation3 + $0x38] sm:$0xff] %vm365, %v1176
        %1193 = vst.msk [vmem:[#allocation3 + $0x40] sm:$0xff] %vm365, %v1177
        %1194 = vst.msk [vmem:[#allocation3 + $0x48] sm:$0xff] %vm365, %v1178
        %1195 = vst.msk [vmem:[#allocation3 + $0x50] sm:$0xff] %vm365, %v1179
        %1196 = vst.msk [vmem:[#allocation3 + $0x58] sm:$0xff] %vm365, %v1180
        %1197 = vst.msk [vmem:[#allocation3 + $0x60] sm:$0xff] %vm365, %v1181
        %1198 = vst.msk [vmem:[#allocation3 + $0x68] sm:$0xff] %vm365, %v1182
        %1199 = vst.msk [vmem:[#allocation3 + $0x70] sm:$0xff] %vm365, %v1183
        %1200 = vst.msk [vmem:[#allocation3 + $0x78] sm:$0xff] %vm365, %v1184
        %v1201 = vld [vmem:[%s413] sm:$0xff]
        %v1202 = vld [vmem:[%s413 + $0x8] sm:$0xff]
        %v1203 = vld [vmem:[%s413 + $0x18] sm:$0xff]
        %v1204 = vld [vmem:[%s413 + $0x20] sm:$0xff]
        %v1205 = vld [vmem:[%s413 + $0x30] sm:$0xff]
        %v1206 = vld [vmem:[%s413 + $0x38] sm:$0xff]
        %v1207 = vld [vmem:[%s413 + $0x48] sm:$0xff]
        %v1208 = vld [vmem:[%s413 + $0x50] sm:$0xff]
        %v1209 = vld [vmem:[%s413 + $0x60] sm:$0xff]
        %v1210 = vld [vmem:[%s413 + $0x68] sm:$0xff]
        %v1211 = vld [vmem:[%s413 + $0x78] sm:$0xff]
        %v1212 = vld [vmem:[%s413 + $0x80] sm:$0xff]
        %v1213 = vld [vmem:[%s413 + $0x90] sm:$0xff]
        %v1214 = vld [vmem:[%s413 + $0x98] sm:$0xff]
        %v1215 = vld [vmem:[%s413 + $0xa8] sm:$0xff]
        %v1216 = vld [vmem:[%s413 + $0xb0] sm:$0xff]
        %s1217 = scalar_lea.vmem %s3, 12
        %v1218 = vld [vmem:[%s1217] sm:$0xf]
        %v1220 = vsel %vm365, %v1201, 0
        %v1223 = vsel %vm365, %v1202, 0
        %v1226 = vsel %vm365, %v1203, 0
        %v1229 = vsel %vm365, %v1204, 0
        %v1232 = vsel %vm365, %v1205, 0
        %v1235 = vsel %vm365, %v1206, 0
        %v1238 = vsel %vm365, %v1207, 0
        %v1241 = vsel %vm365, %v1208, 0
        %v1244 = vsel %vm365, %v1209, 0
        %v1247 = vsel %vm365, %v1210, 0
        %v1250 = vsel %vm365, %v1211, 0
        %v1253 = vsel %vm365, %v1212, 0
        %v1256 = vsel %vm365, %v1213, 0
        %v1259 = vsel %vm365, %v1214, 0
        %v1262 = vsel %vm365, %v1215, 0
        %v1265 = vsel %vm365, %v1216, 0
        %v1268 = vsel %vm512, %v1218, 0
        %1270 = vmatprep.subr.mxu0 0.0
        %1271 = vmatpush1.msra.mxu0 %v1268
        %1272 = vmatprep.subr.mxu0 0.0
        %1273 = vmatpush1.msra.mxu0 0.0
        %1274 = vmatprep.subr.mxu0 0.0
        %1275 = vmatpush1.msra.mxu0 0.0
        %1276 = vmatprep.subr.mxu0 0.0
        %1277 = vmatpush1.msra.mxu0 0.0
        %1278 = vmatprep.subr.mxu0 0.0
        %1279 = vmatpush1.msra.mxu0 0.0
        %1280 = vmatprep.subr.mxu0 0.0
        %1281 = vmatpush1.msra.mxu0 0.0
        %1282 = vmatprep.subr.mxu0 0.0
        %1283 = vmatpush1.msra.mxu0 0.0
        %1284 = vmatprep.subr.mxu0 0.0
        %1285 = vmatpush1.msra.mxu0 0.0
        %1286 = vmatprep.subr.mxu0 0.0
        %1287 = vmatpush1.msra.mxu0 0.0
        %1288 = vmatprep.subr.mxu0 0.0
        %1289 = vmatpush1.msra.mxu0 0.0
        %1290 = vmatprep.subr.mxu0 0.0
        %1291 = vmatpush1.msra.mxu0 0.0
        %1292 = vmatprep.subr.mxu0 0.0
        %1293 = vmatpush1.msra.mxu0 0.0
        %1294 = vmatprep.subr.mxu0 0.0
        %1295 = vmatpush1.msra.mxu0 0.0
        %1296 = vmatprep.subr.mxu0 0.0
        %1297 = vmatpush1.msra.mxu0 0.0
        %1298 = vmatprep.subr.mxu0 0.0
        %1299 = vmatpush1.msra.mxu0 0.0
        %1300 = vmatprep.subr.mxu0 0.0
        %1301 = vmatpush1.msra.mxu0 0.0
        %1302 = vmatprep.subr.mxu0 0.0
        %1303 = vmatpush1.msra.mxu0 0.0
        %1304 = vmatprep.subr.mxu0 0.0
        %1305 = vmatpush1.msra.mxu0 0.0
        %1306 = vmatprep.subr.mxu0 0.0
        %1307 = vmatpush1.msra.mxu0 0.0
        %1308 = vmatprep.subr.mxu0 0.0
        %1309 = vmatpush1.msra.mxu0 0.0
        %1310 = vmatprep.subr.mxu0 0.0
        %1311 = vmatpush1.msra.mxu0 0.0
        %1312 = vmatprep.subr.mxu0 0.0
        %1313 = vmatpush1.msra.mxu0 0.0
        %1314 = vmatprep.subr.mxu0 0.0
        %1315 = vmatpush1.msra.mxu0 0.0
        %1316 = vmatprep.subr.mxu0 0.0
        %1317 = vmatpush1.msra.mxu0 0.0
        %1318 = vmatprep.subr.mxu0 0.0
        %1319 = vmatpush1.msra.mxu0 0.0
        %1320 = vmatprep.subr.mxu0 0.0
        %1321 = vmatpush1.msra.mxu0 0.0
        %1322 = vmatprep.subr.mxu0 0.0
        %1323 = vmatpush1.msra.mxu0 0.0
        %1324 = vmatprep.subr.mxu0 0.0
        %1325 = vmatpush1.msra.mxu0 0.0
        %1326 = vmatprep.subr.mxu0 0.0
        %1327 = vmatpush1.msra.mxu0 0.0
        %1328 = vmatprep.subr.mxu0 0.0
        %1329 = vmatpush1.msra.mxu0 0.0
        %1330 = vmatprep.subr.mxu0 0.0
        %1331 = vmatpush1.msra.mxu0 0.0
        %1332 = vmatprep.subr.mxu0 0.0
        %1333 = vmatpush1.msra.mxu0 0.0
        %1334 = vmatprep.mubr.f32.mxu0 0.0
        %1335 = vmatmul.mubr.f32.gmra.mrb[0].mxu0 %v1220
        %v1336 = vpop.f32.mrb[0].mxu0
        %v1337 = vadd.f32 0.0, %v1336
        %v1338 = vpop.f32.mrb[0].mxu0
        %1339 = vmatprep.mubr.f32.mxu0 0.0
        %1340 = vmatmul.mubr.f32.gmra.mrb[0].mxu0 %v1223
        %v1341 = vpop.f32.mrb[0].mxu0
        %v1342 = vadd.f32 0.0, %v1341
        %v1343 = vpop.f32.mrb[0].mxu0
        %1344 = vmatprep.mubr.f32.mxu0 0.0
        %1345 = vmatmul.mubr.f32.gmra.mrb[0].mxu0 %v1226
        %v1346 = vpop.f32.mrb[0].mxu0
        %v1347 = vadd.f32 0.0, %v1346
        %v1348 = vpop.f32.mrb[0].mxu0
        %1349 = vmatprep.mubr.f32.mxu0 0.0
        %1350 = vmatmul.mubr.f32.gmra.mrb[0].mxu0 %v1229
        %v1351 = vpop.f32.mrb[0].mxu0
        %v1352 = vadd.f32 0.0, %v1351
        %v1353 = vpop.f32.mrb[0].mxu0
        %1354 = vmatprep.mubr.f32.mxu0 0.0
        %1355 = vmatmul.mubr.f32.gmra.mrb[0].mxu0 %v1232
        %v1356 = vpop.f32.mrb[0].mxu0
        %v1357 = vadd.f32 0.0, %v1356
        %v1358 = vpop.f32.mrb[0].mxu0
        %1359 = vmatprep.mubr.f32.mxu0 0.0
        %1360 = vmatmul.mubr.f32.gmra.mrb[0].mxu0 %v1235
        %v1361 = vpop.f32.mrb[0].mxu0
        %v1362 = vadd.f32 0.0, %v1361
        %v1363 = vpop.f32.mrb[0].mxu0
        %1364 = vmatprep.mubr.f32.mxu0 0.0
        %1365 = vmatmul.mubr.f32.gmra.mrb[0].mxu0 %v1238
        %v1366 = vpop.f32.mrb[0].mxu0
        %v1367 = vadd.f32 0.0, %v1366
        %v1368 = vpop.f32.mrb[0].mxu0
        %1369 = vmatprep.mubr.f32.mxu0 0.0
        %1370 = vmatmul.mubr.f32.gmra.mrb[0].mxu0 %v1241
        %v1371 = vpop.f32.mrb[0].mxu0
        %v1372 = vadd.f32 0.0, %v1371
        %v1373 = vpop.f32.mrb[0].mxu0
        %1374 = vmatprep.mubr.f32.mxu0 0.0
        %1375 = vmatmul.mubr.f32.gmra.mrb[0].mxu0 %v1244
        %v1376 = vpop.f32.mrb[0].mxu0
        %v1377 = vadd.f32 0.0, %v1376
        %v1378 = vpop.f32.mrb[0].mxu0
        %1379 = vmatprep.mubr.f32.mxu0 0.0
        %1380 = vmatmul.mubr.f32.gmra.mrb[0].mxu0 %v1247
        %v1381 = vpop.f32.mrb[0].mxu0
        %v1382 = vadd.f32 0.0, %v1381
        %v1383 = vpop.f32.mrb[0].mxu0
        %1384 = vmatprep.mubr.f32.mxu0 0.0
        %1385 = vmatmul.mubr.f32.gmra.mrb[0].mxu0 %v1250
        %v1386 = vpop.f32.mrb[0].mxu0
        %v1387 = vadd.f32 0.0, %v1386
        %v1388 = vpop.f32.mrb[0].mxu0
        %1389 = vmatprep.mubr.f32.mxu0 0.0
        %1390 = vmatmul.mubr.f32.gmra.mrb[0].mxu0 %v1253
        %v1391 = vpop.f32.mrb[0].mxu0
        %v1392 = vadd.f32 0.0, %v1391
        %v1393 = vpop.f32.mrb[0].mxu0
        %1394 = vmatprep.mubr.f32.mxu0 0.0
        %1395 = vmatmul.mubr.f32.gmra.mrb[0].mxu0 %v1256
        %v1396 = vpop.f32.mrb[0].mxu0
        %v1397 = vadd.f32 0.0, %v1396
        %v1398 = vpop.f32.mrb[0].mxu0
        %1399 = vmatprep.mubr.f32.mxu0 0.0
        %1400 = vmatmul.mubr.f32.gmra.mrb[0].mxu0 %v1259
        %v1401 = vpop.f32.mrb[0].mxu0
        %v1402 = vadd.f32 0.0, %v1401
        %v1403 = vpop.f32.mrb[0].mxu0
        %1404 = vmatprep.mubr.f32.mxu0 0.0
        %1405 = vmatmul.mubr.f32.gmra.mrb[0].mxu0 %v1262
        %v1406 = vpop.f32.mrb[0].mxu0
        %v1407 = vadd.f32 0.0, %v1406
        %v1408 = vpop.f32.mrb[0].mxu0
        %1409 = vmatprep.mubr.f32.mxu0 0.0
        %1410 = vmatmul.mubr.f32.gmra.mrb[0].mxu0 %v1265
        %v1411 = vpop.f32.mrb[0].mxu0
        %v1412 = vadd.f32 0.0, %v1411
        %v1413 = vpop.f32.mrb[0].mxu0
        %1414 = vdwg.mxu0
        %v1415 = vld [vmem:[#allocation3] sm:$0xff]
        %v1416 = vld [vmem:[#allocation3 + $0x8] sm:$0xff]
        %v1417 = vld [vmem:[#allocation3 + $0x10] sm:$0xff]
        %v1418 = vld [vmem:[#allocation3 + $0x18] sm:$0xff]
        %v1419 = vld [vmem:[#allocation3 + $0x20] sm:$0xff]
        %v1420 = vld [vmem:[#allocation3 + $0x28] sm:$0xff]
        %v1421 = vld [vmem:[#allocation3 + $0x30] sm:$0xff]
        %v1422 = vld [vmem:[#allocation3 + $0x38] sm:$0xff]
        %v1423 = vld [vmem:[#allocation3 + $0x40] sm:$0xff]
        %v1424 = vld [vmem:[#allocation3 + $0x48] sm:$0xff]
        %v1425 = vld [vmem:[#allocation3 + $0x50] sm:$0xff]
        %v1426 = vld [vmem:[#allocation3 + $0x58] sm:$0xff]
        %v1427 = vld [vmem:[#allocation3 + $0x60] sm:$0xff]
        %v1428 = vld [vmem:[#allocation3 + $0x68] sm:$0xff]
        %v1429 = vld [vmem:[#allocation3 + $0x70] sm:$0xff]
        %v1430 = vld [vmem:[#allocation3 + $0x78] sm:$0xff]
        %v1431 = vadd.f32 %v1415, %v1337
        %v1432 = vadd.f32 %v1416, %v1342
        %v1433 = vadd.f32 %v1417, %v1347
        %v1434 = vadd.f32 %v1418, %v1352
        %v1435 = vadd.f32 %v1419, %v1357
        %v1436 = vadd.f32 %v1420, %v1362
        %v1437 = vadd.f32 %v1421, %v1367
        %v1438 = vadd.f32 %v1422, %v1372
        %v1439 = vadd.f32 %v1423, %v1377
        %v1440 = vadd.f32 %v1424, %v1382
        %v1441 = vadd.f32 %v1425, %v1387
        %v1442 = vadd.f32 %v1426, %v1392
        %v1443 = vadd.f32 %v1427, %v1397
        %v1444 = vadd.f32 %v1428, %v1402
        %v1445 = vadd.f32 %v1429, %v1407
        %v1446 = vadd.f32 %v1430, %v1412
        %1447 = vst.msk [vmem:[#allocation3] sm:$0xff] %vm365, %v1431
        %1448 = vst.msk [vmem:[#allocation3 + $0x8] sm:$0xff] %vm365, %v1432
        %1449 = vst.msk [vmem:[#allocation3 + $0x10] sm:$0xff] %vm365, %v1433
        %1450 = vst.msk [vmem:[#allocation3 + $0x18] sm:$0xff] %vm365, %v1434
        %1451 = vst.msk [vmem:[#allocation3 + $0x20] sm:$0xff] %vm365, %v1435
        %1452 = vst.msk [vmem:[#allocation3 + $0x28] sm:$0xff] %vm365, %v1436
        %1453 = vst.msk [vmem:[#allocation3 + $0x30] sm:$0xff] %vm365, %v1437
        %1454 = vst.msk [vmem:[#allocation3 + $0x38] sm:$0xff] %vm365, %v1438
        %1455 = vst.msk [vmem:[#allocation3 + $0x40] sm:$0xff] %vm365, %v1439
        %1456 = vst.msk [vmem:[#allocation3 + $0x48] sm:$0xff] %vm365, %v1440
        %1457 = vst.msk [vmem:[#allocation3 + $0x50] sm:$0xff] %vm365, %v1441
        %1458 = vst.msk [vmem:[#allocation3 + $0x58] sm:$0xff] %vm365, %v1442
        %1459 = vst.msk [vmem:[#allocation3 + $0x60] sm:$0xff] %vm365, %v1443
        %1460 = vst.msk [vmem:[#allocation3 + $0x68] sm:$0xff] %vm365, %v1444
        %1461 = vst.msk [vmem:[#allocation3 + $0x70] sm:$0xff] %vm365, %v1445
        %1462 = vst.msk [vmem:[#allocation3 + $0x78] sm:$0xff] %vm365, %v1446
        %v1463 = vld [vmem:[%s413 + $0x1] sm:$0xff]
        %v1464 = vld [vmem:[%s413 + $0x9] sm:$0xff]
        %v1465 = vld [vmem:[%s413 + $0x19] sm:$0xff]
        %v1466 = vld [vmem:[%s413 + $0x21] sm:$0xff]
        %v1467 = vld [vmem:[%s413 + $0x31] sm:$0xff]
        %v1468 = vld [vmem:[%s413 + $0x39] sm:$0xff]
        %v1469 = vld [vmem:[%s413 + $0x49] sm:$0xff]
        %v1470 = vld [vmem:[%s413 + $0x51] sm:$0xff]
        %v1471 = vld [vmem:[%s413 + $0x61] sm:$0xff]
        %v1472 = vld [vmem:[%s413 + $0x69] sm:$0xff]
        %v1473 = vld [vmem:[%s413 + $0x79] sm:$0xff]
        %v1474 = vld [vmem:[%s413 + $0x81] sm:$0xff]
        %v1475 = vld [vmem:[%s413 + $0x91] sm:$0xff]
        %v1476 = vld [vmem:[%s413 + $0x99] sm:$0xff]
        %v1477 = vld [vmem:[%s413 + $0xa9] sm:$0xff]
        %v1478 = vld [vmem:[%s413 + $0xb1] sm:$0xff]
        %s1479 = scalar_lea.vmem %s3, 16
        %v1480 = vld [vmem:[%s1479] sm:$0xf]
        %v1482 = vsel %vm365, %v1463, 0
        %v1485 = vsel %vm365, %v1464, 0
        %v1488 = vsel %vm365, %v1465, 0
        %v1491 = vsel %vm365, %v1466, 0
        %v1494 = vsel %vm365, %v1467, 0
        %v1497 = vsel %vm365, %v1468, 0
        %v1500 = vsel %vm365, %v1469, 0
        %v1503 = vsel %vm365, %v1470, 0
        %v1506 = vsel %vm365, %v1471, 0
        %v1509 = vsel %vm365, %v1472, 0
        %v1512 = vsel %vm365, %v1473, 0
        %v1515 = vsel %vm365, %v1474, 0
        %v1518 = vsel %vm365, %v1475, 0
        %v1521 = vsel %vm365, %v1476, 0
        %v1524 = vsel %vm365, %v1477, 0
        %v1527 = vsel %vm365, %v1478, 0
        %v1530 = vsel %vm512, %v1480, 0
        %1532 = vmatprep.subr.mxu0 0.0
        %1533 = vmatpush1.msra.mxu0 %v1530
        %1534 = vmatprep.subr.mxu0 0.0
        %1535 = vmatpush1.msra.mxu0 0.0
        %1536 = vmatprep.subr.mxu0 0.0
        %1537 = vmatpush1.msra.mxu0 0.0
        %1538 = vmatprep.subr.mxu0 0.0
        %1539 = vmatpush1.msra.mxu0 0.0
        %1540 = vmatprep.subr.mxu0 0.0
        %1541 = vmatpush1.msra.mxu0 0.0
        %1542 = vmatprep.subr.mxu0 0.0
        %1543 = vmatpush1.msra.mxu0 0.0
        %1544 = vmatprep.subr.mxu0 0.0
        %1545 = vmatpush1.msra.mxu0 0.0
        %1546 = vmatprep.subr.mxu0 0.0
        %1547 = vmatpush1.msra.mxu0 0.0
        %1548 = vmatprep.subr.mxu0 0.0
        %1549 = vmatpush1.msra.mxu0 0.0
        %1550 = vmatprep.subr.mxu0 0.0
        %1551 = vmatpush1.msra.mxu0 0.0
        %1552 = vmatprep.subr.mxu0 0.0
        %1553 = vmatpush1.msra.mxu0 0.0
        %1554 = vmatprep.subr.mxu0 0.0
        %1555 = vmatpush1.msra.mxu0 0.0
        %1556 = vmatprep.subr.mxu0 0.0
        %1557 = vmatpush1.msra.mxu0 0.0
        %1558 = vmatprep.subr.mxu0 0.0
        %1559 = vmatpush1.msra.mxu0 0.0
        %1560 = vmatprep.subr.mxu0 0.0
        %1561 = vmatpush1.msra.mxu0 0.0
        %1562 = vmatprep.subr.mxu0 0.0
        %1563 = vmatpush1.msra.mxu0 0.0
        %1564 = vmatprep.subr.mxu0 0.0
        %1565 = vmatpush1.msra.mxu0 0.0
        %1566 = vmatprep.subr.mxu0 0.0
        %1567 = vmatpush1.msra.mxu0 0.0
        %1568 = vmatprep.subr.mxu0 0.0
        %1569 = vmatpush1.msra.mxu0 0.0
        %1570 = vmatprep.subr.mxu0 0.0
        %1571 = vmatpush1.msra.mxu0 0.0
        %1572 = vmatprep.subr.mxu0 0.0
        %1573 = vmatpush1.msra.mxu0 0.0
        %1574 = vmatprep.subr.mxu0 0.0
        %1575 = vmatpush1.msra.mxu0 0.0
        %1576 = vmatprep.subr.mxu0 0.0
        %1577 = vmatpush1.msra.mxu0 0.0
        %1578 = vmatprep.subr.mxu0 0.0
        %1579 = vmatpush1.msra.mxu0 0.0
        %1580 = vmatprep.subr.mxu0 0.0
        %1581 = vmatpush1.msra.mxu0 0.0
        %1582 = vmatprep.subr.mxu0 0.0
        %1583 = vmatpush1.msra.mxu0 0.0
        %1584 = vmatprep.subr.mxu0 0.0
        %1585 = vmatpush1.msra.mxu0 0.0
        %1586 = vmatprep.subr.mxu0 0.0
        %1587 = vmatpush1.msra.mxu0 0.0
        %1588 = vmatprep.subr.mxu0 0.0
        %1589 = vmatpush1.msra.mxu0 0.0
        %1590 = vmatprep.subr.mxu0 0.0
        %1591 = vmatpush1.msra.mxu0 0.0
        %1592 = vmatprep.subr.mxu0 0.0
        %1593 = vmatpush1.msra.mxu0 0.0
        %1594 = vmatprep.subr.mxu0 0.0
        %1595 = vmatpush1.msra.mxu0 0.0
        %1596 = vmatprep.mubr.f32.mxu0 0.0
        %1597 = vmatmul.mubr.f32.gmra.mrb[0].mxu0 %v1482
        %v1598 = vpop.f32.mrb[0].mxu0
        %v1599 = vadd.f32 0.0, %v1598
        %v1600 = vpop.f32.mrb[0].mxu0
        %1601 = vmatprep.mubr.f32.mxu0 0.0
        %1602 = vmatmul.mubr.f32.gmra.mrb[0].mxu0 %v1485
        %v1603 = vpop.f32.mrb[0].mxu0
        %v1604 = vadd.f32 0.0, %v1603
        %v1605 = vpop.f32.mrb[0].mxu0
        %1606 = vmatprep.mubr.f32.mxu0 0.0
        %1607 = vmatmul.mubr.f32.gmra.mrb[0].mxu0 %v1488
        %v1608 = vpop.f32.mrb[0].mxu0
        %v1609 = vadd.f32 0.0, %v1608
        %v1610 = vpop.f32.mrb[0].mxu0
        %1611 = vmatprep.mubr.f32.mxu0 0.0
        %1612 = vmatmul.mubr.f32.gmra.mrb[0].mxu0 %v1491
        %v1613 = vpop.f32.mrb[0].mxu0
        %v1614 = vadd.f32 0.0, %v1613
        %v1615 = vpop.f32.mrb[0].mxu0
        %1616 = vmatprep.mubr.f32.mxu0 0.0
        %1617 = vmatmul.mubr.f32.gmra.mrb[0].mxu0 %v1494
        %v1618 = vpop.f32.mrb[0].mxu0
        %v1619 = vadd.f32 0.0, %v1618
        %v1620 = vpop.f32.mrb[0].mxu0
        %1621 = vmatprep.mubr.f32.mxu0 0.0
        %1622 = vmatmul.mubr.f32.gmra.mrb[0].mxu0 %v1497
        %v1623 = vpop.f32.mrb[0].mxu0
        %v1624 = vadd.f32 0.0, %v1623
        %v1625 = vpop.f32.mrb[0].mxu0
        %1626 = vmatprep.mubr.f32.mxu0 0.0
        %1627 = vmatmul.mubr.f32.gmra.mrb[0].mxu0 %v1500
        %v1628 = vpop.f32.mrb[0].mxu0
        %v1629 = vadd.f32 0.0, %v1628
        %v1630 = vpop.f32.mrb[0].mxu0
        %1631 = vmatprep.mubr.f32.mxu0 0.0
        %1632 = vmatmul.mubr.f32.gmra.mrb[0].mxu0 %v1503
        %v1633 = vpop.f32.mrb[0].mxu0
        %v1634 = vadd.f32 0.0, %v1633
        %v1635 = vpop.f32.mrb[0].mxu0
        %1636 = vmatprep.mubr.f32.mxu0 0.0
        %1637 = vmatmul.mubr.f32.gmra.mrb[0].mxu0 %v1506
        %v1638 = vpop.f32.mrb[0].mxu0
        %v1639 = vadd.f32 0.0, %v1638
        %v1640 = vpop.f32.mrb[0].mxu0
        %1641 = vmatprep.mubr.f32.mxu0 0.0
        %1642 = vmatmul.mubr.f32.gmra.mrb[0].mxu0 %v1509
        %v1643 = vpop.f32.mrb[0].mxu0
        %v1644 = vadd.f32 0.0, %v1643
        %v1645 = vpop.f32.mrb[0].mxu0
        %1646 = vmatprep.mubr.f32.mxu0 0.0
        %1647 = vmatmul.mubr.f32.gmra.mrb[0].mxu0 %v1512
        %v1648 = vpop.f32.mrb[0].mxu0
        %v1649 = vadd.f32 0.0, %v1648
        %v1650 = vpop.f32.mrb[0].mxu0
        %1651 = vmatprep.mubr.f32.mxu0 0.0
        %1652 = vmatmul.mubr.f32.gmra.mrb[0].mxu0 %v1515
        %v1653 = vpop.f32.mrb[0].mxu0
        %v1654 = vadd.f32 0.0, %v1653
        %v1655 = vpop.f32.mrb[0].mxu0
        %1656 = vmatprep.mubr.f32.mxu0 0.0
        %1657 = vmatmul.mubr.f32.gmra.mrb[0].mxu0 %v1518
        %v1658 = vpop.f32.mrb[0].mxu0
        %v1659 = vadd.f32 0.0, %v1658
        %v1660 = vpop.f32.mrb[0].mxu0
        %1661 = vmatprep.mubr.f32.mxu0 0.0
        %1662 = vmatmul.mubr.f32.gmra.mrb[0].mxu0 %v1521
        %v1663 = vpop.f32.mrb[0].mxu0
        %v1664 = vadd.f32 0.0, %v1663
        %v1665 = vpop.f32.mrb[0].mxu0
        %1666 = vmatprep.mubr.f32.mxu0 0.0
        %1667 = vmatmul.mubr.f32.gmra.mrb[0].mxu0 %v1524
        %v1668 = vpop.f32.mrb[0].mxu0
        %v1669 = vadd.f32 0.0, %v1668
        %v1670 = vpop.f32.mrb[0].mxu0
        %1671 = vmatprep.mubr.f32.mxu0 0.0
        %1672 = vmatmul.mubr.f32.gmra.mrb[0].mxu0 %v1527
        %v1673 = vpop.f32.mrb[0].mxu0
        %v1674 = vadd.f32 0.0, %v1673
        %v1675 = vpop.f32.mrb[0].mxu0
        %1676 = vdwg.mxu0
        %v1677 = vld [vmem:[#allocation3] sm:$0xff]
        %v1678 = vld [vmem:[#allocation3 + $0x8] sm:$0xff]
        %v1679 = vld [vmem:[#allocation3 + $0x10] sm:$0xff]
        %v1680 = vld [vmem:[#allocation3 + $0x18] sm:$0xff]
        %v1681 = vld [vmem:[#allocation3 + $0x20] sm:$0xff]
        %v1682 = vld [vmem:[#allocation3 + $0x28] sm:$0xff]
        %v1683 = vld [vmem:[#allocation3 + $0x30] sm:$0xff]
        %v1684 = vld [vmem:[#allocation3 + $0x38] sm:$0xff]
        %v1685 = vld [vmem:[#allocation3 + $0x40] sm:$0xff]
        %v1686 = vld [vmem:[#allocation3 + $0x48] sm:$0xff]
        %v1687 = vld [vmem:[#allocation3 + $0x50] sm:$0xff]
        %v1688 = vld [vmem:[#allocation3 + $0x58] sm:$0xff]
        %v1689 = vld [vmem:[#allocation3 + $0x60] sm:$0xff]
        %v1690 = vld [vmem:[#allocation3 + $0x68] sm:$0xff]
        %v1691 = vld [vmem:[#allocation3 + $0x70] sm:$0xff]
        %v1692 = vld [vmem:[#allocation3 + $0x78] sm:$0xff]
        %v1693 = vadd.f32 %v1677, %v1599
        %v1694 = vadd.f32 %v1678, %v1604
        %v1695 = vadd.f32 %v1679, %v1609
        %v1696 = vadd.f32 %v1680, %v1614
        %v1697 = vadd.f32 %v1681, %v1619
        %v1698 = vadd.f32 %v1682, %v1624
        %v1699 = vadd.f32 %v1683, %v1629
        %v1700 = vadd.f32 %v1684, %v1634
        %v1701 = vadd.f32 %v1685, %v1639
        %v1702 = vadd.f32 %v1686, %v1644
        %v1703 = vadd.f32 %v1687, %v1649
        %v1704 = vadd.f32 %v1688, %v1654
        %v1705 = vadd.f32 %v1689, %v1659
        %v1706 = vadd.f32 %v1690, %v1664
        %v1707 = vadd.f32 %v1691, %v1669
        %v1708 = vadd.f32 %v1692, %v1674
        %1709 = vst.msk [vmem:[#allocation3] sm:$0xff] %vm365, %v1693
        %1710 = vst.msk [vmem:[#allocation3 + $0x8] sm:$0xff] %vm365, %v1694
        %1711 = vst.msk [vmem:[#allocation3 + $0x10] sm:$0xff] %vm365, %v1695
        %1712 = vst.msk [vmem:[#allocation3 + $0x18] sm:$0xff] %vm365, %v1696
        %1713 = vst.msk [vmem:[#allocation3 + $0x20] sm:$0xff] %vm365, %v1697
        %1714 = vst.msk [vmem:[#allocation3 + $0x28] sm:$0xff] %vm365, %v1698
        %1715 = vst.msk [vmem:[#allocation3 + $0x30] sm:$0xff] %vm365, %v1699
        %1716 = vst.msk [vmem:[#allocation3 + $0x38] sm:$0xff] %vm365, %v1700
        %1717 = vst.msk [vmem:[#allocation3 + $0x40] sm:$0xff] %vm365, %v1701
        %1718 = vst.msk [vmem:[#allocation3 + $0x48] sm:$0xff] %vm365, %v1702
        %1719 = vst.msk [vmem:[#allocation3 + $0x50] sm:$0xff] %vm365, %v1703
        %1720 = vst.msk [vmem:[#allocation3 + $0x58] sm:$0xff] %vm365, %v1704
        %1721 = vst.msk [vmem:[#allocation3 + $0x60] sm:$0xff] %vm365, %v1705
        %1722 = vst.msk [vmem:[#allocation3 + $0x68] sm:$0xff] %vm365, %v1706
        %1723 = vst.msk [vmem:[#allocation3 + $0x70] sm:$0xff] %vm365, %v1707
        %1724 = vst.msk [vmem:[#allocation3 + $0x78] sm:$0xff] %vm365, %v1708
        %v1725 = vld [vmem:[%s413 + $0x2] sm:$0xff]
        %v1726 = vld [vmem:[%s413 + $0xa] sm:$0xff]
        %v1727 = vld [vmem:[%s413 + $0x1a] sm:$0xff]
        %v1728 = vld [vmem:[%s413 + $0x22] sm:$0xff]
        %v1729 = vld [vmem:[%s413 + $0x32] sm:$0xff]
        %v1730 = vld [vmem:[%s413 + $0x3a] sm:$0xff]
        %v1731 = vld [vmem:[%s413 + $0x4a] sm:$0xff]
        %v1732 = vld [vmem:[%s413 + $0x52] sm:$0xff]
        %v1733 = vld [vmem:[%s413 + $0x62] sm:$0xff]
        %v1734 = vld [vmem:[%s413 + $0x6a] sm:$0xff]
        %v1735 = vld [vmem:[%s413 + $0x7a] sm:$0xff]
        %v1736 = vld [vmem:[%s413 + $0x82] sm:$0xff]
        %v1737 = vld [vmem:[%s413 + $0x92] sm:$0xff]
        %v1738 = vld [vmem:[%s413 + $0x9a] sm:$0xff]
        %v1739 = vld [vmem:[%s413 + $0xaa] sm:$0xff]
        %v1740 = vld [vmem:[%s413 + $0xb2] sm:$0xff]
        %s1741 = scalar_lea.vmem %s3, 20
        %v1742 = vld [vmem:[%s1741] sm:$0xf]
        %v1744 = vsel %vm365, %v1725, 0
        %v1747 = vsel %vm365, %v1726, 0
        %v1750 = vsel %vm365, %v1727, 0
        %v1753 = vsel %vm365, %v1728, 0
        %v1756 = vsel %vm365, %v1729, 0
        %v1759 = vsel %vm365, %v1730, 0
        %v1762 = vsel %vm365, %v1731, 0
        %v1765 = vsel %vm365, %v1732, 0
        %v1768 = vsel %vm365, %v1733, 0
        %v1771 = vsel %vm365, %v1734, 0
        %v1774 = vsel %vm365, %v1735, 0
        %v1777 = vsel %vm365, %v1736, 0
        %v1780 = vsel %vm365, %v1737, 0
        %v1783 = vsel %vm365, %v1738, 0
        %v1786 = vsel %vm365, %v1739, 0
        %v1789 = vsel %vm365, %v1740, 0
        %v1792 = vsel %vm512, %v1742, 0
        %1794 = vmatprep.subr.mxu0 0.0
        %1795 = vmatpush1.msra.mxu0 %v1792
        %1796 = vmatprep.subr.mxu0 0.0
        %1797 = vmatpush1.msra.mxu0 0.0
        %1798 = vmatprep.subr.mxu0 0.0
        %1799 = vmatpush1.msra.mxu0 0.0
        %1800 = vmatprep.subr.mxu0 0.0
        %1801 = vmatpush1.msra.mxu0 0.0
        %1802 = vmatprep.subr.mxu0 0.0
        %1803 = vmatpush1.msra.mxu0 0.0
        %1804 = vmatprep.subr.mxu0 0.0
        %1805 = vmatpush1.msra.mxu0 0.0
        %1806 = vmatprep.subr.mxu0 0.0
        %1807 = vmatpush1.msra.mxu0 0.0
        %1808 = vmatprep.subr.mxu0 0.0
        %1809 = vmatpush1.msra.mxu0 0.0
        %1810 = vmatprep.subr.mxu0 0.0
        %1811 = vmatpush1.msra.mxu0 0.0
        %1812 = vmatprep.subr.mxu0 0.0
        %1813 = vmatpush1.msra.mxu0 0.0
        %1814 = vmatprep.subr.mxu0 0.0
        %1815 = vmatpush1.msra.mxu0 0.0
        %1816 = vmatprep.subr.mxu0 0.0
        %1817 = vmatpush1.msra.mxu0 0.0
        %1818 = vmatprep.subr.mxu0 0.0
        %1819 = vmatpush1.msra.mxu0 0.0
        %1820 = vmatprep.subr.mxu0 0.0
        %1821 = vmatpush1.msra.mxu0 0.0
        %1822 = vmatprep.subr.mxu0 0.0
        %1823 = vmatpush1.msra.mxu0 0.0
        %1824 = vmatprep.subr.mxu0 0.0
        %1825 = vmatpush1.msra.mxu0 0.0
        %1826 = vmatprep.subr.mxu0 0.0
        %1827 = vmatpush1.msra.mxu0 0.0
        %1828 = vmatprep.subr.mxu0 0.0
        %1829 = vmatpush1.msra.mxu0 0.0
        %1830 = vmatprep.subr.mxu0 0.0
        %1831 = vmatpush1.msra.mxu0 0.0
        %1832 = vmatprep.subr.mxu0 0.0
        %1833 = vmatpush1.msra.mxu0 0.0
        %1834 = vmatprep.subr.mxu0 0.0
        %1835 = vmatpush1.msra.mxu0 0.0
        %1836 = vmatprep.subr.mxu0 0.0
        %1837 = vmatpush1.msra.mxu0 0.0
        %1838 = vmatprep.subr.mxu0 0.0
        %1839 = vmatpush1.msra.mxu0 0.0
        %1840 = vmatprep.subr.mxu0 0.0
        %1841 = vmatpush1.msra.mxu0 0.0
        %1842 = vmatprep.subr.mxu0 0.0
        %1843 = vmatpush1.msra.mxu0 0.0
        %1844 = vmatprep.subr.mxu0 0.0
        %1845 = vmatpush1.msra.mxu0 0.0
        %1846 = vmatprep.subr.mxu0 0.0
        %1847 = vmatpush1.msra.mxu0 0.0
        %1848 = vmatprep.subr.mxu0 0.0
        %1849 = vmatpush1.msra.mxu0 0.0
        %1850 = vmatprep.subr.mxu0 0.0
        %1851 = vmatpush1.msra.mxu0 0.0
        %1852 = vmatprep.subr.mxu0 0.0
        %1853 = vmatpush1.msra.mxu0 0.0
        %1854 = vmatprep.subr.mxu0 0.0
        %1855 = vmatpush1.msra.mxu0 0.0
        %1856 = vmatprep.subr.mxu0 0.0
        %1857 = vmatpush1.msra.mxu0 0.0
        %1858 = vmatprep.mubr.f32.mxu0 0.0
        %1859 = vmatmul.mubr.f32.gmra.mrb[0].mxu0 %v1744
        %v1860 = vpop.f32.mrb[0].mxu0
        %v1861 = vadd.f32 0.0, %v1860
        %v1862 = vpop.f32.mrb[0].mxu0
        %1863 = vmatprep.mubr.f32.mxu0 0.0
        %1864 = vmatmul.mubr.f32.gmra.mrb[0].mxu0 %v1747
        %v1865 = vpop.f32.mrb[0].mxu0
        %v1866 = vadd.f32 0.0, %v1865
        %v1867 = vpop.f32.mrb[0].mxu0
        %1868 = vmatprep.mubr.f32.mxu0 0.0
        %1869 = vmatmul.mubr.f32.gmra.mrb[0].mxu0 %v1750
        %v1870 = vpop.f32.mrb[0].mxu0
        %v1871 = vadd.f32 0.0, %v1870
        %v1872 = vpop.f32.mrb[0].mxu0
        %1873 = vmatprep.mubr.f32.mxu0 0.0
        %1874 = vmatmul.mubr.f32.gmra.mrb[0].mxu0 %v1753
        %v1875 = vpop.f32.mrb[0].mxu0
        %v1876 = vadd.f32 0.0, %v1875
        %v1877 = vpop.f32.mrb[0].mxu0
        %1878 = vmatprep.mubr.f32.mxu0 0.0
        %1879 = vmatmul.mubr.f32.gmra.mrb[0].mxu0 %v1756
        %v1880 = vpop.f32.mrb[0].mxu0
        %v1881 = vadd.f32 0.0, %v1880
        %v1882 = vpop.f32.mrb[0].mxu0
        %1883 = vmatprep.mubr.f32.mxu0 0.0
        %1884 = vmatmul.mubr.f32.gmra.mrb[0].mxu0 %v1759
        %v1885 = vpop.f32.mrb[0].mxu0
        %v1886 = vadd.f32 0.0, %v1885
        %v1887 = vpop.f32.mrb[0].mxu0
        %1888 = vmatprep.mubr.f32.mxu0 0.0
        %1889 = vmatmul.mubr.f32.gmra.mrb[0].mxu0 %v1762
        %v1890 = vpop.f32.mrb[0].mxu0
        %v1891 = vadd.f32 0.0, %v1890
        %v1892 = vpop.f32.mrb[0].mxu0
        %1893 = vmatprep.mubr.f32.mxu0 0.0
        %1894 = vmatmul.mubr.f32.gmra.mrb[0].mxu0 %v1765
        %v1895 = vpop.f32.mrb[0].mxu0
        %v1896 = vadd.f32 0.0, %v1895
        %v1897 = vpop.f32.mrb[0].mxu0
        %1898 = vmatprep.mubr.f32.mxu0 0.0
        %1899 = vmatmul.mubr.f32.gmra.mrb[0].mxu0 %v1768
        %v1900 = vpop.f32.mrb[0].mxu0
        %v1901 = vadd.f32 0.0, %v1900
        %v1902 = vpop.f32.mrb[0].mxu0
        %1903 = vmatprep.mubr.f32.mxu0 0.0
        %1904 = vmatmul.mubr.f32.gmra.mrb[0].mxu0 %v1771
        %v1905 = vpop.f32.mrb[0].mxu0
        %v1906 = vadd.f32 0.0, %v1905
        %v1907 = vpop.f32.mrb[0].mxu0
        %1908 = vmatprep.mubr.f32.mxu0 0.0
        %1909 = vmatmul.mubr.f32.gmra.mrb[0].mxu0 %v1774
        %v1910 = vpop.f32.mrb[0].mxu0
        %v1911 = vadd.f32 0.0, %v1910
        %v1912 = vpop.f32.mrb[0].mxu0
        %1913 = vmatprep.mubr.f32.mxu0 0.0
        %1914 = vmatmul.mubr.f32.gmra.mrb[0].mxu0 %v1777
        %v1915 = vpop.f32.mrb[0].mxu0
        %v1916 = vadd.f32 0.0, %v1915
        %v1917 = vpop.f32.mrb[0].mxu0
        %1918 = vmatprep.mubr.f32.mxu0 0.0
        %1919 = vmatmul.mubr.f32.gmra.mrb[0].mxu0 %v1780
        %v1920 = vpop.f32.mrb[0].mxu0
        %v1921 = vadd.f32 0.0, %v1920
        %v1922 = vpop.f32.mrb[0].mxu0
        %1923 = vmatprep.mubr.f32.mxu0 0.0
        %1924 = vmatmul.mubr.f32.gmra.mrb[0].mxu0 %v1783
        %v1925 = vpop.f32.mrb[0].mxu0
        %v1926 = vadd.f32 0.0, %v1925
        %v1927 = vpop.f32.mrb[0].mxu0
        %1928 = vmatprep.mubr.f32.mxu0 0.0
        %1929 = vmatmul.mubr.f32.gmra.mrb[0].mxu0 %v1786
        %v1930 = vpop.f32.mrb[0].mxu0
        %v1931 = vadd.f32 0.0, %v1930
        %v1932 = vpop.f32.mrb[0].mxu0
        %1933 = vmatprep.mubr.f32.mxu0 0.0
        %1934 = vmatmul.mubr.f32.gmra.mrb[0].mxu0 %v1789
        %v1935 = vpop.f32.mrb[0].mxu0
        %v1936 = vadd.f32 0.0, %v1935
        %v1937 = vpop.f32.mrb[0].mxu0
        %1938 = vdwg.mxu0
        %v1939 = vld [vmem:[#allocation3] sm:$0xff]
        %v1940 = vld [vmem:[#allocation3 + $0x8] sm:$0xff]
        %v1941 = vld [vmem:[#allocation3 + $0x10] sm:$0xff]
        %v1942 = vld [vmem:[#allocation3 + $0x18] sm:$0xff]
        %v1943 = vld [vmem:[#allocation3 + $0x20] sm:$0xff]
        %v1944 = vld [vmem:[#allocation3 + $0x28] sm:$0xff]
        %v1945 = vld [vmem:[#allocation3 + $0x30] sm:$0xff]
        %v1946 = vld [vmem:[#allocation3 + $0x38] sm:$0xff]
        %v1947 = vld [vmem:[#allocation3 + $0x40] sm:$0xff]
        %v1948 = vld [vmem:[#allocation3 + $0x48] sm:$0xff]
        %v1949 = vld [vmem:[#allocation3 + $0x50] sm:$0xff]
        %v1950 = vld [vmem:[#allocation3 + $0x58] sm:$0xff]
        %v1951 = vld [vmem:[#allocation3 + $0x60] sm:$0xff]
        %v1952 = vld [vmem:[#allocation3 + $0x68] sm:$0xff]
        %v1953 = vld [vmem:[#allocation3 + $0x70] sm:$0xff]
        %v1954 = vld [vmem:[#allocation3 + $0x78] sm:$0xff]
        %v1955 = vadd.f32 %v1939, %v1861
        %v1956 = vadd.f32 %v1940, %v1866
        %v1957 = vadd.f32 %v1941, %v1871
        %v1958 = vadd.f32 %v1942, %v1876
        %v1959 = vadd.f32 %v1943, %v1881
        %v1960 = vadd.f32 %v1944, %v1886
        %v1961 = vadd.f32 %v1945, %v1891
        %v1962 = vadd.f32 %v1946, %v1896
        %v1963 = vadd.f32 %v1947, %v1901
        %v1964 = vadd.f32 %v1948, %v1906
        %v1965 = vadd.f32 %v1949, %v1911
        %v1966 = vadd.f32 %v1950, %v1916
        %v1967 = vadd.f32 %v1951, %v1921
        %v1968 = vadd.f32 %v1952, %v1926
        %v1969 = vadd.f32 %v1953, %v1931
        %v1970 = vadd.f32 %v1954, %v1936
        %1971 = vst.msk [vmem:[#allocation3] sm:$0xff] %vm365, %v1955
        %1972 = vst.msk [vmem:[#allocation3 + $0x8] sm:$0xff] %vm365, %v1956
        %1973 = vst.msk [vmem:[#allocation3 + $0x10] sm:$0xff] %vm365, %v1957
        %1974 = vst.msk [vmem:[#allocation3 + $0x18] sm:$0xff] %vm365, %v1958
        %1975 = vst.msk [vmem:[#allocation3 + $0x20] sm:$0xff] %vm365, %v1959
        %1976 = vst.msk [vmem:[#allocation3 + $0x28] sm:$0xff] %vm365, %v1960
        %1977 = vst.msk [vmem:[#allocation3 + $0x30] sm:$0xff] %vm365, %v1961
        %1978 = vst.msk [vmem:[#allocation3 + $0x38] sm:$0xff] %vm365, %v1962
        %1979 = vst.msk [vmem:[#allocation3 + $0x40] sm:$0xff] %vm365, %v1963
        %1980 = vst.msk [vmem:[#allocation3 + $0x48] sm:$0xff] %vm365, %v1964
        %1981 = vst.msk [vmem:[#allocation3 + $0x50] sm:$0xff] %vm365, %v1965
        %1982 = vst.msk [vmem:[#allocation3 + $0x58] sm:$0xff] %vm365, %v1966
        %1983 = vst.msk [vmem:[#allocation3 + $0x60] sm:$0xff] %vm365, %v1967
        %1984 = vst.msk [vmem:[#allocation3 + $0x68] sm:$0xff] %vm365, %v1968
        %1985 = vst.msk [vmem:[#allocation3 + $0x70] sm:$0xff] %vm365, %v1969
        %1986 = vst.msk [vmem:[#allocation3 + $0x78] sm:$0xff] %vm365, %v1970
        %s1987 = scalar_lea.vmem [#allocation2], 48
        %v1988 = vld [vmem:[%s1987] sm:$0xff]
        %v1989 = vld [vmem:[%s1987 + $0x8] sm:$0xff]
        %v1990 = vld [vmem:[%s1987 + $0x18] sm:$0xff]
        %v1991 = vld [vmem:[%s1987 + $0x20] sm:$0xff]
        %v1992 = vld [vmem:[%s1987 + $0x30] sm:$0xff]
        %v1993 = vld [vmem:[%s1987 + $0x38] sm:$0xff]
        %v1994 = vld [vmem:[%s1987 + $0x48] sm:$0xff]
        %v1995 = vld [vmem:[%s1987 + $0x50] sm:$0xff]
        %v1996 = vld [vmem:[%s1987 + $0x60] sm:$0xff]
        %v1997 = vld [vmem:[%s1987 + $0x68] sm:$0xff]
        %v1998 = vld [vmem:[%s1987 + $0x78] sm:$0xff]
        %v1999 = vld [vmem:[%s1987 + $0x80] sm:$0xff]
        %v2000 = vld [vmem:[%s1987 + $0x90] sm:$0xff]
        %v2001 = vld [vmem:[%s1987 + $0x98] sm:$0xff]
        %v2002 = vld [vmem:[%s1987 + $0xa8] sm:$0xff]
        %v2003 = vld [vmem:[%s1987 + $0xb0] sm:$0xff]
        %s2004 = scalar_lea.vmem %s3, 24
        %v2005 = vld [vmem:[%s2004] sm:$0xf]
        %v2007 = vsel %vm365, %v1988, 0
        %v2010 = vsel %vm365, %v1989, 0
        %v2013 = vsel %vm365, %v1990, 0
        %v2016 = vsel %vm365, %v1991, 0
        %v2019 = vsel %vm365, %v1992, 0
        %v2022 = vsel %vm365, %v1993, 0
        %v2025 = vsel %vm365, %v1994, 0
        %v2028 = vsel %vm365, %v1995, 0
        %v2031 = vsel %vm365, %v1996, 0
        %v2034 = vsel %vm365, %v1997, 0
        %v2037 = vsel %vm365, %v1998, 0
        %v2040 = vsel %vm365, %v1999, 0
        %v2043 = vsel %vm365, %v2000, 0
        %v2046 = vsel %vm365, %v2001, 0
        %v2049 = vsel %vm365, %v2002, 0
        %v2052 = vsel %vm365, %v2003, 0
        %v2055 = vsel %vm512, %v2005, 0
        %2057 = vmatprep.subr.mxu0 0.0
        %2058 = vmatpush1.msra.mxu0 %v2055
        %2059 = vmatprep.subr.mxu0 0.0
        %2060 = vmatpush1.msra.mxu0 0.0
        %2061 = vmatprep.subr.mxu0 0.0
        %2062 = vmatpush1.msra.mxu0 0.0
        %2063 = vmatprep.subr.mxu0 0.0
        %2064 = vmatpush1.msra.mxu0 0.0
        %2065 = vmatprep.subr.mxu0 0.0
        %2066 = vmatpush1.msra.mxu0 0.0
        %2067 = vmatprep.subr.mxu0 0.0
        %2068 = vmatpush1.msra.mxu0 0.0
        %2069 = vmatprep.subr.mxu0 0.0
        %2070 = vmatpush1.msra.mxu0 0.0
        %2071 = vmatprep.subr.mxu0 0.0
        %2072 = vmatpush1.msra.mxu0 0.0
        %2073 = vmatprep.subr.mxu0 0.0
        %2074 = vmatpush1.msra.mxu0 0.0
        %2075 = vmatprep.subr.mxu0 0.0
        %2076 = vmatpush1.msra.mxu0 0.0
        %2077 = vmatprep.subr.mxu0 0.0
        %2078 = vmatpush1.msra.mxu0 0.0
        %2079 = vmatprep.subr.mxu0 0.0
        %2080 = vmatpush1.msra.mxu0 0.0
        %2081 = vmatprep.subr.mxu0 0.0
        %2082 = vmatpush1.msra.mxu0 0.0
        %2083 = vmatprep.subr.mxu0 0.0
        %2084 = vmatpush1.msra.mxu0 0.0
        %2085 = vmatprep.subr.mxu0 0.0
        %2086 = vmatpush1.msra.mxu0 0.0
        %2087 = vmatprep.subr.mxu0 0.0
        %2088 = vmatpush1.msra.mxu0 0.0
        %2089 = vmatprep.subr.mxu0 0.0
        %2090 = vmatpush1.msra.mxu0 0.0
        %2091 = vmatprep.subr.mxu0 0.0
        %2092 = vmatpush1.msra.mxu0 0.0
        %2093 = vmatprep.subr.mxu0 0.0
        %2094 = vmatpush1.msra.mxu0 0.0
        %2095 = vmatprep.subr.mxu0 0.0
        %2096 = vmatpush1.msra.mxu0 0.0
        %2097 = vmatprep.subr.mxu0 0.0
        %2098 = vmatpush1.msra.mxu0 0.0
        %2099 = vmatprep.subr.mxu0 0.0
        %2100 = vmatpush1.msra.mxu0 0.0
        %2101 = vmatprep.subr.mxu0 0.0
        %2102 = vmatpush1.msra.mxu0 0.0
        %2103 = vmatprep.subr.mxu0 0.0
        %2104 = vmatpush1.msra.mxu0 0.0
        %2105 = vmatprep.subr.mxu0 0.0
        %2106 = vmatpush1.msra.mxu0 0.0
        %2107 = vmatprep.subr.mxu0 0.0
        %2108 = vmatpush1.msra.mxu0 0.0
        %2109 = vmatprep.subr.mxu0 0.0
        %2110 = vmatpush1.msra.mxu0 0.0
        %2111 = vmatprep.subr.mxu0 0.0
        %2112 = vmatpush1.msra.mxu0 0.0
        %2113 = vmatprep.subr.mxu0 0.0
        %2114 = vmatpush1.msra.mxu0 0.0
        %2115 = vmatprep.subr.mxu0 0.0
        %2116 = vmatpush1.msra.mxu0 0.0
        %2117 = vmatprep.subr.mxu0 0.0
        %2118 = vmatpush1.msra.mxu0 0.0
        %2119 = vmatprep.subr.mxu0 0.0
        %2120 = vmatpush1.msra.mxu0 0.0
        %2121 = vmatprep.mubr.f32.mxu0 0.0
        %2122 = vmatmul.mubr.f32.gmra.mrb[0].mxu0 %v2007
        %v2123 = vpop.f32.mrb[0].mxu0
        %v2124 = vadd.f32 0.0, %v2123
        %v2125 = vpop.f32.mrb[0].mxu0
        %2126 = vmatprep.mubr.f32.mxu0 0.0
        %2127 = vmatmul.mubr.f32.gmra.mrb[0].mxu0 %v2010
        %v2128 = vpop.f32.mrb[0].mxu0
        %v2129 = vadd.f32 0.0, %v2128
        %v2130 = vpop.f32.mrb[0].mxu0
        %2131 = vmatprep.mubr.f32.mxu0 0.0
        %2132 = vmatmul.mubr.f32.gmra.mrb[0].mxu0 %v2013
        %v2133 = vpop.f32.mrb[0].mxu0
        %v2134 = vadd.f32 0.0, %v2133
        %v2135 = vpop.f32.mrb[0].mxu0
        %2136 = vmatprep.mubr.f32.mxu0 0.0
        %2137 = vmatmul.mubr.f32.gmra.mrb[0].mxu0 %v2016
        %v2138 = vpop.f32.mrb[0].mxu0
        %v2139 = vadd.f32 0.0, %v2138
        %v2140 = vpop.f32.mrb[0].mxu0
        %2141 = vmatprep.mubr.f32.mxu0 0.0
        %2142 = vmatmul.mubr.f32.gmra.mrb[0].mxu0 %v2019
        %v2143 = vpop.f32.mrb[0].mxu0
        %v2144 = vadd.f32 0.0, %v2143
        %v2145 = vpop.f32.mrb[0].mxu0
        %2146 = vmatprep.mubr.f32.mxu0 0.0
        %2147 = vmatmul.mubr.f32.gmra.mrb[0].mxu0 %v2022
        %v2148 = vpop.f32.mrb[0].mxu0
        %v2149 = vadd.f32 0.0, %v2148
        %v2150 = vpop.f32.mrb[0].mxu0
        %2151 = vmatprep.mubr.f32.mxu0 0.0
        %2152 = vmatmul.mubr.f32.gmra.mrb[0].mxu0 %v2025
        %v2153 = vpop.f32.mrb[0].mxu0
        %v2154 = vadd.f32 0.0, %v2153
        %v2155 = vpop.f32.mrb[0].mxu0
        %2156 = vmatprep.mubr.f32.mxu0 0.0
        %2157 = vmatmul.mubr.f32.gmra.mrb[0].mxu0 %v2028
        %v2158 = vpop.f32.mrb[0].mxu0
        %v2159 = vadd.f32 0.0, %v2158
        %v2160 = vpop.f32.mrb[0].mxu0
        %2161 = vmatprep.mubr.f32.mxu0 0.0
        %2162 = vmatmul.mubr.f32.gmra.mrb[0].mxu0 %v2031
        %v2163 = vpop.f32.mrb[0].mxu0
        %v2164 = vadd.f32 0.0, %v2163
        %v2165 = vpop.f32.mrb[0].mxu0
        %2166 = vmatprep.mubr.f32.mxu0 0.0
        %2167 = vmatmul.mubr.f32.gmra.mrb[0].mxu0 %v2034
        %v2168 = vpop.f32.mrb[0].mxu0
        %v2169 = vadd.f32 0.0, %v2168
        %v2170 = vpop.f32.mrb[0].mxu0
        %2171 = vmatprep.mubr.f32.mxu0 0.0
        %2172 = vmatmul.mubr.f32.gmra.mrb[0].mxu0 %v2037
        %v2173 = vpop.f32.mrb[0].mxu0
        %v2174 = vadd.f32 0.0, %v2173
        %v2175 = vpop.f32.mrb[0].mxu0
        %2176 = vmatprep.mubr.f32.mxu0 0.0
        %2177 = vmatmul.mubr.f32.gmra.mrb[0].mxu0 %v2040
        %v2178 = vpop.f32.mrb[0].mxu0
        %v2179 = vadd.f32 0.0, %v2178
        %v2180 = vpop.f32.mrb[0].mxu0
        %2181 = vmatprep.mubr.f32.mxu0 0.0
        %2182 = vmatmul.mubr.f32.gmra.mrb[0].mxu0 %v2043
        %v2183 = vpop.f32.mrb[0].mxu0
        %v2184 = vadd.f32 0.0, %v2183
        %v2185 = vpop.f32.mrb[0].mxu0
        %2186 = vmatprep.mubr.f32.mxu0 0.0
        %2187 = vmatmul.mubr.f32.gmra.mrb[0].mxu0 %v2046
        %v2188 = vpop.f32.mrb[0].mxu0
        %v2189 = vadd.f32 0.0, %v2188
        %v2190 = vpop.f32.mrb[0].mxu0
        %2191 = vmatprep.mubr.f32.mxu0 0.0
        %2192 = vmatmul.mubr.f32.gmra.mrb[0].mxu0 %v2049
        %v2193 = vpop.f32.mrb[0].mxu0
        %v2194 = vadd.f32 0.0, %v2193
        %v2195 = vpop.f32.mrb[0].mxu0
        %2196 = vmatprep.mubr.f32.mxu0 0.0
        %2197 = vmatmul.mubr.f32.gmra.mrb[0].mxu0 %v2052
        %v2198 = vpop.f32.mrb[0].mxu0
        %v2199 = vadd.f32 0.0, %v2198
        %v2200 = vpop.f32.mrb[0].mxu0
        %2201 = vdwg.mxu0
        %v2202 = vld [vmem:[#allocation3] sm:$0xff]
        %v2203 = vld [vmem:[#allocation3 + $0x8] sm:$0xff]
        %v2204 = vld [vmem:[#allocation3 + $0x10] sm:$0xff]
        %v2205 = vld [vmem:[#allocation3 + $0x18] sm:$0xff]
        %v2206 = vld [vmem:[#allocation3 + $0x20] sm:$0xff]
        %v2207 = vld [vmem:[#allocation3 + $0x28] sm:$0xff]
        %v2208 = vld [vmem:[#allocation3 + $0x30] sm:$0xff]
        %v2209 = vld [vmem:[#allocation3 + $0x38] sm:$0xff]
        %v2210 = vld [vmem:[#allocation3 + $0x40] sm:$0xff]
        %v2211 = vld [vmem:[#allocation3 + $0x48] sm:$0xff]
        %v2212 = vld [vmem:[#allocation3 + $0x50] sm:$0xff]
        %v2213 = vld [vmem:[#allocation3 + $0x58] sm:$0xff]
        %v2214 = vld [vmem:[#allocation3 + $0x60] sm:$0xff]
        %v2215 = vld [vmem:[#allocation3 + $0x68] sm:$0xff]
        %v2216 = vld [vmem:[#allocation3 + $0x70] sm:$0xff]
        %v2217 = vld [vmem:[#allocation3 + $0x78] sm:$0xff]
        %v2218 = vadd.f32 %v2202, %v2124
        %v2219 = vadd.f32 %v2203, %v2129
        %v2220 = vadd.f32 %v2204, %v2134
        %v2221 = vadd.f32 %v2205, %v2139
        %v2222 = vadd.f32 %v2206, %v2144
        %v2223 = vadd.f32 %v2207, %v2149
        %v2224 = vadd.f32 %v2208, %v2154
        %v2225 = vadd.f32 %v2209, %v2159
        %v2226 = vadd.f32 %v2210, %v2164
        %v2227 = vadd.f32 %v2211, %v2169
        %v2228 = vadd.f32 %v2212, %v2174
        %v2229 = vadd.f32 %v2213, %v2179
        %v2230 = vadd.f32 %v2214, %v2184
        %v2231 = vadd.f32 %v2215, %v2189
        %v2232 = vadd.f32 %v2216, %v2194
        %v2233 = vadd.f32 %v2217, %v2199
        %2234 = vst.msk [vmem:[#allocation3] sm:$0xff] %vm365, %v2218
        %2235 = vst.msk [vmem:[#allocation3 + $0x8] sm:$0xff] %vm365, %v2219
        %2236 = vst.msk [vmem:[#allocation3 + $0x10] sm:$0xff] %vm365, %v2220
        %2237 = vst.msk [vmem:[#allocation3 + $0x18] sm:$0xff] %vm365, %v2221
        %2238 = vst.msk [vmem:[#allocation3 + $0x20] sm:$0xff] %vm365, %v2222
        %2239 = vst.msk [vmem:[#allocation3 + $0x28] sm:$0xff] %vm365, %v2223
        %2240 = vst.msk [vmem:[#allocation3 + $0x30] sm:$0xff] %vm365, %v2224
        %2241 = vst.msk [vmem:[#allocation3 + $0x38] sm:$0xff] %vm365, %v2225
        %2242 = vst.msk [vmem:[#allocation3 + $0x40] sm:$0xff] %vm365, %v2226
        %2243 = vst.msk [vmem:[#allocation3 + $0x48] sm:$0xff] %vm365, %v2227
        %2244 = vst.msk [vmem:[#allocation3 + $0x50] sm:$0xff] %vm365, %v2228
        %2245 = vst.msk [vmem:[#allocation3 + $0x58] sm:$0xff] %vm365, %v2229
        %2246 = vst.msk [vmem:[#allocation3 + $0x60] sm:$0xff] %vm365, %v2230
        %2247 = vst.msk [vmem:[#allocation3 + $0x68] sm:$0xff] %vm365, %v2231
        %2248 = vst.msk [vmem:[#allocation3 + $0x70] sm:$0xff] %vm365, %v2232
        %2249 = vst.msk [vmem:[#allocation3 + $0x78] sm:$0xff] %vm365, %v2233
        %v2250 = vld [vmem:[%s1987 + $0x1] sm:$0xff]
        %v2251 = vld [vmem:[%s1987 + $0x9] sm:$0xff]
        %v2252 = vld [vmem:[%s1987 + $0x19] sm:$0xff]
        %v2253 = vld [vmem:[%s1987 + $0x21] sm:$0xff]
        %v2254 = vld [vmem:[%s1987 + $0x31] sm:$0xff]
        %v2255 = vld [vmem:[%s1987 + $0x39] sm:$0xff]
        %v2256 = vld [vmem:[%s1987 + $0x49] sm:$0xff]
        %v2257 = vld [vmem:[%s1987 + $0x51] sm:$0xff]
        %v2258 = vld [vmem:[%s1987 + $0x61] sm:$0xff]
        %v2259 = vld [vmem:[%s1987 + $0x69] sm:$0xff]
        %v2260 = vld [vmem:[%s1987 + $0x79] sm:$0xff]
        %v2261 = vld [vmem:[%s1987 + $0x81] sm:$0xff]
        %v2262 = vld [vmem:[%s1987 + $0x91] sm:$0xff]
        %v2263 = vld [vmem:[%s1987 + $0x99] sm:$0xff]
        %v2264 = vld [vmem:[%s1987 + $0xa9] sm:$0xff]
        %v2265 = vld [vmem:[%s1987 + $0xb1] sm:$0xff]
        %s2266 = scalar_lea.vmem %s3, 28
        %v2267 = vld [vmem:[%s2266] sm:$0xf]
        %v2269 = vsel %vm365, %v2250, 0
        %v2272 = vsel %vm365, %v2251, 0
        %v2275 = vsel %vm365, %v2252, 0
        %v2278 = vsel %vm365, %v2253, 0
        %v2281 = vsel %vm365, %v2254, 0
        %v2284 = vsel %vm365, %v2255, 0
        %v2287 = vsel %vm365, %v2256, 0
        %v2290 = vsel %vm365, %v2257, 0
        %v2293 = vsel %vm365, %v2258, 0
        %v2296 = vsel %vm365, %v2259, 0
        %v2299 = vsel %vm365, %v2260, 0
        %v2302 = vsel %vm365, %v2261, 0
        %v2305 = vsel %vm365, %v2262, 0
        %v2308 = vsel %vm365, %v2263, 0
        %v2311 = vsel %vm365, %v2264, 0
        %v2314 = vsel %vm365, %v2265, 0
        %v2317 = vsel %vm512, %v2267, 0
        %2319 = vmatprep.subr.mxu0 0.0
        %2320 = vmatpush1.msra.mxu0 %v2317
        %2321 = vmatprep.subr.mxu0 0.0
        %2322 = vmatpush1.msra.mxu0 0.0
        %2323 = vmatprep.subr.mxu0 0.0
        %2324 = vmatpush1.msra.mxu0 0.0
        %2325 = vmatprep.subr.mxu0 0.0
        %2326 = vmatpush1.msra.mxu0 0.0
        %2327 = vmatprep.subr.mxu0 0.0
        %2328 = vmatpush1.msra.mxu0 0.0
        %2329 = vmatprep.subr.mxu0 0.0
        %2330 = vmatpush1.msra.mxu0 0.0
        %2331 = vmatprep.subr.mxu0 0.0
        %2332 = vmatpush1.msra.mxu0 0.0
        %2333 = vmatprep.subr.mxu0 0.0
        %2334 = vmatpush1.msra.mxu0 0.0
        %2335 = vmatprep.subr.mxu0 0.0
        %2336 = vmatpush1.msra.mxu0 0.0
        %2337 = vmatprep.subr.mxu0 0.0
        %2338 = vmatpush1.msra.mxu0 0.0
        %2339 = vmatprep.subr.mxu0 0.0
        %2340 = vmatpush1.msra.mxu0 0.0
        %2341 = vmatprep.subr.mxu0 0.0
        %2342 = vmatpush1.msra.mxu0 0.0
        %2343 = vmatprep.subr.mxu0 0.0
        %2344 = vmatpush1.msra.mxu0 0.0
        %2345 = vmatprep.subr.mxu0 0.0
        %2346 = vmatpush1.msra.mxu0 0.0
        %2347 = vmatprep.subr.mxu0 0.0
        %2348 = vmatpush1.msra.mxu0 0.0
        %2349 = vmatprep.subr.mxu0 0.0
        %2350 = vmatpush1.msra.mxu0 0.0
        %2351 = vmatprep.subr.mxu0 0.0
        %2352 = vmatpush1.msra.mxu0 0.0
        %2353 = vmatprep.subr.mxu0 0.0
        %2354 = vmatpush1.msra.mxu0 0.0
        %2355 = vmatprep.subr.mxu0 0.0
        %2356 = vmatpush1.msra.mxu0 0.0
        %2357 = vmatprep.subr.mxu0 0.0
        %2358 = vmatpush1.msra.mxu0 0.0
        %2359 = vmatprep.subr.mxu0 0.0
        %2360 = vmatpush1.msra.mxu0 0.0
        %2361 = vmatprep.subr.mxu0 0.0
        %2362 = vmatpush1.msra.mxu0 0.0
        %2363 = vmatprep.subr.mxu0 0.0
        %2364 = vmatpush1.msra.mxu0 0.0
        %2365 = vmatprep.subr.mxu0 0.0
        %2366 = vmatpush1.msra.mxu0 0.0
        %2367 = vmatprep.subr.mxu0 0.0
        %2368 = vmatpush1.msra.mxu0 0.0
        %2369 = vmatprep.subr.mxu0 0.0
        %2370 = vmatpush1.msra.mxu0 0.0
        %2371 = vmatprep.subr.mxu0 0.0
        %2372 = vmatpush1.msra.mxu0 0.0
        %2373 = vmatprep.subr.mxu0 0.0
        %2374 = vmatpush1.msra.mxu0 0.0
        %2375 = vmatprep.subr.mxu0 0.0
        %2376 = vmatpush1.msra.mxu0 0.0
        %2377 = vmatprep.subr.mxu0 0.0
        %2378 = vmatpush1.msra.mxu0 0.0
        %2379 = vmatprep.subr.mxu0 0.0
        %2380 = vmatpush1.msra.mxu0 0.0
        %2381 = vmatprep.subr.mxu0 0.0
        %2382 = vmatpush1.msra.mxu0 0.0
        %2383 = vmatprep.mubr.f32.mxu0 0.0
        %2384 = vmatmul.mubr.f32.gmra.mrb[0].mxu0 %v2269
        %v2385 = vpop.f32.mrb[0].mxu0
        %v2386 = vadd.f32 0.0, %v2385
        %v2387 = vpop.f32.mrb[0].mxu0
        %2388 = vmatprep.mubr.f32.mxu0 0.0
        %2389 = vmatmul.mubr.f32.gmra.mrb[0].mxu0 %v2272
        %v2390 = vpop.f32.mrb[0].mxu0
        %v2391 = vadd.f32 0.0, %v2390
        %v2392 = vpop.f32.mrb[0].mxu0
        %2393 = vmatprep.mubr.f32.mxu0 0.0
        %2394 = vmatmul.mubr.f32.gmra.mrb[0].mxu0 %v2275
        %v2395 = vpop.f32.mrb[0].mxu0
        %v2396 = vadd.f32 0.0, %v2395
        %v2397 = vpop.f32.mrb[0].mxu0
        %2398 = vmatprep.mubr.f32.mxu0 0.0
        %2399 = vmatmul.mubr.f32.gmra.mrb[0].mxu0 %v2278
        %v2400 = vpop.f32.mrb[0].mxu0
        %v2401 = vadd.f32 0.0, %v2400
        %v2402 = vpop.f32.mrb[0].mxu0
        %2403 = vmatprep.mubr.f32.mxu0 0.0
        %2404 = vmatmul.mubr.f32.gmra.mrb[0].mxu0 %v2281
        %v2405 = vpop.f32.mrb[0].mxu0
        %v2406 = vadd.f32 0.0, %v2405
        %v2407 = vpop.f32.mrb[0].mxu0
        %2408 = vmatprep.mubr.f32.mxu0 0.0
        %2409 = vmatmul.mubr.f32.gmra.mrb[0].mxu0 %v2284
        %v2410 = vpop.f32.mrb[0].mxu0
        %v2411 = vadd.f32 0.0, %v2410
        %v2412 = vpop.f32.mrb[0].mxu0
        %2413 = vmatprep.mubr.f32.mxu0 0.0
        %2414 = vmatmul.mubr.f32.gmra.mrb[0].mxu0 %v2287
        %v2415 = vpop.f32.mrb[0].mxu0
        %v2416 = vadd.f32 0.0, %v2415
        %v2417 = vpop.f32.mrb[0].mxu0
        %2418 = vmatprep.mubr.f32.mxu0 0.0
        %2419 = vmatmul.mubr.f32.gmra.mrb[0].mxu0 %v2290
        %v2420 = vpop.f32.mrb[0].mxu0
        %v2421 = vadd.f32 0.0, %v2420
        %v2422 = vpop.f32.mrb[0].mxu0
        %2423 = vmatprep.mubr.f32.mxu0 0.0
        %2424 = vmatmul.mubr.f32.gmra.mrb[0].mxu0 %v2293
        %v2425 = vpop.f32.mrb[0].mxu0
        %v2426 = vadd.f32 0.0, %v2425
        %v2427 = vpop.f32.mrb[0].mxu0
        %2428 = vmatprep.mubr.f32.mxu0 0.0
        %2429 = vmatmul.mubr.f32.gmra.mrb[0].mxu0 %v2296
        %v2430 = vpop.f32.mrb[0].mxu0
        %v2431 = vadd.f32 0.0, %v2430
        %v2432 = vpop.f32.mrb[0].mxu0
        %2433 = vmatprep.mubr.f32.mxu0 0.0
        %2434 = vmatmul.mubr.f32.gmra.mrb[0].mxu0 %v2299
        %v2435 = vpop.f32.mrb[0].mxu0
        %v2436 = vadd.f32 0.0, %v2435
        %v2437 = vpop.f32.mrb[0].mxu0
        %2438 = vmatprep.mubr.f32.mxu0 0.0
        %2439 = vmatmul.mubr.f32.gmra.mrb[0].mxu0 %v2302
        %v2440 = vpop.f32.mrb[0].mxu0
        %v2441 = vadd.f32 0.0, %v2440
        %v2442 = vpop.f32.mrb[0].mxu0
        %2443 = vmatprep.mubr.f32.mxu0 0.0
        %2444 = vmatmul.mubr.f32.gmra.mrb[0].mxu0 %v2305
        %v2445 = vpop.f32.mrb[0].mxu0
        %v2446 = vadd.f32 0.0, %v2445
        %v2447 = vpop.f32.mrb[0].mxu0
        %2448 = vmatprep.mubr.f32.mxu0 0.0
        %2449 = vmatmul.mubr.f32.gmra.mrb[0].mxu0 %v2308
        %v2450 = vpop.f32.mrb[0].mxu0
        %v2451 = vadd.f32 0.0, %v2450
        %v2452 = vpop.f32.mrb[0].mxu0
        %2453 = vmatprep.mubr.f32.mxu0 0.0
        %2454 = vmatmul.mubr.f32.gmra.mrb[0].mxu0 %v2311
        %v2455 = vpop.f32.mrb[0].mxu0
        %v2456 = vadd.f32 0.0, %v2455
        %v2457 = vpop.f32.mrb[0].mxu0
        %2458 = vmatprep.mubr.f32.mxu0 0.0
        %2459 = vmatmul.mubr.f32.gmra.mrb[0].mxu0 %v2314
        %v2460 = vpop.f32.mrb[0].mxu0
        %v2461 = vadd.f32 0.0, %v2460
        %v2462 = vpop.f32.mrb[0].mxu0
        %2463 = vdwg.mxu0
        %v2464 = vld [vmem:[#allocation3] sm:$0xff]
        %v2465 = vld [vmem:[#allocation3 + $0x8] sm:$0xff]
        %v2466 = vld [vmem:[#allocation3 + $0x10] sm:$0xff]
        %v2467 = vld [vmem:[#allocation3 + $0x18] sm:$0xff]
        %v2468 = vld [vmem:[#allocation3 + $0x20] sm:$0xff]
        %v2469 = vld [vmem:[#allocation3 + $0x28] sm:$0xff]
        %v2470 = vld [vmem:[#allocation3 + $0x30] sm:$0xff]
        %v2471 = vld [vmem:[#allocation3 + $0x38] sm:$0xff]
        %v2472 = vld [vmem:[#allocation3 + $0x40] sm:$0xff]
        %v2473 = vld [vmem:[#allocation3 + $0x48] sm:$0xff]
        %v2474 = vld [vmem:[#allocation3 + $0x50] sm:$0xff]
        %v2475 = vld [vmem:[#allocation3 + $0x58] sm:$0xff]
        %v2476 = vld [vmem:[#allocation3 + $0x60] sm:$0xff]
        %v2477 = vld [vmem:[#allocation3 + $0x68] sm:$0xff]
        %v2478 = vld [vmem:[#allocation3 + $0x70] sm:$0xff]
        %v2479 = vld [vmem:[#allocation3 + $0x78] sm:$0xff]
        %v2480 = vadd.f32 %v2464, %v2386
        %v2481 = vadd.f32 %v2465, %v2391
        %v2482 = vadd.f32 %v2466, %v2396
        %v2483 = vadd.f32 %v2467, %v2401
        %v2484 = vadd.f32 %v2468, %v2406
        %v2485 = vadd.f32 %v2469, %v2411
        %v2486 = vadd.f32 %v2470, %v2416
        %v2487 = vadd.f32 %v2471, %v2421
        %v2488 = vadd.f32 %v2472, %v2426
        %v2489 = vadd.f32 %v2473, %v2431
        %v2490 = vadd.f32 %v2474, %v2436
        %v2491 = vadd.f32 %v2475, %v2441
        %v2492 = vadd.f32 %v2476, %v2446
        %v2493 = vadd.f32 %v2477, %v2451
        %v2494 = vadd.f32 %v2478, %v2456
        %v2495 = vadd.f32 %v2479, %v2461
        %2496 = vst.msk [vmem:[#allocation3] sm:$0xff] %vm365, %v2480
        %2497 = vst.msk [vmem:[#allocation3 + $0x8] sm:$0xff] %vm365, %v2481
        %2498 = vst.msk [vmem:[#allocation3 + $0x10] sm:$0xff] %vm365, %v2482
        %2499 = vst.msk [vmem:[#allocation3 + $0x18] sm:$0xff] %vm365, %v2483
        %2500 = vst.msk [vmem:[#allocation3 + $0x20] sm:$0xff] %vm365, %v2484
        %2501 = vst.msk [vmem:[#allocation3 + $0x28] sm:$0xff] %vm365, %v2485
        %2502 = vst.msk [vmem:[#allocation3 + $0x30] sm:$0xff] %vm365, %v2486
        %2503 = vst.msk [vmem:[#allocation3 + $0x38] sm:$0xff] %vm365, %v2487
        %2504 = vst.msk [vmem:[#allocation3 + $0x40] sm:$0xff] %vm365, %v2488
        %2505 = vst.msk [vmem:[#allocation3 + $0x48] sm:$0xff] %vm365, %v2489
        %2506 = vst.msk [vmem:[#allocation3 + $0x50] sm:$0xff] %vm365, %v2490
        %2507 = vst.msk [vmem:[#allocation3 + $0x58] sm:$0xff] %vm365, %v2491
        %2508 = vst.msk [vmem:[#allocation3 + $0x60] sm:$0xff] %vm365, %v2492
        %2509 = vst.msk [vmem:[#allocation3 + $0x68] sm:$0xff] %vm365, %v2493
        %2510 = vst.msk [vmem:[#allocation3 + $0x70] sm:$0xff] %vm365, %v2494
        %2511 = vst.msk [vmem:[#allocation3 + $0x78] sm:$0xff] %vm365, %v2495
        %v2512 = vld [vmem:[%s1987 + $0x2] sm:$0xff]
        %v2513 = vld [vmem:[%s1987 + $0xa] sm:$0xff]
        %v2514 = vld [vmem:[%s1987 + $0x1a] sm:$0xff]
        %v2515 = vld [vmem:[%s1987 + $0x22] sm:$0xff]
        %v2516 = vld [vmem:[%s1987 + $0x32] sm:$0xff]
        %v2517 = vld [vmem:[%s1987 + $0x3a] sm:$0xff]
        %v2518 = vld [vmem:[%s1987 + $0x4a] sm:$0xff]
        %v2519 = vld [vmem:[%s1987 + $0x52] sm:$0xff]
        %v2520 = vld [vmem:[%s1987 + $0x62] sm:$0xff]
        %v2521 = vld [vmem:[%s1987 + $0x6a] sm:$0xff]
        %v2522 = vld [vmem:[%s1987 + $0x7a] sm:$0xff]
        %v2523 = vld [vmem:[%s1987 + $0x82] sm:$0xff]
        %v2524 = vld [vmem:[%s1987 + $0x92] sm:$0xff]
        %v2525 = vld [vmem:[%s1987 + $0x9a] sm:$0xff]
        %v2526 = vld [vmem:[%s1987 + $0xaa] sm:$0xff]
        %v2527 = vld [vmem:[%s1987 + $0xb2] sm:$0xff]
        %s2528 = scalar_lea.vmem %s3, 32
        %v2529 = vld [vmem:[%s2528] sm:$0xf]
        %v2531 = vsel %vm365, %v2512, 0
        %v2534 = vsel %vm365, %v2513, 0
        %v2537 = vsel %vm365, %v2514, 0
        %v2540 = vsel %vm365, %v2515, 0
        %v2543 = vsel %vm365, %v2516, 0
        %v2546 = vsel %vm365, %v2517, 0
        %v2549 = vsel %vm365, %v2518, 0
        %v2552 = vsel %vm365, %v2519, 0
        %v2555 = vsel %vm365, %v2520, 0
        %v2558 = vsel %vm365, %v2521, 0
        %v2561 = vsel %vm365, %v2522, 0
        %v2564 = vsel %vm365, %v2523, 0
        %v2567 = vsel %vm365, %v2524, 0
        %v2570 = vsel %vm365, %v2525, 0
        %v2573 = vsel %vm365, %v2526, 0
        %v2576 = vsel %vm365, %v2527, 0
        %v2579 = vsel %vm512, %v2529, 0
        %2581 = vmatprep.subr.mxu0 0.0
        %2582 = vmatpush1.msra.mxu0 %v2579
        %2583 = vmatprep.subr.mxu0 0.0
        %2584 = vmatpush1.msra.mxu0 0.0
        %2585 = vmatprep.subr.mxu0 0.0
        %2586 = vmatpush1.msra.mxu0 0.0
        %2587 = vmatprep.subr.mxu0 0.0
        %2588 = vmatpush1.msra.mxu0 0.0
        %2589 = vmatprep.subr.mxu0 0.0
        %2590 = vmatpush1.msra.mxu0 0.0
        %2591 = vmatprep.subr.mxu0 0.0
        %2592 = vmatpush1.msra.mxu0 0.0
        %2593 = vmatprep.subr.mxu0 0.0
        %2594 = vmatpush1.msra.mxu0 0.0
        %2595 = vmatprep.subr.mxu0 0.0
        %2596 = vmatpush1.msra.mxu0 0.0
        %2597 = vmatprep.subr.mxu0 0.0
        %2598 = vmatpush1.msra.mxu0 0.0
        %2599 = vmatprep.subr.mxu0 0.0
        %2600 = vmatpush1.msra.mxu0 0.0
        %2601 = vmatprep.subr.mxu0 0.0
        %2602 = vmatpush1.msra.mxu0 0.0
        %2603 = vmatprep.subr.mxu0 0.0
        %2604 = vmatpush1.msra.mxu0 0.0
        %2605 = vmatprep.subr.mxu0 0.0
        %2606 = vmatpush1.msra.mxu0 0.0
        %2607 = vmatprep.subr.mxu0 0.0
        %2608 = vmatpush1.msra.mxu0 0.0
        %2609 = vmatprep.subr.mxu0 0.0
        %2610 = vmatpush1.msra.mxu0 0.0
        %2611 = vmatprep.subr.mxu0 0.0
        %2612 = vmatpush1.msra.mxu0 0.0
        %2613 = vmatprep.subr.mxu0 0.0
        %2614 = vmatpush1.msra.mxu0 0.0
        %2615 = vmatprep.subr.mxu0 0.0
        %2616 = vmatpush1.msra.mxu0 0.0
        %2617 = vmatprep.subr.mxu0 0.0
        %2618 = vmatpush1.msra.mxu0 0.0
        %2619 = vmatprep.subr.mxu0 0.0
        %2620 = vmatpush1.msra.mxu0 0.0
        %2621 = vmatprep.subr.mxu0 0.0
        %2622 = vmatpush1.msra.mxu0 0.0
        %2623 = vmatprep.subr.mxu0 0.0
        %2624 = vmatpush1.msra.mxu0 0.0
        %2625 = vmatprep.subr.mxu0 0.0
        %2626 = vmatpush1.msra.mxu0 0.0
        %2627 = vmatprep.subr.mxu0 0.0
        %2628 = vmatpush1.msra.mxu0 0.0
        %2629 = vmatprep.subr.mxu0 0.0
        %2630 = vmatpush1.msra.mxu0 0.0
        %2631 = vmatprep.subr.mxu0 0.0
        %2632 = vmatpush1.msra.mxu0 0.0
        %2633 = vmatprep.subr.mxu0 0.0
        %2634 = vmatpush1.msra.mxu0 0.0
        %2635 = vmatprep.subr.mxu0 0.0
        %2636 = vmatpush1.msra.mxu0 0.0
        %2637 = vmatprep.subr.mxu0 0.0
        %2638 = vmatpush1.msra.mxu0 0.0
        %2639 = vmatprep.subr.mxu0 0.0
        %2640 = vmatpush1.msra.mxu0 0.0
        %2641 = vmatprep.subr.mxu0 0.0
        %2642 = vmatpush1.msra.mxu0 0.0
        %2643 = vmatprep.subr.mxu0 0.0
        %2644 = vmatpush1.msra.mxu0 0.0
        %2645 = vmatprep.mubr.f32.mxu0 0.0
        %2646 = vmatmul.mubr.f32.gmra.mrb[0].mxu0 %v2531
        %v2647 = vpop.f32.mrb[0].mxu0
        %v2648 = vadd.f32 0.0, %v2647
        %v2649 = vpop.f32.mrb[0].mxu0
        %2650 = vmatprep.mubr.f32.mxu0 0.0
        %2651 = vmatmul.mubr.f32.gmra.mrb[0].mxu0 %v2534
        %v2652 = vpop.f32.mrb[0].mxu0
        %v2653 = vadd.f32 0.0, %v2652
        %v2654 = vpop.f32.mrb[0].mxu0
        %2655 = vmatprep.mubr.f32.mxu0 0.0
        %2656 = vmatmul.mubr.f32.gmra.mrb[0].mxu0 %v2537
        %v2657 = vpop.f32.mrb[0].mxu0
        %v2658 = vadd.f32 0.0, %v2657
        %v2659 = vpop.f32.mrb[0].mxu0
        %2660 = vmatprep.mubr.f32.mxu0 0.0
        %2661 = vmatmul.mubr.f32.gmra.mrb[0].mxu0 %v2540
        %v2662 = vpop.f32.mrb[0].mxu0
        %v2663 = vadd.f32 0.0, %v2662
        %v2664 = vpop.f32.mrb[0].mxu0
        %2665 = vmatprep.mubr.f32.mxu0 0.0
        %2666 = vmatmul.mubr.f32.gmra.mrb[0].mxu0 %v2543
        %v2667 = vpop.f32.mrb[0].mxu0
        %v2668 = vadd.f32 0.0, %v2667
        %v2669 = vpop.f32.mrb[0].mxu0
        %2670 = vmatprep.mubr.f32.mxu0 0.0
        %2671 = vmatmul.mubr.f32.gmra.mrb[0].mxu0 %v2546
        %v2672 = vpop.f32.mrb[0].mxu0
        %v2673 = vadd.f32 0.0, %v2672
        %v2674 = vpop.f32.mrb[0].mxu0
        %2675 = vmatprep.mubr.f32.mxu0 0.0
        %2676 = vmatmul.mubr.f32.gmra.mrb[0].mxu0 %v2549
        %v2677 = vpop.f32.mrb[0].mxu0
        %v2678 = vadd.f32 0.0, %v2677
        %v2679 = vpop.f32.mrb[0].mxu0
        %2680 = vmatprep.mubr.f32.mxu0 0.0
        %2681 = vmatmul.mubr.f32.gmra.mrb[0].mxu0 %v2552
        %v2682 = vpop.f32.mrb[0].mxu0
        %v2683 = vadd.f32 0.0, %v2682
        %v2684 = vpop.f32.mrb[0].mxu0
        %2685 = vmatprep.mubr.f32.mxu0 0.0
        %2686 = vmatmul.mubr.f32.gmra.mrb[0].mxu0 %v2555
        %v2687 = vpop.f32.mrb[0].mxu0
        %v2688 = vadd.f32 0.0, %v2687
        %v2689 = vpop.f32.mrb[0].mxu0
        %2690 = vmatprep.mubr.f32.mxu0 0.0
        %2691 = vmatmul.mubr.f32.gmra.mrb[0].mxu0 %v2558
        %v2692 = vpop.f32.mrb[0].mxu0
        %v2693 = vadd.f32 0.0, %v2692
        %v2694 = vpop.f32.mrb[0].mxu0
        %2695 = vmatprep.mubr.f32.mxu0 0.0
        %2696 = vmatmul.mubr.f32.gmra.mrb[0].mxu0 %v2561
        %v2697 = vpop.f32.mrb[0].mxu0
        %v2698 = vadd.f32 0.0, %v2697
        %v2699 = vpop.f32.mrb[0].mxu0
        %2700 = vmatprep.mubr.f32.mxu0 0.0
        %2701 = vmatmul.mubr.f32.gmra.mrb[0].mxu0 %v2564
        %v2702 = vpop.f32.mrb[0].mxu0
        %v2703 = vadd.f32 0.0, %v2702
        %v2704 = vpop.f32.mrb[0].mxu0
        %2705 = vmatprep.mubr.f32.mxu0 0.0
        %2706 = vmatmul.mubr.f32.gmra.mrb[0].mxu0 %v2567
        %v2707 = vpop.f32.mrb[0].mxu0
        %v2708 = vadd.f32 0.0, %v2707
        %v2709 = vpop.f32.mrb[0].mxu0
        %2710 = vmatprep.mubr.f32.mxu0 0.0
        %2711 = vmatmul.mubr.f32.gmra.mrb[0].mxu0 %v2570
        %v2712 = vpop.f32.mrb[0].mxu0
        %v2713 = vadd.f32 0.0, %v2712
        %v2714 = vpop.f32.mrb[0].mxu0
        %2715 = vmatprep.mubr.f32.mxu0 0.0
        %2716 = vmatmul.mubr.f32.gmra.mrb[0].mxu0 %v2573
        %v2717 = vpop.f32.mrb[0].mxu0
        %v2718 = vadd.f32 0.0, %v2717
        %v2719 = vpop.f32.mrb[0].mxu0
        %2720 = vmatprep.mubr.f32.mxu0 0.0
        %2721 = vmatmul.mubr.f32.gmra.mrb[0].mxu0 %v2576
        %v2722 = vpop.f32.mrb[0].mxu0
        %v2723 = vadd.f32 0.0, %v2722
        %v2724 = vpop.f32.mrb[0].mxu0
        %2725 = vdwg.mxu0
        %v2726 = vld [vmem:[#allocation3] sm:$0xff]
        %v2727 = vld [vmem:[#allocation3 + $0x8] sm:$0xff]
        %v2728 = vld [vmem:[#allocation3 + $0x10] sm:$0xff]
        %v2729 = vld [vmem:[#allocation3 + $0x18] sm:$0xff]
        %v2730 = vld [vmem:[#allocation3 + $0x20] sm:$0xff]
        %v2731 = vld [vmem:[#allocation3 + $0x28] sm:$0xff]
        %v2732 = vld [vmem:[#allocation3 + $0x30] sm:$0xff]
        %v2733 = vld [vmem:[#allocation3 + $0x38] sm:$0xff]
        %v2734 = vld [vmem:[#allocation3 + $0x40] sm:$0xff]
        %v2735 = vld [vmem:[#allocation3 + $0x48] sm:$0xff]
        %v2736 = vld [vmem:[#allocation3 + $0x50] sm:$0xff]
        %v2737 = vld [vmem:[#allocation3 + $0x58] sm:$0xff]
        %v2738 = vld [vmem:[#allocation3 + $0x60] sm:$0xff]
        %v2739 = vld [vmem:[#allocation3 + $0x68] sm:$0xff]
        %v2740 = vld [vmem:[#allocation3 + $0x70] sm:$0xff]
        %v2741 = vld [vmem:[#allocation3 + $0x78] sm:$0xff]
        %v2742 = vadd.f32 %v2726, %v2648
        %v2743 = vadd.f32 %v2727, %v2653
        %v2744 = vadd.f32 %v2728, %v2658
        %v2745 = vadd.f32 %v2729, %v2663
        %v2746 = vadd.f32 %v2730, %v2668
        %v2747 = vadd.f32 %v2731, %v2673
        %v2748 = vadd.f32 %v2732, %v2678
        %v2749 = vadd.f32 %v2733, %v2683
        %v2750 = vadd.f32 %v2734, %v2688
        %v2751 = vadd.f32 %v2735, %v2693
        %v2752 = vadd.f32 %v2736, %v2698
        %v2753 = vadd.f32 %v2737, %v2703
        %v2754 = vadd.f32 %v2738, %v2708
        %v2755 = vadd.f32 %v2739, %v2713
        %v2756 = vadd.f32 %v2740, %v2718
        %v2757 = vadd.f32 %v2741, %v2723
        %2758 = vst.msk [vmem:[#allocation3] sm:$0xff] %vm365, %v2742
        %2759 = vst.msk [vmem:[#allocation3 + $0x8] sm:$0xff] %vm365, %v2743
        %2760 = vst.msk [vmem:[#allocation3 + $0x10] sm:$0xff] %vm365, %v2744
        %2761 = vst.msk [vmem:[#allocation3 + $0x18] sm:$0xff] %vm365, %v2745
        %2762 = vst.msk [vmem:[#allocation3 + $0x20] sm:$0xff] %vm365, %v2746
        %2763 = vst.msk [vmem:[#allocation3 + $0x28] sm:$0xff] %vm365, %v2747
        %2764 = vst.msk [vmem:[#allocation3 + $0x30] sm:$0xff] %vm365, %v2748
        %2765 = vst.msk [vmem:[#allocation3 + $0x38] sm:$0xff] %vm365, %v2749
        %2766 = vst.msk [vmem:[#allocation3 + $0x40] sm:$0xff] %vm365, %v2750
        %2767 = vst.msk [vmem:[#allocation3 + $0x48] sm:$0xff] %vm365, %v2751
        %2768 = vst.msk [vmem:[#allocation3 + $0x50] sm:$0xff] %vm365, %v2752
        %2769 = vst.msk [vmem:[#allocation3 + $0x58] sm:$0xff] %vm365, %v2753
        %2770 = vst.msk [vmem:[#allocation3 + $0x60] sm:$0xff] %vm365, %v2754
        %2771 = vst.msk [vmem:[#allocation3 + $0x68] sm:$0xff] %vm365, %v2755
        %2772 = vst.msk [vmem:[#allocation3 + $0x70] sm:$0xff] %vm365, %v2756
        %2773 = vst.msk [vmem:[#allocation3 + $0x78] sm:$0xff] %vm365, %v2757
        %p2774 = scmp.eq.s32.totalorder %s23, 0
        %p2775 = scmp.eq.s32.totalorder %s24, 0
        %p2776 = pnand %p2774, %p2775
        %p2777 = pneg %p2776
        // Predicated region
        $region45: #{tpu_custom_call.1} parent=35 // pred_check
          _
        $region46: #{tpu_custom_call.1} parent=35 // pred_check_branch
          %2779 = sbr.rel (%p2776) target = $region48
        $region47: #{tpu_custom_call.1} parent=35 // pred_region
          %vm2780 = vcmask 24576
          %2781 = vst.msk [vmem:[#allocation4] sm:$0x1] %vm2780, 0.0
          %2782 = vst.msk [vmem:[#allocation6] sm:$0x1] %vm2780, 0.0
        $region48: #{tpu_custom_call.1} parent=35 // pred_fallthru
          _
        %v2783 = vld [vmem:[#allocation3] sm:$0xff]
        %v2784 = vld [vmem:[#allocation3 + $0x8] sm:$0xff]
        %v2785 = vld [vmem:[#allocation3 + $0x10] sm:$0xff]
        %v2786 = vld [vmem:[#allocation3 + $0x18] sm:$0xff]
        %v2787 = vld [vmem:[#allocation3 + $0x20] sm:$0xff]
        %v2788 = vld [vmem:[#allocation3 + $0x28] sm:$0xff]
        %v2789 = vld [vmem:[#allocation3 + $0x30] sm:$0xff]
        %v2790 = vld [vmem:[#allocation3 + $0x38] sm:$0xff]
        %v2791 = vld [vmem:[#allocation3 + $0x40] sm:$0xff]
        %v2792 = vld [vmem:[#allocation3 + $0x48] sm:$0xff]
        %v2793 = vld [vmem:[#allocation3 + $0x50] sm:$0xff]
        %v2794 = vld [vmem:[#allocation3 + $0x58] sm:$0xff]
        %v2795 = vld [vmem:[#allocation3 + $0x60] sm:$0xff]
        %v2796 = vld [vmem:[#allocation3 + $0x68] sm:$0xff]
        %v2797 = vld [vmem:[#allocation3 + $0x70] sm:$0xff]
        %v2798 = vld [vmem:[#allocation3 + $0x78] sm:$0xff]
        %v2799 = vld [vmem:[#allocation4] sm:$0x1]
        %v2800 = vsel %vm365, %v2783, 0.0
        %v2801 = vsel %vm365, %v2784, 0.0
        %v2802 = vadd.f32 %v2800, %v2801
        %v2803 = vsel %vm365, %v2785, 0.0
        %v2804 = vadd.f32 %v2802, %v2803
        %v2805 = vsel %vm365, %v2786, 0.0
        %v2806 = vadd.f32 %v2804, %v2805
        %v2807 = vsel %vm365, %v2787, 0.0
        %v2808 = vadd.f32 %v2806, %v2807
        %v2809 = vsel %vm365, %v2788, 0.0
        %v2810 = vadd.f32 %v2808, %v2809
        %v2811 = vsel %vm365, %v2789, 0.0
        %v2812 = vadd.f32 %v2810, %v2811
        %v2813 = vsel %vm365, %v2790, 0.0
        %v2814 = vadd.f32 %v2812, %v2813
        %v2815 = vsel %vm365, %v2791, 0.0
        %v2816 = vadd.f32 %v2814, %v2815
        %v2817 = vsel %vm365, %v2792, 0.0
        %v2818 = vadd.f32 %v2816, %v2817
        %v2819 = vsel %vm365, %v2793, 0.0
        %v2820 = vadd.f32 %v2818, %v2819
        %v2821 = vsel %vm365, %v2794, 0.0
        %v2822 = vadd.f32 %v2820, %v2821
        %v2823 = vsel %vm365, %v2795, 0.0
        %v2824 = vadd.f32 %v2822, %v2823
        %v2825 = vsel %vm365, %v2796, 0.0
        %v2826 = vadd.f32 %v2824, %v2825
        %v2827 = vsel %vm365, %v2797, 0.0
        %v2828 = vadd.f32 %v2826, %v2827
        %v2829 = vsel %vm365, %v2798, 0.0
        %v2830 = vadd.f32 %v2828, %v2829
        %v2831 = vrot.slane %v2830, 4
        %v2832 = vadd.f32 %v2830, %v2831
        %v2833 = vrot.slane %v2832, 2
        %v2834 = vadd.f32 %v2832, %v2833
        %v2835 = vrot.slane %v2834, 1
        %v2836 = vadd.f32 %v2834, %v2835
        %v2837 = vadd.f32 %v2799, %v2836
        %vm2838 = vcmask 24576
        %2839 = vst.msk [vmem:[#allocation4] sm:$0x1] %vm2838, %v2837
        %v2840 = vld [vmem:[#allocation6] sm:$0x1]
        %v2841 = vmul.f32 %v2783, %v2783
        %v2842 = vmul.f32 %v2784, %v2784
        %v2843 = vmul.f32 %v2785, %v2785
        %v2844 = vmul.f32 %v2786, %v2786
        %v2845 = vmul.f32 %v2787, %v2787
        %v2846 = vmul.f32 %v2788, %v2788
        %v2847 = vmul.f32 %v2789, %v2789
        %v2848 = vmul.f32 %v2790, %v2790
        %v2849 = vmul.f32 %v2791, %v2791
        %v2850 = vmul.f32 %v2792, %v2792
        %v2851 = vmul.f32 %v2793, %v2793
        %v2852 = vmul.f32 %v2794, %v2794
        %v2853 = vmul.f32 %v2795, %v2795
        %v2854 = vmul.f32 %v2796, %v2796
        %v2855 = vmul.f32 %v2797, %v2797
        %v2856 = vmul.f32 %v2798, %v2798
        %v2857 = vsel %vm365, %v2841, 0.0
        %v2858 = vsel %vm365, %v2842, 0.0
        %v2859 = vadd.f32 %v2857, %v2858
        %v2860 = vsel %vm365, %v2843, 0.0
        %v2861 = vadd.f32 %v2859, %v2860
        %v2862 = vsel %vm365, %v2844, 0.0
        %v2863 = vadd.f32 %v2861, %v2862
        %v2864 = vsel %vm365, %v2845, 0.0
        %v2865 = vadd.f32 %v2863, %v2864
        %v2866 = vsel %vm365, %v2846, 0.0
        %v2867 = vadd.f32 %v2865, %v2866
        %v2868 = vsel %vm365, %v2847, 0.0
        %v2869 = vadd.f32 %v2867, %v2868
        %v2870 = vsel %vm365, %v2848, 0.0
        %v2871 = vadd.f32 %v2869, %v2870
        %v2872 = vsel %vm365, %v2849, 0.0
        %v2873 = vadd.f32 %v2871, %v2872
        %v2874 = vsel %vm365, %v2850, 0.0
        %v2875 = vadd.f32 %v2873, %v2874
        %v2876 = vsel %vm365, %v2851, 0.0
        %v2877 = vadd.f32 %v2875, %v2876
        %v2878 = vsel %vm365, %v2852, 0.0
        %v2879 = vadd.f32 %v2877, %v2878
        %v2880 = vsel %vm365, %v2853, 0.0
        %v2881 = vadd.f32 %v2879, %v2880
        %v2882 = vsel %vm365, %v2854, 0.0
        %v2883 = vadd.f32 %v2881, %v2882
        %v2884 = vsel %vm365, %v2855, 0.0
        %v2885 = vadd.f32 %v2883, %v2884
        %v2886 = vsel %vm365, %v2856, 0.0
        %v2887 = vadd.f32 %v2885, %v2886
        %v2888 = vrot.slane %v2887, 4
        %v2889 = vadd.f32 %v2887, %v2888
        %v2890 = vrot.slane %v2889, 2
        %v2891 = vadd.f32 %v2889, %v2890
        %v2892 = vrot.slane %v2891, 1
        %v2893 = vadd.f32 %v2891, %v2892
        %v2894 = vadd.f32 %v2840, %v2893
        %2895 = vst.msk [vmem:[#allocation6] sm:$0x1] %vm2838, %v2894
        // Predicated region
        $region49: #{tpu_custom_call.1} parent=35 // pred_check
          %p2896 = pneg %p165
        $region50: #{tpu_custom_call.1} parent=35 // pred_check_branch
          %2898 = sbr.rel (%p2896) target = $region52
        $region51: #{tpu_custom_call.1} parent=35 // pred_region
          %s2900 = ssub.s32 16, 16
          %2901 = vsyncadd [#allocation5], %s2900
          %s2903 = sshll.u32 [#allocation4], 4
          %s2904 = int_to_ptr.vmem [resolvable:$true] %s2903
          %2906 = dma.vmem_to_hbm [thread:$0]  %s2904, 16, %s4, [#allocation5]
        $region52: #{tpu_custom_call.1} parent=35 // pred_fallthru
          _
        // Predicated region
        $region53: #{tpu_custom_call.1} parent=35 // pred_check
          %p2907 = pneg %p186
        $region54: #{tpu_custom_call.1} parent=35 // pred_check_branch
          %2909 = sbr.rel (%p2907) target = $region56
        $region55: #{tpu_custom_call.1} parent=35 // pred_region
          %s2911 = ssub.s32 16, 16
          %2912 = vsyncadd [#allocation7], %s2911
          %s2914 = sshll.u32 [#allocation6], 4
          %s2915 = int_to_ptr.vmem [resolvable:$true] %s2914
          %2917 = dma.vmem_to_hbm [thread:$0]  %s2915, 16, %s5, [#allocation7]
        $region56: #{tpu_custom_call.1} parent=35 // pred_fallthru
          _
        // Predicated region
        $region57: #{tpu_custom_call.1} parent=35 // pred_check
          %p2918 = pneg %p165
        $region58: #{tpu_custom_call.1} parent=35 // pred_check_branch
          %2920 = sbr.rel (%p2918) target = $region60
        $region59: #{tpu_custom_call.1} parent=35 // pred_region
          %2921 = dma.done [#allocation5], 16
        $region60: #{tpu_custom_call.1} parent=35 // pred_fallthru
          _
        // Predicated region
        $region61: #{tpu_custom_call.1} parent=35 // pred_check
          %p2922 = pneg %p186
        $region62: #{tpu_custom_call.1} parent=35 // pred_check_branch
          %2924 = sbr.rel (%p2922) target = $region64
        $region63: #{tpu_custom_call.1} parent=35 // pred_region
          %2925 = dma.done [#allocation7], 16
        $region64: #{tpu_custom_call.1} parent=35 // pred_fallthru
          _
      $region36: #{tpu_custom_call.1} parent=5 // pred_fallthru
        _
      %p2926 = scmp.le.s32.totalorder 2, %s14
      // Predicated region
      $region65: #{tpu_custom_call.1} parent=5 // pred_check
        %p2927 = pneg %p2926
      $region66: #{tpu_custom_call.1} parent=5 // pred_check_branch
        %2929 = sbr.rel (%p2927) target = $region68
      $region67: #{tpu_custom_call.1} parent=5 // pred_region
        %s2930 = ssub.s32 %s14, 2
      $region68: #{tpu_custom_call.1} parent=5 // pred_fallthru
        _
    $region6: #{tpu_custom_call.1} parent=1 // loop_footer
      %s18 = sadd.s32 1, %s14
    $region7: #{tpu_custom_call.1} parent=1 // loop_footer_branch
      %13 = sbr.rel target = $region3
    $region8: #{tpu_custom_call.1} parent=1 // loop_exit
      _
    %2931 = vsyncpa [#allocation5], 1
    %s2932 = scalar_lea.sflag [#allocation5], 1
    %2933 = vsyncpa %s2932, 1
    %2934 = vsyncpa [#allocation7], 1

</llo_original>
